<compile_context>
chip_gen: v7x
topology: tpu7x:2x2x1
jax: 0.10.0
libtpu: 0.0.40
codegen_flags: <defaults>
</compile_context>

<pallas_src>
import functools

import jax
import jax.numpy as jnp
from jax.experimental import pallas as pl
from jax.experimental.pallas import tpu as pltpu

# ------------------------------- constants ---------------------------------
HIDDEN_DIM = 512
N_CLASSES = 26
LATENT_DIM = 512
THETA_SP = 10
BETA_SP = 10
TRANS_SP = 2
N_VERTS = 778
N_JOINTS = 21

SC_MEAN, SC_STD = 813.0, 151.0
TR0_STD, TR0_MEAN = 54.0, 45.0
TR1_STD, TR1_MEAN = 54.0, 120.0
BN_EPS = 1e-5

HEAD_PAD = 128                                   # lane-dense packed head width
VFLAT = N_VERTS * 3                              # 2334
JFLAT = N_JOINTS * 3                             # 63
VPAD = ((VFLAT + 127) // 128) * 128              # 2432 (lane-dense)
JPAD = ((JFLAT + 127) // 128) * 128              # 128  (lane-dense)


def _resident_spec(shape):
    """Full-array BlockSpec whose block index is constant across the grid
    (loaded once / written once, resident in VMEM for all grid steps)."""
    nd = len(shape)
    return pl.BlockSpec(shape, lambda k, _nd=nd: (0,) * _nd)


# ------------------------------- fused kernel -------------------------------
def fused_kernel(x_ref, wenc_ref, benc_ref, w1_ref, b1_ref, whd_ref, bhd_ref,
                 wv_ref, bv_ref, wj_ref, bj_ref, vsel_ref, jsel_ref,
                 head_ref, v3_ref, v2_ref, j3_ref, j2_ref,
                 pooled_acc, *, inv_hw, body):
    k = pl.program_id(0)

    # ---- chunked global-average-pool reduction (encoder stand-in, part 1) ---
    @pl.when(k == 0)
    def _():
        pooled_acc[...] = jnp.zeros_like(pooled_acc)

    pooled_acc[...] += jnp.sum(x_ref[...], axis=2)               # (B, C)

    # ---- everything else on the last chunk ----------------------------------
    @pl.when(k == pl.num_programs(0) - 1)
    def _():
        pooled = pooled_acc[...] * inv_hw                        # (B, C)

        # encoder stand-in: Linear(C, 512)
        feat = jnp.dot(pooled, wenc_ref[...],
                       preferred_element_type=jnp.float32) + benc_ref[...]

        # output_layers: Linear(512,512) with BN(eval) folded in, then ReLU
        h = jnp.dot(feat, w1_ref[...],
                    preferred_element_type=jnp.float32) + b1_ref[...]
        h = jnp.maximum(h, 0.0)

        # packed head: lanes 0..25 = pose_est(26), lane 26 = disc logit, rest 0
        head = jnp.dot(h, whd_ref[...],
                       preferred_element_type=jnp.float32) + bhd_ref[...]
        head_ref[...] = head                                     # (B, 128) raw

        # get_pose_shape_trans_scale glue (fused): the values needed for the
        # 2D projection, de-normalized when not body.
        ps = head[:, :THETA_SP + BETA_SP]                        # (B, 20)
        t0 = head[:, THETA_SP + BETA_SP:THETA_SP + BETA_SP + 1]  # (B, 1)
        t1 = head[:, THETA_SP + BETA_SP + 1:THETA_SP + BETA_SP + 2]
        sc = head[:, N_CLASSES - 1:N_CLASSES]                    # (B, 1)
        if not body:
            t0 = t0 * TR0_STD + TR0_MEAN
            t1 = t1 * TR1_STD + TR1_MEAN
            sc = sc * SC_STD + SC_MEAN

        # mano stand-in: linear map [pose||shape] -> flat verts / joints
        vflat = jnp.dot(ps, wv_ref[...],
                        preferred_element_type=jnp.float32) + bv_ref[...]   # (B, VPAD)
        jflat = jnp.dot(ps, wj_ref[...],
                        preferred_element_type=jnp.float32) + bj_ref[...]   # (B, JPAD)
        v3_ref[...] = vflat
        j3_ref[...] = jflat

        # 2D projection on the flat lane-dense layout:
        #   v2[.., 3i]   = v3*s + trans_x ; v2[.., 3i+1] = v3*s + trans_y
        #   v2[.., 3i+2] = v3*s + 0       ; padding lanes stay 0
        v2_ref[...] = vflat * sc + t0 * vsel_ref[0:1, :] + t1 * vsel_ref[1:2, :]
        j2_ref[...] = jflat * sc + t0 * jsel_ref[0:1, :] + t1 * jsel_ref[1:2, :]


# ------------------------------ params & wrapper -----------------------------
def init_params(key, in_channels):
    ks = jax.random.split(key, 8)
    p = {}
    p["w_enc"] = 0.02 * jax.random.normal(ks[0], (in_channels, LATENT_DIM), jnp.float32)
    p["b_enc"] = jnp.zeros((1, LATENT_DIM), jnp.float32)
    p["w1"] = 0.02 * jax.random.normal(ks[1], (LATENT_DIM, HIDDEN_DIM), jnp.float32)
    p["b1"] = jnp.zeros((1, HIDDEN_DIM), jnp.float32)
    p["bn_gamma"] = jnp.ones((1, HIDDEN_DIM), jnp.float32)
    p["bn_beta"] = jnp.zeros((1, HIDDEN_DIM), jnp.float32)
    p["bn_mean"] = jnp.zeros((1, HIDDEN_DIM), jnp.float32)
    p["bn_var"] = jnp.ones((1, HIDDEN_DIM), jnp.float32)
    p["wp"] = 0.02 * jax.random.normal(ks[2], (HIDDEN_DIM, N_CLASSES), jnp.float32)
    p["bp"] = jnp.zeros((1, N_CLASSES), jnp.float32)
    p["wd"] = 0.02 * jax.random.normal(ks[3], (HIDDEN_DIM, 1), jnp.float32)
    p["bd"] = jnp.zeros((1, 1), jnp.float32)
    p["wv"] = 0.02 * jax.random.normal(ks[4], (THETA_SP + BETA_SP, VFLAT), jnp.float32)
    p["bv"] = 0.01 * jax.random.normal(ks[5], (1, VFLAT), jnp.float32)
    p["wj"] = 0.02 * jax.random.normal(ks[6], (THETA_SP + BETA_SP, JFLAT), jnp.float32)
    p["bj"] = 0.01 * jax.random.normal(ks[7], (1, JFLAT), jnp.float32)
    return p


@functools.partial(jax.jit, static_argnames=("body", "hw_chunk"))
def hand_pose_forward(x, params, body=False, hw_chunk=None):
    """Pallas implementation of Hand_pose_est_model.forward (args.body == body)."""
    x = x.astype(jnp.float32)
    B, C, H, W = x.shape
    HW = H * W
    x3 = x.reshape(B, C, HW)

    # ---- pick an encoder chunk (multiple of 128 lanes) for the GAP pipeline --
    if hw_chunk is None:
        hw_chunk = HW
        for cand in (2048, 1024, 512, 256, 128):
            if HW % cand == 0:
                hw_chunk = cand
                break
    assert HW % hw_chunk == 0, "hw_chunk must divide H*W"
    n_chunks = HW // hw_chunk

    # ---- fold BatchNorm1d (eval) into Linear(512,512) (exact) ----------------
    bn_scale = params["bn_gamma"] * jax.lax.rsqrt(params["bn_var"] + BN_EPS)  # (1,512)
    w1f = params["w1"] * bn_scale
    b1f = (params["b1"] - params["bn_mean"]) * bn_scale + params["bn_beta"]

    # ---- pack pose_est + disc_est into one lane-dense (512,128) head ---------
    whd = jnp.zeros((HIDDEN_DIM, HEAD_PAD), jnp.float32)
    whd = whd.at[:, :N_CLASSES].set(params["wp"])
    whd = whd.at[:, N_CLASSES:N_CLASSES + 1].set(params["wd"])
    bhd = jnp.zeros((1, HEAD_PAD), jnp.float32)
    bhd = bhd.at[:, :N_CLASSES].set(params["bp"])
    bhd = bhd.at[:, N_CLASSES:N_CLASSES + 1].set(params["bd"])

    # ---- pad mano weights to lane-dense widths (zeros in padding lanes) ------
    wv = jnp.pad(params["wv"], ((0, 0), (0, VPAD - VFLAT)))
    bv = jnp.pad(params["bv"], ((0, 0), (0, VPAD - VFLAT)))
    wj = jnp.pad(params["wj"], ((0, 0), (0, JPAD - JFLAT)))
    bj = jnp.pad(params["bj"], ((0, 0), (0, JPAD - JFLAT)))

    # selector patterns for the flat 2D projection (row 0 -> +tx, row 1 -> +ty)
    vidx = jnp.arange(VPAD)
    vsel = jnp.stack([((vidx % 3 == 0) & (vidx < VFLAT)).astype(jnp.float32),
                      ((vidx % 3 == 1) & (vidx < VFLAT)).astype(jnp.float32)], axis=0)
    jidx = jnp.arange(JPAD)
    jsel = jnp.stack([((jidx % 3 == 0) & (jidx < JFLAT)).astype(jnp.float32),
                      ((jidx % 3 == 1) & (jidx < JFLAT)).astype(jnp.float32)], axis=0)

    inputs = [x3, params["w_enc"], params["b_enc"], w1f, b1f, whd, bhd,
              wv, bv, wj, bj, vsel, jsel]

    in_specs = [pl.BlockSpec((B, C, hw_chunk), lambda k: (0, 0, k))]
    in_specs += [_resident_spec(a.shape) for a in inputs[1:]]

    out_shape = (jax.ShapeDtypeStruct((B, HEAD_PAD), jnp.float32),   # packed head
                 jax.ShapeDtypeStruct((B, VPAD), jnp.float32),       # verts_3d flat
                 jax.ShapeDtypeStruct((B, VPAD), jnp.float32),       # verts_2d flat
                 jax.ShapeDtypeStruct((B, JPAD), jnp.float32),       # joints_3d flat
                 jax.ShapeDtypeStruct((B, JPAD), jnp.float32))       # joints_2d flat
    out_specs = tuple(_resident_spec(s.shape) for s in out_shape)

    kernel = functools.partial(fused_kernel, inv_hw=1.0 / HW, body=body)

    head, v3f, v2f, j3f, j2f = pl.pallas_call(
        kernel,
        grid=(n_chunks,),
        in_specs=in_specs,
        out_specs=out_specs,
        out_shape=out_shape,
        scratch_shapes=[pltpu.VMEM((B, C), jnp.float32)],            # GAP accumulator
        compiler_params=pltpu.CompilerParams(
            dimension_semantics=("arbitrary",),                      # reduction axis
            vmem_limit_bytes=32 * 1024 * 1024),                      # safe on v5e/v6e/v7x
    )(*inputs)

    # ---- cheap wrapper-side unpacking (layout plumbing only) -----------------
    pose = head[:, :THETA_SP]
    shape = head[:, THETA_SP:THETA_SP + BETA_SP]
    trans = head[:, THETA_SP + BETA_SP:THETA_SP + BETA_SP + TRANS_SP]
    scale = head[:, N_CLASSES - 1]
    y = jax.nn.sigmoid(head[:, N_CLASSES:N_CLASSES + 1])
    if not body:
        trans = jnp.stack([trans[:, 0] * TR0_STD + TR0_MEAN,
                           trans[:, 1] * TR1_STD + TR1_MEAN], axis=1)
        scale = scale * SC_STD + SC_MEAN

    verts_3d = v3f[:, :VFLAT].reshape(B, N_VERTS, 3)
    joints_3d = j3f[:, :JFLAT].reshape(B, N_JOINTS, 3)
    verts_2d = v2f[:, :VFLAT].reshape(B, N_VERTS, 3)[:, :, :2]
    joints_2d = j2f[:, :JFLAT].reshape(B, N_JOINTS, 3)[:, :, :2]

    return (verts_3d, joints_3d, verts_2d, joints_2d,
            pose, shape, trans, scale, y)


# ------------------------------ pure-JAX reference ---------------------------
def reference_forward(x, params, body=False):
    with jax.default_matmul_precision("highest"):
        x = x.astype(jnp.float32)
        B, C, H, W = x.shape
        pooled = x.reshape(B, C, H * W).mean(axis=2)
        feat = pooled @ params["w_enc"] + params["b_enc"]
        h = feat @ params["w1"] + params["b1"]
        h = (params["bn_gamma"] * (h - params["bn_mean"])
             * jax.lax.rsqrt(params["bn_var"] + BN_EPS) + params["bn_beta"])
        h = jnp.maximum(h, 0.0)
        pose_raw = h @ params["wp"] + params["bp"]
        y = jax.nn.sigmoid(h @ params["wd"] + params["bd"])
        pose = pose_raw[:, :THETA_SP]
        shape = pose_raw[:, THETA_SP:THETA_SP + BETA_SP]
        trans = pose_raw[:, THETA_SP + BETA_SP:THETA_SP + BETA_SP + TRANS_SP]
        scale = pose_raw[:, -1]
        if not body:
            trans = jnp.stack([trans[:, 0] * TR0_STD + TR0_MEAN,
                               trans[:, 1] * TR1_STD + TR1_MEAN], axis=1)
            scale = scale * SC_STD + SC_MEAN
        ps = jnp.concatenate([pose, shape], axis=1)
        v3 = (ps @ params["wv"] + params["bv"]).reshape(B, N_VERTS, 3)
        j3 = (ps @ params["wj"] + params["bj"]).reshape(B, N_JOINTS, 3)
        t3 = jnp.concatenate([trans, jnp.zeros((B, 1), jnp.float32)], axis=1)
        v2 = v3 * scale[:, None, None] + t3[:, None, :]
        j2 = j3 * scale[:, None, None] + t3[:, None, :]
        return (v3, j3, v2[:, :, :2], j2[:, :, :2], pose, shape, trans, scale, y)


# --------------------------------- main --------------------------------------
if __name__ == "__main__":
    key = jax.random.PRNGKey(0)
    k_x, k_p = jax.random.split(key)

    B, C, H, W = 2, 4, 16, 16
    x = jax.random.normal(k_x, (B, C, H, W), jnp.float32)        # NCHW, like PyTorch
    params = init_params(k_p, C)

    # hw_chunk=128 -> 2 grid steps: exercises the chunked GAP accumulator path
    outs = hand_pose_forward(x, params, body=False, hw_chunk=128)
    outs = jax.block_until_ready(outs)

    (verts_3d, joints_3d, verts_2d, joints_2d,
     pose, shape, trans, scale, y) = outs

    assert verts_3d.shape == (B, N_VERTS, 3)
    assert joints_3d.shape == (B, N_JOINTS, 3)
    assert verts_2d.shape == (B, N_VERTS, 2)
    assert joints_2d.shape == (B, N_JOINTS, 2)
    assert pose.shape == (B, THETA_SP)
    assert shape.shape == (B, BETA_SP)
    assert trans.shape == (B, TRANS_SP)
    assert scale.shape == (B,)
    assert y.shape == (B, 1)

    # numerical cross-check against the pure-JAX reference
    ref = reference_forward(x, params, body=False)
    for got, want in zip(outs, ref):
        assert got.shape == want.shape
        assert bool(jnp.allclose(got, want, rtol=2e-2, atol=2e-2))

    print("KERNEL_OK")
</pallas_src>

<mosaic_0001>
module attributes {stable_mosaic.version = 11 : i64} {
  func.func @fused_kernel(%arg0: i32, %arg1: memref<2x4x128xf32, #tpu.memory_space<vmem>>, %arg2: memref<4x512xf32, #tpu.memory_space<vmem>>, %arg3: memref<1x512xf32, #tpu.memory_space<vmem>>, %arg4: memref<512x512xf32, #tpu.memory_space<vmem>>, %arg5: memref<1x512xf32, #tpu.memory_space<vmem>>, %arg6: memref<512x128xf32, #tpu.memory_space<vmem>>, %arg7: memref<1x128xf32, #tpu.memory_space<vmem>>, %arg8: memref<20x2432xf32, #tpu.memory_space<vmem>>, %arg9: memref<1x2432xf32, #tpu.memory_space<vmem>>, %arg10: memref<20x128xf32, #tpu.memory_space<vmem>>, %arg11: memref<1x128xf32, #tpu.memory_space<vmem>>, %arg12: memref<2x2432xf32, #tpu.memory_space<vmem>>, %arg13: memref<2x128xf32, #tpu.memory_space<vmem>>, %arg14: memref<2x128xf32, #tpu.memory_space<vmem>>, %arg15: memref<2x2432xf32, #tpu.memory_space<vmem>>, %arg16: memref<2x2432xf32, #tpu.memory_space<vmem>>, %arg17: memref<2x128xf32, #tpu.memory_space<vmem>>, %arg18: memref<2x128xf32, #tpu.memory_space<vmem>>, %arg19: memref<2x4xf32, #tpu.memory_space<vmem>>) attributes {dimension_semantics = [#tpu.dimension_semantics<arbitrary>], iteration_bounds = array<i64: 2>, scalar_prefetch = 0 : i64, scratch_operands = 1 : i64, tpu.core_type = #tpu.core_type<tc>, window_params = [{transform_indices = @transform_0, window_bounds = array<i64: 2, 4, 128>}, {pipeline_mode = #tpu.pipeline_mode<synchronous>, transform_indices = @transform_1, window_bounds = array<i64: 4, 512>}, {pipeline_mode = #tpu.pipeline_mode<synchronous>, transform_indices = @transform_2, window_bounds = array<i64: 1, 512>}, {pipeline_mode = #tpu.pipeline_mode<synchronous>, transform_indices = @transform_3, window_bounds = array<i64: 512, 512>}, {pipeline_mode = #tpu.pipeline_mode<synchronous>, transform_indices = @transform_4, window_bounds = array<i64: 1, 512>}, {pipeline_mode = #tpu.pipeline_mode<synchronous>, transform_indices = @transform_5, window_bounds = array<i64: 512, 128>}, {pipeline_mode = #tpu.pipeline_mode<synchronous>, transform_indices = @transform_6, window_bounds = array<i64: 1, 128>}, {pipeline_mode = #tpu.pipeline_mode<synchronous>, transform_indices = @transform_7, window_bounds = array<i64: 20, 2432>}, {pipeline_mode = #tpu.pipeline_mode<synchronous>, transform_indices = @transform_8, window_bounds = array<i64: 1, 2432>}, {pipeline_mode = #tpu.pipeline_mode<synchronous>, transform_indices = @transform_9, window_bounds = array<i64: 20, 128>}, {pipeline_mode = #tpu.pipeline_mode<synchronous>, transform_indices = @transform_10, window_bounds = array<i64: 1, 128>}, {pipeline_mode = #tpu.pipeline_mode<synchronous>, transform_indices = @transform_11, window_bounds = array<i64: 2, 2432>}, {pipeline_mode = #tpu.pipeline_mode<synchronous>, transform_indices = @transform_12, window_bounds = array<i64: 2, 128>}, {pipeline_mode = #tpu.pipeline_mode<synchronous>, transform_indices = @transform_13, window_bounds = array<i64: 2, 128>}, {pipeline_mode = #tpu.pipeline_mode<synchronous>, transform_indices = @transform_14, window_bounds = array<i64: 2, 2432>}, {pipeline_mode = #tpu.pipeline_mode<synchronous>, transform_indices = @transform_15, window_bounds = array<i64: 2, 2432>}, {pipeline_mode = #tpu.pipeline_mode<synchronous>, transform_indices = @transform_16, window_bounds = array<i64: 2, 128>}, {pipeline_mode = #tpu.pipeline_mode<synchronous>, transform_indices = @transform_17, window_bounds = array<i64: 2, 128>}]} {
    %c0_i32 = arith.constant 0 : i32
    %0 = arith.cmpi eq, %arg0, %c0_i32 : i32
    %1 = arith.extui %0 : i1 to i32
    %c0_i32_0 = arith.constant 0 : i32
    %2 = arith.cmpi ne, %1, %c0_i32_0 : i32
    scf.if %2 {
      %cst_8 = arith.constant 0.000000e+00 : f32
      %11 = vector.broadcast %cst_8 : f32 to vector<2x4xf32>
      %c0_9 = arith.constant 0 : index
      %c0_10 = arith.constant 0 : index
      %12 = vector.load %arg19[%c0_9, %c0_10] : memref<2x4xf32, #tpu.memory_space<vmem>>, vector<2x4xf32>
      tpu.vector_store %arg19[%c0_9, %c0_10], %11 {strides = array<i32>} : memref<2x4xf32, #tpu.memory_space<vmem>>, vector<2x4xf32>,
    } else {
    }
    %c0 = arith.constant 0 : index
    %c0_1 = arith.constant 0 : index
    %3 = vector.load %arg19[%c0, %c0_1] : memref<2x4xf32, #tpu.memory_space<vmem>>, vector<2x4xf32>
    %c0_2 = arith.constant 0 : index
    %c0_3 = arith.constant 0 : index
    %c0_4 = arith.constant 0 : index
    %4 = vector.load %arg1[%c0_2, %c0_3, %c0_4] : memref<2x4x128xf32, #tpu.memory_space<vmem>>, vector<2x4x128xf32>
    %cst = arith.constant dense<0.000000e+00> : vector<2x4xf32>
    %5 = vector.multi_reduction <add>, %4, %cst [2] : vector<2x4x128xf32> to vector<2x4xf32>
    %6 = arith.addf %3, %5 : vector<2x4xf32>
    %c0_5 = arith.constant 0 : index
    %c0_6 = arith.constant 0 : index
    %7 = vector.load %arg19[%c0_5, %c0_6] : memref<2x4xf32, #tpu.memory_space<vmem>>, vector<2x4xf32>
    tpu.vector_store %arg19[%c0_5, %c0_6], %6 {strides = array<i32>} : memref<2x4xf32, #tpu.memory_space<vmem>>, vector<2x4xf32>,
    %c1_i32 = arith.constant 1 : i32
    %8 = arith.cmpi eq, %arg0, %c1_i32 : i32
    %9 = arith.extui %8 : i1 to i32
    %c0_i32_7 = arith.constant 0 : i32
    %10 = arith.cmpi ne, %9, %c0_i32_7 : i32
    scf.if %10 {
      %c0_8 = arith.constant 0 : index
      %c0_9 = arith.constant 0 : index
      %11 = vector.load %arg19[%c0_8, %c0_9] : memref<2x4xf32, #tpu.memory_space<vmem>>, vector<2x4xf32>
      %cst_10 = arith.constant 3.906250e-03 : f32
      %12 = vector.broadcast %cst_10 : f32 to vector<2x4xf32>
      %13 = arith.mulf %11, %12 : vector<2x4xf32>
      %c0_11 = arith.constant 0 : index
      %c0_12 = arith.constant 0 : index
      %14 = vector.load %arg2[%c0_11, %c0_12] : memref<4x512xf32, #tpu.memory_space<vmem>>, vector<4x512xf32>
      %cst_13 = arith.constant dense<0.000000e+00> : vector<2x512xf32>
      %15 = tpu.matmul %13, %14, %cst_13 {dimension_numbers = #tpu.dot_dimension_numbers<[1], [0], [0], [1], [0, 0, 1, 1], [], []>} : vector<2x4xf32>, vector<4x512xf32>, vector<2x512xf32> -> vector<2x512xf32>
      %c0_14 = arith.constant 0 : index
      %c0_15 = arith.constant 0 : index
      %16 = vector.load %arg3[%c0_14, %c0_15] : memref<1x512xf32, #tpu.memory_space<vmem>>, vector<1x512xf32>
      %17 = vector.broadcast %16 : vector<1x512xf32> to vector<2x512xf32>
      %18 = arith.addf %15, %17 : vector<2x512xf32>
      %c0_16 = arith.constant 0 : index
      %c0_17 = arith.constant 0 : index
      %19 = vector.load %arg4[%c0_16, %c0_17] : memref<512x512xf32, #tpu.memory_space<vmem>>, vector<512x512xf32>
      %cst_18 = arith.constant dense<0.000000e+00> : vector<2x512xf32>
      %20 = tpu.matmul %18, %19, %cst_18 {dimension_numbers = #tpu.dot_dimension_numbers<[1], [0], [0], [1], [0, 0, 1, 1], [], []>} : vector<2x512xf32>, vector<512x512xf32>, vector<2x512xf32> -> vector<2x512xf32>
      %c0_19 = arith.constant 0 : index
      %c0_20 = arith.constant 0 : index
      %21 = vector.load %arg5[%c0_19, %c0_20] : memref<1x512xf32, #tpu.memory_space<vmem>>, vector<1x512xf32>
      %22 = vector.broadcast %21 : vector<1x512xf32> to vector<2x512xf32>
      %23 = arith.addf %20, %22 : vector<2x512xf32>
      %cst_21 = arith.constant 0.000000e+00 : f32
      %24 = vector.broadcast %cst_21 : f32 to vector<2x512xf32>
      %25 = arith.maximumf %23, %24 : vector<2x512xf32>
      %c0_22 = arith.constant 0 : index
      %c0_23 = arith.constant 0 : index
      %26 = vector.load %arg6[%c0_22, %c0_23] : memref<512x128xf32, #tpu.memory_space<vmem>>, vector<512x128xf32>
      %cst_24 = arith.constant dense<0.000000e+00> : vector<2x128xf32>
      %27 = tpu.matmul %25, %26, %cst_24 {dimension_numbers = #tpu.dot_dimension_numbers<[1], [0], [0], [1], [0, 0, 1, 1], [], []>} : vector<2x512xf32>, vector<512x128xf32>, vector<2x128xf32> -> vector<2x128xf32>
      %c0_25 = arith.constant 0 : index
      %c0_26 = arith.constant 0 : index
      %28 = vector.load %arg7[%c0_25, %c0_26] : memref<1x128xf32, #tpu.memory_space<vmem>>, vector<1x128xf32>
      %29 = vector.broadcast %28 : vector<1x128xf32> to vector<2x128xf32>
      %30 = arith.addf %27, %29 : vector<2x128xf32>
      %c0_27 = arith.constant 0 : index
      %c0_28 = arith.constant 0 : index
      %31 = vector.load %arg14[%c0_27, %c0_28] : memref<2x128xf32, #tpu.memory_space<vmem>>, vector<2x128xf32>
      tpu.vector_store %arg14[%c0_27, %c0_28], %30 {strides = array<i32>} : memref<2x128xf32, #tpu.memory_space<vmem>>, vector<2x128xf32>,
      %32 = vector.extract_strided_slice %30 {offsets = [0, 0], sizes = [2, 20], strides = [1, 1]} : vector<2x128xf32> to vector<2x20xf32>
      %33 = vector.extract_strided_slice %30 {offsets = [0, 20], sizes = [2, 1], strides = [1, 1]} : vector<2x128xf32> to vector<2x1xf32>
      %34 = vector.extract_strided_slice %30 {offsets = [0, 21], sizes = [2, 1], strides = [1, 1]} : vector<2x128xf32> to vector<2x1xf32>
      %35 = vector.extract_strided_slice %30 {offsets = [0, 25], sizes = [2, 1], strides = [1, 1]} : vector<2x128xf32> to vector<2x1xf32>
      %cst_29 = arith.constant 5.400000e+01 : f32
      %36 = vector.broadcast %cst_29 : f32 to vector<2x1xf32>
      %37 = arith.mulf %33, %36 : vector<2x1xf32>
      %cst_30 = arith.constant 4.500000e+01 : f32
      %38 = vector.broadcast %cst_30 : f32 to vector<2x1xf32>
      %39 = arith.addf %37, %38 : vector<2x1xf32>
      %cst_31 = arith.constant 5.400000e+01 : f32
      %40 = vector.broadcast %cst_31 : f32 to vector<2x1xf32>
      %41 = arith.mulf %34, %40 : vector<2x1xf32>
      %cst_32 = arith.constant 1.200000e+02 : f32
      %42 = vector.broadcast %cst_32 : f32 to vector<2x1xf32>
      %43 = arith.addf %41, %42 : vector<2x1xf32>
      %cst_33 = arith.constant 1.510000e+02 : f32
      %44 = vector.broadcast %cst_33 : f32 to vector<2x1xf32>
      %45 = arith.mulf %35, %44 : vector<2x1xf32>
      %cst_34 = arith.constant 8.130000e+02 : f32
      %46 = vector.broadcast %cst_34 : f32 to vector<2x1xf32>
      %47 = arith.addf %45, %46 : vector<2x1xf32>
      %c0_35 = arith.constant 0 : index
      %c0_36 = arith.constant 0 : index
      %48 = vector.load %arg8[%c0_35, %c0_36] : memref<20x2432xf32, #tpu.memory_space<vmem>>, vector<20x2432xf32>
      %cst_37 = arith.constant dense<0.000000e+00> : vector<2x2432xf32>
      %49 = tpu.matmul %32, %48, %cst_37 {dimension_numbers = #tpu.dot_dimension_numbers<[1], [0], [0], [1], [0, 0, 1, 1], [], []>} : vector<2x20xf32>, vector<20x2432xf32>, vector<2x2432xf32> -> vector<2x2432xf32>
      %c0_38 = arith.constant 0 : index
      %c0_39 = arith.constant 0 : index
      %50 = vector.load %arg9[%c0_38, %c0_39] : memref<1x2432xf32, #tpu.memory_space<vmem>>, vector<1x2432xf32>
      %51 = vector.broadcast %50 : vector<1x2432xf32> to vector<2x2432xf32>
      %52 = arith.addf %49, %51 : vector<2x2432xf32>
      %c0_40 = arith.constant 0 : index
      %c0_41 = arith.constant 0 : index
      %53 = vector.load %arg10[%c0_40, %c0_41] : memref<20x128xf32, #tpu.memory_space<vmem>>, vector<20x128xf32>
      %cst_42 = arith.constant dense<0.000000e+00> : vector<2x128xf32>
      %54 = tpu.matmul %32, %53, %cst_42 {dimension_numbers = #tpu.dot_dimension_numbers<[1], [0], [0], [1], [0, 0, 1, 1], [], []>} : vector<2x20xf32>, vector<20x128xf32>, vector<2x128xf32> -> vector<2x128xf32>
      %c0_43 = arith.constant 0 : index
      %c0_44 = arith.constant 0 : index
      %55 = vector.load %arg11[%c0_43, %c0_44] : memref<1x128xf32, #tpu.memory_space<vmem>>, vector<1x128xf32>
      %56 = vector.broadcast %55 : vector<1x128xf32> to vector<2x128xf32>
      %57 = arith.addf %54, %56 : vector<2x128xf32>
      %c0_45 = arith.constant 0 : index
      %c0_46 = arith.constant 0 : index
      %58 = vector.load %arg15[%c0_45, %c0_46] : memref<2x2432xf32, #tpu.memory_space<vmem>>, vector<2x2432xf32>
      tpu.vector_store %arg15[%c0_45, %c0_46], %52 {strides = array<i32>} : memref<2x2432xf32, #tpu.memory_space<vmem>>, vector<2x2432xf32>,
      %c0_47 = arith.constant 0 : index
      %c0_48 = arith.constant 0 : index
      %59 = vector.load %arg17[%c0_47, %c0_48] : memref<2x128xf32, #tpu.memory_space<vmem>>, vector<2x128xf32>
      tpu.vector_store %arg17[%c0_47, %c0_48], %57 {strides = array<i32>} : memref<2x128xf32, #tpu.memory_space<vmem>>, vector<2x128xf32>,
      %60 = vector.broadcast %47 : vector<2x1xf32> to vector<2x2432xf32>
      %61 = arith.mulf %52, %60 : vector<2x2432xf32>
      %c0_49 = arith.constant 0 : index
      %c0_50 = arith.constant 0 : index
      %62 = vector.load %arg12[%c0_49, %c0_50] : memref<2x2432xf32, #tpu.memory_space<vmem>>, vector<1x2432xf32>
      %63 = vector.broadcast %39 : vector<2x1xf32> to vector<2x2432xf32>
      %64 = vector.broadcast %62 : vector<1x2432xf32> to vector<2x2432xf32>
      %65 = arith.mulf %63, %64 : vector<2x2432xf32>
      %66 = arith.addf %61, %65 : vector<2x2432xf32>
      %c1 = arith.constant 1 : index
      %c0_51 = arith.constant 0 : index
      %67 = vector.load %arg12[%c1, %c0_51] : memref<2x2432xf32, #tpu.memory_space<vmem>>, vector<1x2432xf32>
      %68 = vector.broadcast %43 : vector<2x1xf32> to vector<2x2432xf32>
      %69 = vector.broadcast %67 : vector<1x2432xf32> to vector<2x2432xf32>
      %70 = arith.mulf %68, %69 : vector<2x2432xf32>
      %71 = arith.addf %66, %70 : vector<2x2432xf32>
      %c0_52 = arith.constant 0 : index
      %c0_53 = arith.constant 0 : index
      %72 = vector.load %arg16[%c0_52, %c0_53] : memref<2x2432xf32, #tpu.memory_space<vmem>>, vector<2x2432xf32>
      tpu.vector_store %arg16[%c0_52, %c0_53], %71 {strides = array<i32>} : memref<2x2432xf32, #tpu.memory_space<vmem>>, vector<2x2432xf32>,
      %73 = vector.broadcast %47 : vector<2x1xf32> to vector<2x128xf32>
      %74 = arith.mulf %57, %73 : vector<2x128xf32>
      %c0_54 = arith.constant 0 : index
      %c0_55 = arith.constant 0 : index
      %75 = vector.load %arg13[%c0_54, %c0_55] : memref<2x128xf32, #tpu.memory_space<vmem>>, vector<1x128xf32>
      %76 = vector.broadcast %39 : vector<2x1xf32> to vector<2x128xf32>
      %77 = vector.broadcast %75 : vector<1x128xf32> to vector<2x128xf32>
      %78 = arith.mulf %76, %77 : vector<2x128xf32>
      %79 = arith.addf %74, %78 : vector<2x128xf32>
      %c1_56 = arith.constant 1 : index
      %c0_57 = arith.constant 0 : index
      %80 = vector.load %arg13[%c1_56, %c0_57] : memref<2x128xf32, #tpu.memory_space<vmem>>, vector<1x128xf32>
      %81 = vector.broadcast %43 : vector<2x1xf32> to vector<2x128xf32>
      %82 = vector.broadcast %80 : vector<1x128xf32> to vector<2x128xf32>
      %83 = arith.mulf %81, %82 : vector<2x128xf32>
      %84 = arith.addf %79, %83 : vector<2x128xf32>
      %c0_58 = arith.constant 0 : index
      %c0_59 = arith.constant 0 : index
      %85 = vector.load %arg18[%c0_58, %c0_59] : memref<2x128xf32, #tpu.memory_space<vmem>>, vector<2x128xf32>
      tpu.vector_store %arg18[%c0_58, %c0_59], %84 {strides = array<i32>} : memref<2x128xf32, #tpu.memory_space<vmem>>, vector<2x128xf32>,
    } else {
    }
    return
  }
  func.func @transform_0(%arg0: i32) -> (i32, i32, i32) {
    %c0_i32 = arith.constant 0 : i32
    %c0_i32_0 = arith.constant 0 : i32
    %c0_i32_1 = arith.constant 0 : i32
    return %c0_i32, %c0_i32_0, %arg0 : i32, i32, i32
  }
  func.func @transform_1(%arg0: i32) -> (i32, i32) {
    %c0_i32 = arith.constant 0 : i32
    %c0_i32_0 = arith.constant 0 : i32
    %c0_i32_1 = arith.constant 0 : i32
    return %c0_i32, %c0_i32_0 : i32, i32
  }
  func.func @transform_2(%arg0: i32) -> (i32, i32) {
    %c0_i32 = arith.constant 0 : i32
    %c0_i32_0 = arith.constant 0 : i32
    %c0_i32_1 = arith.constant 0 : i32
    return %c0_i32, %c0_i32_0 : i32, i32
  }
  func.func @transform_3(%arg0: i32) -> (i32, i32) {
    %c0_i32 = arith.constant 0 : i32
    %c0_i32_0 = arith.constant 0 : i32
    %c0_i32_1 = arith.constant 0 : i32
    return %c0_i32, %c0_i32_0 : i32, i32
  }
  func.func @transform_4(%arg0: i32) -> (i32, i32) {
    %c0_i32 = arith.constant 0 : i32
    %c0_i32_0 = arith.constant 0 : i32
    %c0_i32_1 = arith.constant 0 : i32
    return %c0_i32, %c0_i32_0 : i32, i32
  }
  func.func @transform_5(%arg0: i32) -> (i32, i32) {
    %c0_i32 = arith.constant 0 : i32
    %c0_i32_0 = arith.constant 0 : i32
    %c0_i32_1 = arith.constant 0 : i32
    return %c0_i32, %c0_i32_0 : i32, i32
  }
  func.func @transform_6(%arg0: i32) -> (i32, i32) {
    %c0_i32 = arith.constant 0 : i32
    %c0_i32_0 = arith.constant 0 : i32
    %c0_i32_1 = arith.constant 0 : i32
    return %c0_i32, %c0_i32_0 : i32, i32
  }
  func.func @transform_7(%arg0: i32) -> (i32, i32) {
    %c0_i32 = arith.constant 0 : i32
    %c0_i32_0 = arith.constant 0 : i32
    %c0_i32_1 = arith.constant 0 : i32
    return %c0_i32, %c0_i32_0 : i32, i32
  }
  func.func @transform_8(%arg0: i32) -> (i32, i32) {
    %c0_i32 = arith.constant 0 : i32
    %c0_i32_0 = arith.constant 0 : i32
    %c0_i32_1 = arith.constant 0 : i32
    return %c0_i32, %c0_i32_0 : i32, i32
  }
  func.func @transform_9(%arg0: i32) -> (i32, i32) {
    %c0_i32 = arith.constant 0 : i32
    %c0_i32_0 = arith.constant 0 : i32
    %c0_i32_1 = arith.constant 0 : i32
    return %c0_i32, %c0_i32_0 : i32, i32
  }
  func.func @transform_10(%arg0: i32) -> (i32, i32) {
    %c0_i32 = arith.constant 0 : i32
    %c0_i32_0 = arith.constant 0 : i32
    %c0_i32_1 = arith.constant 0 : i32
    return %c0_i32, %c0_i32_0 : i32, i32
  }
  func.func @transform_11(%arg0: i32) -> (i32, i32) {
    %c0_i32 = arith.constant 0 : i32
    %c0_i32_0 = arith.constant 0 : i32
    %c0_i32_1 = arith.constant 0 : i32
    return %c0_i32, %c0_i32_0 : i32, i32
  }
  func.func @transform_12(%arg0: i32) -> (i32, i32) {
    %c0_i32 = arith.constant 0 : i32
    %c0_i32_0 = arith.constant 0 : i32
    %c0_i32_1 = arith.constant 0 : i32
    return %c0_i32, %c0_i32_0 : i32, i32
  }
  func.func @transform_13(%arg0: i32) -> (i32, i32) {
    %c0_i32 = arith.constant 0 : i32
    %c0_i32_0 = arith.constant 0 : i32
    %c0_i32_1 = arith.constant 0 : i32
    return %c0_i32, %c0_i32_0 : i32, i32
  }
  func.func @transform_14(%arg0: i32) -> (i32, i32) {
    %c0_i32 = arith.constant 0 : i32
    %c0_i32_0 = arith.constant 0 : i32
    %c0_i32_1 = arith.constant 0 : i32
    return %c0_i32, %c0_i32_0 : i32, i32
  }
  func.func @transform_15(%arg0: i32) -> (i32, i32) {
    %c0_i32 = arith.constant 0 : i32
    %c0_i32_0 = arith.constant 0 : i32
    %c0_i32_1 = arith.constant 0 : i32
    return %c0_i32, %c0_i32_0 : i32, i32
  }
  func.func @transform_16(%arg0: i32) -> (i32, i32) {
    %c0_i32 = arith.constant 0 : i32
    %c0_i32_0 = arith.constant 0 : i32
    %c0_i32_1 = arith.constant 0 : i32
    return %c0_i32, %c0_i32_0 : i32, i32
  }
  func.func @transform_17(%arg0: i32) -> (i32, i32) {
    %c0_i32 = arith.constant 0 : i32
    %c0_i32_0 = arith.constant 0 : i32
    %c0_i32_1 = arith.constant 0 : i32
    return %c0_i32, %c0_i32_0 : i32, i32
  }
}

</mosaic_0001>

<llo_original>
// kernel: hand_pose_forward.1
$region0: #{hand_pose_forward.1}
  #allocation0 [shape = 'u32[]', space=smem, size = 0x4, offset = 0x4, fixed_abs, tag = 'smem constant byte address 0x4 - core index']
  #allocation1 [shape = 'u32[144,128]{1,0:T(1,128)}', space=vmem, size = 0x12000, scoped, tag = 'internal scratch']
  #allocation2 [shape = 'f32[2,4]{1,0:T(2,128)}', space=vmem, size = 0x400, scoped, tag = 'scratch operand']
  %s0 = inlined_call_operand.vmem [shape: f32[2,4,256], index: 0, kind: input, shape index: {}]
  %s1 = inlined_call_operand.vmem [shape: f32[4,512], index: 1, kind: input, shape index: {}]
  %s2 = inlined_call_operand.vmem [shape: f32[1,512], index: 2, kind: input, shape index: {}]
  %s3 = inlined_call_operand.vmem [shape: f32[512,512], index: 3, kind: input, shape index: {}]
  %s4 = inlined_call_operand.vmem [shape: f32[1,512], index: 4, kind: input, shape index: {}]
  %s5 = inlined_call_operand.vmem [shape: f32[512,128], index: 5, kind: input, shape index: {}]
  %s6 = inlined_call_operand.vmem [shape: f32[1,128], index: 6, kind: input, shape index: {}]
  %s7 = inlined_call_operand.vmem [shape: f32[20,2432], index: 7, kind: input, shape index: {}]
  %s8 = inlined_call_operand.vmem [shape: f32[1,2432], index: 8, kind: input, shape index: {}]
  %s9 = inlined_call_operand.vmem [shape: f32[20,128], index: 9, kind: input, shape index: {}]
  %s10 = inlined_call_operand.vmem [shape: f32[1,128], index: 10, kind: input, shape index: {}]
  %s11 = inlined_call_operand.vmem [shape: f32[2,2432], index: 11, kind: input, shape index: {}]
  %s12 = inlined_call_operand.vmem [shape: f32[2,128], index: 12, kind: input, shape index: {}]
  %s13 = inlined_call_operand.vmem [shape: f32[2,128], index: 13, kind: output, shape index: {0}]
  %s14 = inlined_call_operand.vmem [shape: f32[2,2432], index: 14, kind: output, shape index: {1}]
  %s15 = inlined_call_operand.vmem [shape: f32[2,2432], index: 15, kind: output, shape index: {2}]
  %s16 = inlined_call_operand.vmem [shape: f32[2,128], index: 16, kind: output, shape index: {3}]
  %s17 = inlined_call_operand.vmem [shape: f32[2,128], index: 17, kind: output, shape index: {4}]
  %18 = xla_tuple %s13, %s14, %s15, %s16, %s17
  %s19 = sld [smem:[#allocation0]]
  $region166: #{hand_pose_forward.1} parent=0
    _
  %s21 = ssub.s32 1, %s19
  %s22 = scalar_select 0, %s21, %s19
  $region1: #{hand_pose_forward.1} parent=0
    #allocation3 [shape = 'u8[8192]{0}', space=vmem, size = 0x2000, scoped, tag = 'input window, operand 0']
    loop: start=0, step=1, limit=4
    $region2: #{hand_pose_forward.1} parent=1 // loop_pre_header
      _
    $region3: #{hand_pose_forward.1} parent=1 // loop_header
      %s24 = sphi 0, %s28
      %p25 = scmp.ge.s32.totalorder %s24, 4
      %s34 = sphi 0, %s36
      %s37 = sphi 0, %s34
      %s38 = sphi 0, %s37
      %s54 = sphi 0, %s38
      %s58 = sphi 0, %s58
      %s60 = sphi 0, %s58
      %s61 = sphi 0, %s60
      %s75 = sphi 0, %s61
      %s79 = sphi 0, %s79
      %s81 = sphi 0, %s79
      %s82 = sphi 0, %s81
      %s96 = sphi 0, %s82
      %s100 = sphi 0, %s100
      %s102 = sphi 0, %s100
      %s103 = sphi 0, %s102
      %s117 = sphi 0, %s103
      %s121 = sphi 0, %s121
      %s123 = sphi 0, %s121
      %s124 = sphi 0, %s123
      %s138 = sphi 0, %s124
      %s142 = sphi 0, %s142
      %s144 = sphi 0, %s142
      %s145 = sphi 0, %s144
      %s159 = sphi 0, %s145
      %s163 = sphi 0, %s163
      %s165 = sphi 0, %s163
      %s166 = sphi 0, %s165
      %s180 = sphi 0, %s166
      %s184 = sphi 0, %s184
      %s186 = sphi 0, %s184
      %s187 = sphi 0, %s186
      %s201 = sphi 0, %s187
      %s205 = sphi 0, %s205
      %s207 = sphi 0, %s205
      %s208 = sphi 0, %s207
      %s222 = sphi 0, %s208
      %s226 = sphi 0, %s226
      %s228 = sphi 0, %s226
      %s229 = sphi 0, %s228
      %s243 = sphi 0, %s229
      %s247 = sphi 0, %s247
      %s249 = sphi 0, %s247
      %s250 = sphi 0, %s249
      %s264 = sphi 0, %s250
      %s268 = sphi 0, %s268
      %s270 = sphi 0, %s268
      %s271 = sphi 0, %s270
      %s285 = sphi 0, %s271
      %s289 = sphi 0, %s289
      %s291 = sphi 0, %s289
      %s292 = sphi 0, %s291
      %s306 = sphi 0, %s292
      %s310 = sphi 0, %s310
      %s312 = sphi 0, %s310
      %s313 = sphi 0, %s312
      %s327 = sphi 0, %s313
      %s331 = sphi 0, %s331
      %s333 = sphi 0, %s331
      %s334 = sphi 0, %s333
      %s348 = sphi 0, %s334
      %s352 = sphi 0, %s352
      %s354 = sphi 0, %s352
      %s355 = sphi 0, %s354
      %s369 = sphi 0, %s355
      %s373 = sphi 0, %s373
      %s375 = sphi 0, %s373
      %s376 = sphi 0, %s375
      %s390 = sphi 0, %s376
      %s394 = sphi 0, %s394
      %s396 = sphi 0, %s394
      %s397 = sphi 0, %s396
      %s411 = sphi 0, %s397
    $region4: #{hand_pose_forward.1} parent=1 // loop_header_branch
      %27 = sbr.rel (%p25) target = $region8
    $region5: #{hand_pose_forward.1} parent=1 // loop_body
      %s29 = ssub.s32 %s24, 1
      %s30 = ssub.s32 %s24, 2
      %s31 = sadd.s32 %s24, 1
      %s32 = ssub.s32 %s24, %s31
      %p33 = scmp.eq.s32.totalorder %s32, 0
      %s35 = sadd.s32 %s34, 1
      %s36 = scalar_select %p33, %s34, %s35
      %p39 = pneg %p33
      %p40 = scmp.eq.s32.totalorder %s24, 1
      %p41 = por %p39, %p40
      %p42 = scmp.ne.s32.totalorder %s34, %s37
      %p43 = scmp.eq.s32.totalorder %s24, 0
      %p44 = por %p42, %p43
      %p45 = scmp.ne.s32.totalorder %s34, %s37
      %p46 = scmp.eq.s32.totalorder %s29, 1
      %p47 = por %p45, %p46
      %p48 = scmp.ne.s32.totalorder %s37, %s38
      %p49 = scmp.eq.s32.totalorder %s29, 0
      %p50 = por %p48, %p49
      %p51 = scmp.ne.s32.totalorder %s37, %s38
      %p52 = scmp.eq.s32.totalorder %s30, 1
      %p53 = por %p51, %p52
      %p55 = scmp.ne.s32.totalorder %s38, %s54
      %p56 = scmp.eq.s32.totalorder %s30, 0
      %p57 = por %p55, %p56
      %s59 = sadd.s32 %s58, 1
      %p62 = scmp.eq.s32.totalorder %s24, 1
      %p63 = scmp.ne.s32.totalorder %s58, %s60
      %p64 = scmp.eq.s32.totalorder %s24, 0
      %p65 = por %p63, %p64
      %p66 = scmp.ne.s32.totalorder %s58, %s60
      %p67 = scmp.eq.s32.totalorder %s29, 1
      %p68 = por %p66, %p67
      %p69 = scmp.ne.s32.totalorder %s60, %s61
      %p70 = scmp.eq.s32.totalorder %s29, 0
      %p71 = por %p69, %p70
      %p72 = scmp.ne.s32.totalorder %s60, %s61
      %p73 = scmp.eq.s32.totalorder %s30, 1
      %p74 = por %p72, %p73
      %p76 = scmp.ne.s32.totalorder %s61, %s75
      %p77 = scmp.eq.s32.totalorder %s30, 0
      %p78 = por %p76, %p77
      %s80 = sadd.s32 %s79, 1
      %p83 = scmp.eq.s32.totalorder %s24, 1
      %p84 = scmp.ne.s32.totalorder %s79, %s81
      %p85 = scmp.eq.s32.totalorder %s24, 0
      %p86 = por %p84, %p85
      %p87 = scmp.ne.s32.totalorder %s79, %s81
      %p88 = scmp.eq.s32.totalorder %s29, 1
      %p89 = por %p87, %p88
      %p90 = scmp.ne.s32.totalorder %s81, %s82
      %p91 = scmp.eq.s32.totalorder %s29, 0
      %p92 = por %p90, %p91
      %p93 = scmp.ne.s32.totalorder %s81, %s82
      %p94 = scmp.eq.s32.totalorder %s30, 1
      %p95 = por %p93, %p94
      %p97 = scmp.ne.s32.totalorder %s82, %s96
      %p98 = scmp.eq.s32.totalorder %s30, 0
      %p99 = por %p97, %p98
      %s101 = sadd.s32 %s100, 1
      %p104 = scmp.eq.s32.totalorder %s24, 1
      %p105 = scmp.ne.s32.totalorder %s100, %s102
      %p106 = scmp.eq.s32.totalorder %s24, 0
      %p107 = por %p105, %p106
      %p108 = scmp.ne.s32.totalorder %s100, %s102
      %p109 = scmp.eq.s32.totalorder %s29, 1
      %p110 = por %p108, %p109
      %p111 = scmp.ne.s32.totalorder %s102, %s103
      %p112 = scmp.eq.s32.totalorder %s29, 0
      %p113 = por %p111, %p112
      %p114 = scmp.ne.s32.totalorder %s102, %s103
      %p115 = scmp.eq.s32.totalorder %s30, 1
      %p116 = por %p114, %p115
      %p118 = scmp.ne.s32.totalorder %s103, %s117
      %p119 = scmp.eq.s32.totalorder %s30, 0
      %p120 = por %p118, %p119
      %s122 = sadd.s32 %s121, 1
      %p125 = scmp.eq.s32.totalorder %s24, 1
      %p126 = scmp.ne.s32.totalorder %s121, %s123
      %p127 = scmp.eq.s32.totalorder %s24, 0
      %p128 = por %p126, %p127
      %p129 = scmp.ne.s32.totalorder %s121, %s123
      %p130 = scmp.eq.s32.totalorder %s29, 1
      %p131 = por %p129, %p130
      %p132 = scmp.ne.s32.totalorder %s123, %s124
      %p133 = scmp.eq.s32.totalorder %s29, 0
      %p134 = por %p132, %p133
      %p135 = scmp.ne.s32.totalorder %s123, %s124
      %p136 = scmp.eq.s32.totalorder %s30, 1
      %p137 = por %p135, %p136
      %p139 = scmp.ne.s32.totalorder %s124, %s138
      %p140 = scmp.eq.s32.totalorder %s30, 0
      %p141 = por %p139, %p140
      %s143 = sadd.s32 %s142, 1
      %p146 = scmp.eq.s32.totalorder %s24, 1
      %p147 = scmp.ne.s32.totalorder %s142, %s144
      %p148 = scmp.eq.s32.totalorder %s24, 0
      %p149 = por %p147, %p148
      %p150 = scmp.ne.s32.totalorder %s142, %s144
      %p151 = scmp.eq.s32.totalorder %s29, 1
      %p152 = por %p150, %p151
      %p153 = scmp.ne.s32.totalorder %s144, %s145
      %p154 = scmp.eq.s32.totalorder %s29, 0
      %p155 = por %p153, %p154
      %p156 = scmp.ne.s32.totalorder %s144, %s145
      %p157 = scmp.eq.s32.totalorder %s30, 1
      %p158 = por %p156, %p157
      %p160 = scmp.ne.s32.totalorder %s145, %s159
      %p161 = scmp.eq.s32.totalorder %s30, 0
      %p162 = por %p160, %p161
      %s164 = sadd.s32 %s163, 1
      %p167 = scmp.eq.s32.totalorder %s24, 1
      %p168 = scmp.ne.s32.totalorder %s163, %s165
      %p169 = scmp.eq.s32.totalorder %s24, 0
      %p170 = por %p168, %p169
      %p171 = scmp.ne.s32.totalorder %s163, %s165
      %p172 = scmp.eq.s32.totalorder %s29, 1
      %p173 = por %p171, %p172
      %p174 = scmp.ne.s32.totalorder %s165, %s166
      %p175 = scmp.eq.s32.totalorder %s29, 0
      %p176 = por %p174, %p175
      %p177 = scmp.ne.s32.totalorder %s165, %s166
      %p178 = scmp.eq.s32.totalorder %s30, 1
      %p179 = por %p177, %p178
      %p181 = scmp.ne.s32.totalorder %s166, %s180
      %p182 = scmp.eq.s32.totalorder %s30, 0
      %p183 = por %p181, %p182
      %s185 = sadd.s32 %s184, 1
      %p188 = scmp.eq.s32.totalorder %s24, 1
      %p189 = scmp.ne.s32.totalorder %s184, %s186
      %p190 = scmp.eq.s32.totalorder %s24, 0
      %p191 = por %p189, %p190
      %p192 = scmp.ne.s32.totalorder %s184, %s186
      %p193 = scmp.eq.s32.totalorder %s29, 1
      %p194 = por %p192, %p193
      %p195 = scmp.ne.s32.totalorder %s186, %s187
      %p196 = scmp.eq.s32.totalorder %s29, 0
      %p197 = por %p195, %p196
      %p198 = scmp.ne.s32.totalorder %s186, %s187
      %p199 = scmp.eq.s32.totalorder %s30, 1
      %p200 = por %p198, %p199
      %p202 = scmp.ne.s32.totalorder %s187, %s201
      %p203 = scmp.eq.s32.totalorder %s30, 0
      %p204 = por %p202, %p203
      %s206 = sadd.s32 %s205, 1
      %p209 = scmp.eq.s32.totalorder %s24, 1
      %p210 = scmp.ne.s32.totalorder %s205, %s207
      %p211 = scmp.eq.s32.totalorder %s24, 0
      %p212 = por %p210, %p211
      %p213 = scmp.ne.s32.totalorder %s205, %s207
      %p214 = scmp.eq.s32.totalorder %s29, 1
      %p215 = por %p213, %p214
      %p216 = scmp.ne.s32.totalorder %s207, %s208
      %p217 = scmp.eq.s32.totalorder %s29, 0
      %p218 = por %p216, %p217
      %p219 = scmp.ne.s32.totalorder %s207, %s208
      %p220 = scmp.eq.s32.totalorder %s30, 1
      %p221 = por %p219, %p220
      %p223 = scmp.ne.s32.totalorder %s208, %s222
      %p224 = scmp.eq.s32.totalorder %s30, 0
      %p225 = por %p223, %p224
      %s227 = sadd.s32 %s226, 1
      %p230 = scmp.eq.s32.totalorder %s24, 1
      %p231 = scmp.ne.s32.totalorder %s226, %s228
      %p232 = scmp.eq.s32.totalorder %s24, 0
      %p233 = por %p231, %p232
      %p234 = scmp.ne.s32.totalorder %s226, %s228
      %p235 = scmp.eq.s32.totalorder %s29, 1
      %p236 = por %p234, %p235
      %p237 = scmp.ne.s32.totalorder %s228, %s229
      %p238 = scmp.eq.s32.totalorder %s29, 0
      %p239 = por %p237, %p238
      %p240 = scmp.ne.s32.totalorder %s228, %s229
      %p241 = scmp.eq.s32.totalorder %s30, 1
      %p242 = por %p240, %p241
      %p244 = scmp.ne.s32.totalorder %s229, %s243
      %p245 = scmp.eq.s32.totalorder %s30, 0
      %p246 = por %p244, %p245
      %s248 = sadd.s32 %s247, 1
      %p251 = scmp.eq.s32.totalorder %s24, 1
      %p252 = scmp.ne.s32.totalorder %s247, %s249
      %p253 = scmp.eq.s32.totalorder %s24, 0
      %p254 = por %p252, %p253
      %p255 = scmp.ne.s32.totalorder %s247, %s249
      %p256 = scmp.eq.s32.totalorder %s29, 1
      %p257 = por %p255, %p256
      %p258 = scmp.ne.s32.totalorder %s249, %s250
      %p259 = scmp.eq.s32.totalorder %s29, 0
      %p260 = por %p258, %p259
      %p261 = scmp.ne.s32.totalorder %s249, %s250
      %p262 = scmp.eq.s32.totalorder %s30, 1
      %p263 = por %p261, %p262
      %p265 = scmp.ne.s32.totalorder %s250, %s264
      %p266 = scmp.eq.s32.totalorder %s30, 0
      %p267 = por %p265, %p266
      %s269 = sadd.s32 %s268, 1
      %p272 = scmp.eq.s32.totalorder %s24, 1
      %p273 = scmp.ne.s32.totalorder %s268, %s270
      %p274 = scmp.eq.s32.totalorder %s24, 0
      %p275 = por %p273, %p274
      %p276 = scmp.ne.s32.totalorder %s268, %s270
      %p277 = scmp.eq.s32.totalorder %s29, 1
      %p278 = por %p276, %p277
      %p279 = scmp.ne.s32.totalorder %s270, %s271
      %p280 = scmp.eq.s32.totalorder %s29, 0
      %p281 = por %p279, %p280
      %p282 = scmp.ne.s32.totalorder %s270, %s271
      %p283 = scmp.eq.s32.totalorder %s30, 1
      %p284 = por %p282, %p283
      %p286 = scmp.ne.s32.totalorder %s271, %s285
      %p287 = scmp.eq.s32.totalorder %s30, 0
      %p288 = por %p286, %p287
      %s290 = sadd.s32 %s289, 1
      %p293 = scmp.eq.s32.totalorder %s24, 1
      %p294 = scmp.ne.s32.totalorder %s289, %s291
      %p295 = scmp.eq.s32.totalorder %s24, 0
      %p296 = por %p294, %p295
      %p297 = scmp.ne.s32.totalorder %s289, %s291
      %p298 = scmp.eq.s32.totalorder %s29, 1
      %p299 = por %p297, %p298
      %p300 = scmp.ne.s32.totalorder %s291, %s292
      %p301 = scmp.eq.s32.totalorder %s29, 0
      %p302 = por %p300, %p301
      %p303 = scmp.ne.s32.totalorder %s291, %s292
      %p304 = scmp.eq.s32.totalorder %s30, 1
      %p305 = por %p303, %p304
      %p307 = scmp.ne.s32.totalorder %s292, %s306
      %p308 = scmp.eq.s32.totalorder %s30, 0
      %p309 = por %p307, %p308
      %s311 = sadd.s32 %s310, 1
      %p314 = scmp.eq.s32.totalorder %s24, 1
      %p315 = scmp.ne.s32.totalorder %s310, %s312
      %p316 = scmp.eq.s32.totalorder %s24, 0
      %p317 = por %p315, %p316
      %p318 = scmp.ne.s32.totalorder %s310, %s312
      %p319 = scmp.eq.s32.totalorder %s29, 1
      %p320 = por %p318, %p319
      %p321 = scmp.ne.s32.totalorder %s312, %s313
      %p322 = scmp.eq.s32.totalorder %s29, 0
      %p323 = por %p321, %p322
      %p324 = scmp.ne.s32.totalorder %s312, %s313
      %p325 = scmp.eq.s32.totalorder %s30, 1
      %p326 = por %p324, %p325
      %p328 = scmp.ne.s32.totalorder %s313, %s327
      %p329 = scmp.eq.s32.totalorder %s30, 0
      %p330 = por %p328, %p329
      %s332 = sadd.s32 %s331, 1
      %p335 = scmp.eq.s32.totalorder %s24, 1
      %p336 = scmp.ne.s32.totalorder %s331, %s333
      %p337 = scmp.eq.s32.totalorder %s24, 0
      %p338 = por %p336, %p337
      %p339 = scmp.ne.s32.totalorder %s331, %s333
      %p340 = scmp.eq.s32.totalorder %s29, 1
      %p341 = por %p339, %p340
      %p342 = scmp.ne.s32.totalorder %s333, %s334
      %p343 = scmp.eq.s32.totalorder %s29, 0
      %p344 = por %p342, %p343
      %p345 = scmp.ne.s32.totalorder %s333, %s334
      %p346 = scmp.eq.s32.totalorder %s30, 1
      %p347 = por %p345, %p346
      %p349 = scmp.ne.s32.totalorder %s334, %s348
      %p350 = scmp.eq.s32.totalorder %s30, 0
      %p351 = por %p349, %p350
      %s353 = sadd.s32 %s352, 1
      %p356 = scmp.eq.s32.totalorder %s24, 1
      %p357 = scmp.ne.s32.totalorder %s352, %s354
      %p358 = scmp.eq.s32.totalorder %s24, 0
      %p359 = por %p357, %p358
      %p360 = scmp.ne.s32.totalorder %s352, %s354
      %p361 = scmp.eq.s32.totalorder %s29, 1
      %p362 = por %p360, %p361
      %p363 = scmp.ne.s32.totalorder %s354, %s355
      %p364 = scmp.eq.s32.totalorder %s29, 0
      %p365 = por %p363, %p364
      %p366 = scmp.ne.s32.totalorder %s354, %s355
      %p367 = scmp.eq.s32.totalorder %s30, 1
      %p368 = por %p366, %p367
      %p370 = scmp.ne.s32.totalorder %s355, %s369
      %p371 = scmp.eq.s32.totalorder %s30, 0
      %p372 = por %p370, %p371
      %s374 = sadd.s32 %s373, 1
      %p377 = scmp.eq.s32.totalorder %s24, 1
      %p378 = scmp.ne.s32.totalorder %s373, %s375
      %p379 = scmp.eq.s32.totalorder %s24, 0
      %p380 = por %p378, %p379
      %p381 = scmp.ne.s32.totalorder %s373, %s375
      %p382 = scmp.eq.s32.totalorder %s29, 1
      %p383 = por %p381, %p382
      %p384 = scmp.ne.s32.totalorder %s375, %s376
      %p385 = scmp.eq.s32.totalorder %s29, 0
      %p386 = por %p384, %p385
      %p387 = scmp.ne.s32.totalorder %s375, %s376
      %p388 = scmp.eq.s32.totalorder %s30, 1
      %p389 = por %p387, %p388
      %p391 = scmp.ne.s32.totalorder %s376, %s390
      %p392 = scmp.eq.s32.totalorder %s30, 0
      %p393 = por %p391, %p392
      %s395 = sadd.s32 %s394, 1
      %p398 = scmp.eq.s32.totalorder %s24, 1
      %p399 = scmp.ne.s32.totalorder %s394, %s396
      %p400 = scmp.eq.s32.totalorder %s24, 0
      %p401 = por %p399, %p400
      %p402 = scmp.ne.s32.totalorder %s394, %s396
      %p403 = scmp.eq.s32.totalorder %s29, 1
      %p404 = por %p402, %p403
      %p405 = scmp.ne.s32.totalorder %s396, %s397
      %p406 = scmp.eq.s32.totalorder %s29, 0
      %p407 = por %p405, %p406
      %p408 = scmp.ne.s32.totalorder %s396, %s397
      %p409 = scmp.eq.s32.totalorder %s30, 1
      %p410 = por %p408, %p409
      %p412 = scmp.ne.s32.totalorder %s397, %s411
      %p413 = scmp.eq.s32.totalorder %s30, 0
      %p414 = por %p412, %p413
      %p415 = scmp.le.s32.totalorder 1, %s24
      %p416 = scmp.lt.s32.totalorder %s24, 3
      %p417 = pnand %p415, %p416
      %p418 = pneg %p417
      // Predicated region
      $region9: #{hand_pose_forward.1} parent=5 // pred_check
        _
      $region10: #{hand_pose_forward.1} parent=5 // pred_check_branch
        %420 = sbr.rel (%p417) target = $region12
      $region11: #{hand_pose_forward.1} parent=5 // pred_region
        %s421 = ssub.s32 %s24, 1
        // Predicated region
        $region13: #{hand_pose_forward.1} parent=11 // pred_check
          %p422 = pneg %p71
        $region14: #{hand_pose_forward.1} parent=11 // pred_check_branch
          %424 = sbr.rel (%p422) target = $region16
        $region15: #{hand_pose_forward.1} parent=11 // pred_region
          _
        $region16: #{hand_pose_forward.1} parent=11 // pred_fallthru
          _
        // Predicated region
        $region17: #{hand_pose_forward.1} parent=11 // pred_check
          %p425 = pneg %p92
        $region18: #{hand_pose_forward.1} parent=11 // pred_check_branch
          %427 = sbr.rel (%p425) target = $region20
        $region19: #{hand_pose_forward.1} parent=11 // pred_region
          _
        $region20: #{hand_pose_forward.1} parent=11 // pred_fallthru
          _
        // Predicated region
        $region21: #{hand_pose_forward.1} parent=11 // pred_check
          %p428 = pneg %p113
        $region22: #{hand_pose_forward.1} parent=11 // pred_check_branch
          %430 = sbr.rel (%p428) target = $region24
        $region23: #{hand_pose_forward.1} parent=11 // pred_region
          _
        $region24: #{hand_pose_forward.1} parent=11 // pred_fallthru
          _
        // Predicated region
        $region25: #{hand_pose_forward.1} parent=11 // pred_check
          %p431 = pneg %p134
        $region26: #{hand_pose_forward.1} parent=11 // pred_check_branch
          %433 = sbr.rel (%p431) target = $region28
        $region27: #{hand_pose_forward.1} parent=11 // pred_region
          _
        $region28: #{hand_pose_forward.1} parent=11 // pred_fallthru
          _
        // Predicated region
        $region29: #{hand_pose_forward.1} parent=11 // pred_check
          %p434 = pneg %p155
        $region30: #{hand_pose_forward.1} parent=11 // pred_check_branch
          %436 = sbr.rel (%p434) target = $region32
        $region31: #{hand_pose_forward.1} parent=11 // pred_region
          _
        $region32: #{hand_pose_forward.1} parent=11 // pred_fallthru
          _
        // Predicated region
        $region33: #{hand_pose_forward.1} parent=11 // pred_check
          %p437 = pneg %p176
        $region34: #{hand_pose_forward.1} parent=11 // pred_check_branch
          %439 = sbr.rel (%p437) target = $region36
        $region35: #{hand_pose_forward.1} parent=11 // pred_region
          _
        $region36: #{hand_pose_forward.1} parent=11 // pred_fallthru
          _
        // Predicated region
        $region37: #{hand_pose_forward.1} parent=11 // pred_check
          %p440 = pneg %p197
        $region38: #{hand_pose_forward.1} parent=11 // pred_check_branch
          %442 = sbr.rel (%p440) target = $region40
        $region39: #{hand_pose_forward.1} parent=11 // pred_region
          _
        $region40: #{hand_pose_forward.1} parent=11 // pred_fallthru
          _
        // Predicated region
        $region41: #{hand_pose_forward.1} parent=11 // pred_check
          %p443 = pneg %p218
        $region42: #{hand_pose_forward.1} parent=11 // pred_check_branch
          %445 = sbr.rel (%p443) target = $region44
        $region43: #{hand_pose_forward.1} parent=11 // pred_region
          _
        $region44: #{hand_pose_forward.1} parent=11 // pred_fallthru
          _
        // Predicated region
        $region45: #{hand_pose_forward.1} parent=11 // pred_check
          %p446 = pneg %p239
        $region46: #{hand_pose_forward.1} parent=11 // pred_check_branch
          %448 = sbr.rel (%p446) target = $region48
        $region47: #{hand_pose_forward.1} parent=11 // pred_region
          _
        $region48: #{hand_pose_forward.1} parent=11 // pred_fallthru
          _
        // Predicated region
        $region49: #{hand_pose_forward.1} parent=11 // pred_check
          %p449 = pneg %p260
        $region50: #{hand_pose_forward.1} parent=11 // pred_check_branch
          %451 = sbr.rel (%p449) target = $region52
        $region51: #{hand_pose_forward.1} parent=11 // pred_region
          _
        $region52: #{hand_pose_forward.1} parent=11 // pred_fallthru
          _
        // Predicated region
        $region53: #{hand_pose_forward.1} parent=11 // pred_check
          %p452 = pneg %p281
        $region54: #{hand_pose_forward.1} parent=11 // pred_check_branch
          %454 = sbr.rel (%p452) target = $region56
        $region55: #{hand_pose_forward.1} parent=11 // pred_region
          _
        $region56: #{hand_pose_forward.1} parent=11 // pred_fallthru
          _
        // Predicated region
        $region57: #{hand_pose_forward.1} parent=11 // pred_check
          %p455 = pneg %p302
        $region58: #{hand_pose_forward.1} parent=11 // pred_check_branch
          %457 = sbr.rel (%p455) target = $region60
        $region59: #{hand_pose_forward.1} parent=11 // pred_region
          _
        $region60: #{hand_pose_forward.1} parent=11 // pred_fallthru
          _
      $region12: #{hand_pose_forward.1} parent=5 // pred_fallthru
        _
      %p458 = scmp.lt.s32.totalorder %s24, 2
      // Predicated region
      $region61: #{hand_pose_forward.1} parent=5 // pred_check
        %p459 = pneg %p458
      $region62: #{hand_pose_forward.1} parent=5 // pred_check_branch
        %461 = sbr.rel (%p459) target = $region64
      $region63: #{hand_pose_forward.1} parent=5 // pred_region
        // Predicated region
        $region65: #{hand_pose_forward.1} parent=63 // pred_check
          %p462 = pneg %p44
        $region66: #{hand_pose_forward.1} parent=63 // pred_check_branch
          %464 = sbr.rel (%p462) target = $region68
        $region67: #{hand_pose_forward.1} parent=63 // pred_region
          %s465 = sand.u32 %s34, 1
          %s466 = sand.u32 %s34, 1
          %s467 = smul.addr %s466, 8
          %s468 = scalar_lea.vmem [#allocation3], %s467
          %s469 = smul.addr %s24, 4
          %s470 = scalar_lea.vmem %s0, %s469
          // Predicated region
          $region69: #{hand_pose_forward.1} parent=67 // pred_check
            _
          $region70: #{hand_pose_forward.1} parent=67 // pred_check_branch
            %472 = sbr.rel (0) target = $region72
          $region71: #{hand_pose_forward.1} parent=67 // pred_region
            // Predicated region
            $region73: #{hand_pose_forward.1} parent=71 // pred_check
              _
            $region74: #{hand_pose_forward.1} parent=71 // pred_check_branch
              %474 = sbr.rel target = $region76
            $region75: #{hand_pose_forward.1} parent=71 // pred_region
              // Predicated region
              $region88: #{hand_pose_forward.1} parent=75 // pred_check
                _
              $region89: #{hand_pose_forward.1} parent=75 // pred_check_branch
                %491 = sbr.rel (0) target = $region91
              $region90: #{hand_pose_forward.1} parent=75 // pred_region
                loop: start=0, step=1, limit=1
                $region92: #{hand_pose_forward.1} parent=90 // loop_pre_header
                  _
                $region93: #{hand_pose_forward.1} parent=90 // loop_header
                  %s493 = sphi 0, %s497
                  %p494 = scmp.ge.s32.totalorder %s493, 1
                  %s498 = sphi %s470, %s470
                  %s499 = sphi %s468, %s468
                $region94: #{hand_pose_forward.1} parent=90 // loop_header_branch
                  %496 = sbr.rel (%p494) target = $region98
                $region95: #{hand_pose_forward.1} parent=90 // loop_body
                  _
                $region96: #{hand_pose_forward.1} parent=90 // loop_footer
                  %s497 = sadd.s32 1, %s493
                $region97: #{hand_pose_forward.1} parent=90 // loop_footer_branch
                  %492 = sbr.rel target = $region93
                $region98: #{hand_pose_forward.1} parent=90 // loop_exit
                  _
                loop: start=0, step=1, limit=1
                $region99: #{hand_pose_forward.1} parent=90 // loop_pre_header
                  _
                $region100: #{hand_pose_forward.1} parent=90 // loop_header
                  %s502 = sphi 0, %s506
                  %p503 = scmp.ge.s32.totalorder %s502, 1
                  %s507 = sphi %s470, %s470
                  %s508 = sphi %s468, %s468
                $region101: #{hand_pose_forward.1} parent=90 // loop_header_branch
                  %505 = sbr.rel (%p503) target = $region105
                $region102: #{hand_pose_forward.1} parent=90 // loop_body
                  %v509 = vld [vmem:[%s507] sm:$0xf]
                  %510 = vst [vmem:[%s508] sm:$0xf] %v509
                  %v511 = vld [vmem:[%s507 + $0x8] sm:$0xf]
                  %512 = vst [vmem:[%s508 + $0x4] sm:$0xf] %v511
                $region103: #{hand_pose_forward.1} parent=90 // loop_footer
                  %s506 = sadd.s32 1, %s502
                $region104: #{hand_pose_forward.1} parent=90 // loop_footer_branch
                  %501 = sbr.rel target = $region100
                $region105: #{hand_pose_forward.1} parent=90 // loop_exit
                  _
              $region91: #{hand_pose_forward.1} parent=75 // pred_fallthru
                _
            $region76: #{hand_pose_forward.1} parent=71 // pred_fallthru
              _
            // Predicated region
            $region77: #{hand_pose_forward.1} parent=71 // pred_check
              _
            $region78: #{hand_pose_forward.1} parent=71 // pred_check_branch
              %476 = sbr.rel (0) target = $region80
            $region79: #{hand_pose_forward.1} parent=71 // pred_region
              loop: start=0, step=1, limit=1
              $region81: #{hand_pose_forward.1} parent=79 // loop_pre_header
                _
              $region82: #{hand_pose_forward.1} parent=79 // loop_header
                %s479 = sphi 0, %s483
                %p480 = scmp.ge.s32.totalorder %s479, 1
                %s484 = sphi %s470, %s470
                %s485 = sphi %s468, %s468
              $region83: #{hand_pose_forward.1} parent=79 // loop_header_branch
                %482 = sbr.rel (%p480) target = $region87
              $region84: #{hand_pose_forward.1} parent=79 // loop_body
                %v486 = vld [vmem:[%s484] sm:$0xf]
                %487 = vst [vmem:[%s485] sm:$0xf] %v486
                %v488 = vld [vmem:[%s484 + $0x8] sm:$0xf]
                %489 = vst [vmem:[%s485 + $0x4] sm:$0xf] %v488
              $region85: #{hand_pose_forward.1} parent=79 // loop_footer
                %s483 = sadd.s32 1, %s479
              $region86: #{hand_pose_forward.1} parent=79 // loop_footer_branch
                %478 = sbr.rel target = $region82
              $region87: #{hand_pose_forward.1} parent=79 // loop_exit
                _
            $region80: #{hand_pose_forward.1} parent=71 // pred_fallthru
              _
          $region72: #{hand_pose_forward.1} parent=67 // pred_fallthru
            _
          %513 = vnop
        $region68: #{hand_pose_forward.1} parent=63 // pred_fallthru
          _
      $region64: #{hand_pose_forward.1} parent=5 // pred_fallthru
        _
      %p514 = scmp.le.s32.totalorder 1, %s24
      %p515 = scmp.lt.s32.totalorder %s24, 3
      %p516 = pnand %p514, %p515
      %p517 = pneg %p516
      // Predicated region
      $region106: #{hand_pose_forward.1} parent=5 // pred_check
        _
      $region107: #{hand_pose_forward.1} parent=5 // pred_check_branch
        %519 = sbr.rel (%p516) target = $region109
      $region108: #{hand_pose_forward.1} parent=5 // pred_region
        %s520 = ssub.s32 %s24, 1
        %s521 = sand.u32 %s37, 1
        %s522 = sand.u32 %s37, 1
        %s523 = smul.addr %s522, 8
        %s524 = scalar_lea.vmem [#allocation3], %s523
        // Predicated region
        $region110: #{hand_pose_forward.1} parent=108 // pred_check
          %p525 = pneg %p50
        $region111: #{hand_pose_forward.1} parent=108 // pred_check_branch
          %527 = sbr.rel (%p525) target = $region113
        $region112: #{hand_pose_forward.1} parent=108 // pred_region
          _
        $region113: #{hand_pose_forward.1} parent=108 // pred_fallthru
          _
        %s528 = sand.u32 %s37, 1
        %s529 = sand.u32 %s37, 1
        %s530 = smul.addr %s529, 8
        %s531 = scalar_lea.vmem [#allocation3], %s530
        %p532 = pneg %p50
        %p533 = pneg %p47
        %p534 = pneg %p71
        %p535 = pneg %p68
        %p536 = pneg %p92
        %p537 = pneg %p89
        %p538 = pneg %p113
        %p539 = pneg %p110
        %p540 = pneg %p134
        %p541 = pneg %p131
        %p542 = pneg %p155
        %p543 = pneg %p152
        %p544 = pneg %p176
        %p545 = pneg %p173
        %p546 = pneg %p197
        %p547 = pneg %p194
        %p548 = pneg %p218
        %p549 = pneg %p215
        %p550 = pneg %p239
        %p551 = pneg %p236
        %p552 = pneg %p260
        %p553 = pneg %p257
        %p554 = pneg %p281
        %p555 = pneg %p278
        %p556 = pneg %p302
        %p557 = pneg %p299
        %p558 = pneg %p323
        %p559 = pneg %p320
        %p560 = pneg %p344
        %p561 = pneg %p341
        %p562 = pneg %p365
        %p563 = pneg %p362
        %p564 = pneg %p386
        %p565 = pneg %p383
        %p566 = pneg %p407
        %p567 = pneg %p404
        %p568 = scmp.eq.s32.totalorder %s29, 0
        // Predicated region
        $region114: #{hand_pose_forward.1} parent=108 // pred_check
          %p569 = pneg %p568
        $region115: #{hand_pose_forward.1} parent=108 // pred_check_branch
          %571 = sbr.rel (%p569) target = $region117
        $region116: #{hand_pose_forward.1} parent=108 // pred_region
          %vm572 = vcmask 25600
          %573 = vst.msk [vmem:[#allocation2] sm:$0x3] %vm572, 0.0
        $region117: #{hand_pose_forward.1} parent=108 // pred_fallthru
          _
        %v574 = vld [vmem:[#allocation2] sm:$0x3]
        %v575 = vld [vmem:[%s524] sm:$0xf]
        %v576 = vld [vmem:[%s524 + $0x4] sm:$0xf]
        %vm577 = vcmask 1043456
        %v578 = vsel %vm577, %v575, 0.0
        %579 = vadd.xlane.f32.xlu0 %v578
        %v580 = vpop.xlane.xlu0 %579
        %v581 = vsel %vm577, %v576, 0.0
        %582 = vadd.xlane.f32.xlu0 %v581
        %v583 = vpop.xlane.xlu0 %582
        %v586 = vlaneseq
        %v587 = vand.u32 %v586, 127
        %v588 = vlaneseq
        %v589 = vshrl.u32 %v588, 7
        %v590 = vsub.s32 %v587, %v589
        %v591 = vrot.slane %v580, %v590
        %v592 = vlaneseq
        %v593 = vshrl.u32 %v592, 7
        %v594 = vsub.s32 %v587, %v593
        %v595 = vrot.slane %v583, %v594
        %vm596 = vcmask 1041409
        %v597 = vsel %vm596, %v595, %v591
        %v599 = vadd.f32 %v574, %v597
        %vm600 = vcmask 25600
        %601 = vst.msk [vmem:[#allocation2] sm:$0x3] %vm600, %v599
        %p602 = scmp.eq.s32.totalorder %s29, 1
        // Predicated region
        $region118: #{hand_pose_forward.1} parent=108 // pred_check
          %p603 = pneg %p602
        $region119: #{hand_pose_forward.1} parent=108 // pred_check_branch
          %605 = sbr.rel (%p603) target = $region121
        $region120: #{hand_pose_forward.1} parent=108 // pred_region
          %v606 = vld [vmem:[#allocation2] sm:$0x3]
          %v607 = vmul.f32 %v606, 0.00390625
          %v608 = vld [vmem:[%s1] sm:$0xff]
          %v609 = vld [vmem:[%s1 + $0x8] sm:$0xff]
          %v610 = vld [vmem:[%s2] sm:$0xf]
          %v612 = vlaneseq
          %v613 = vshrl.u32 %v612, 7
          %v614 = vsub.s32 0, %v613
          %v615 = vrot.slane %v610, %v614
          %v616 = vlaneseq
          %v617 = vshrl.u32 %v616, 7
          %v618 = vsub.s32 1, %v617
          %v619 = vrot.slane %v610, %v618
          %v620 = vlaneseq
          %v621 = vshrl.u32 %v620, 7
          %v622 = vsub.s32 2, %v621
          %v623 = vrot.slane %v610, %v622
          %v624 = vlaneseq
          %v625 = vshrl.u32 %v624, 7
          %v626 = vsub.s32 3, %v625
          %v627 = vrot.slane %v610, %v626
          %v634 = vcombine.high %v608, %v608
          %v635 = vcombine.high %v609, %v609
          %vm636 = vcmask 31744
          %v638 = vsel %vm636, %v607, 0
          %v640 = vsel %vm577, %v608, 0
          %v642 = vsel %vm577, %v634, 0
          %v644 = vsel %vm577, %v609, 0
          %v646 = vsel %vm577, %v635, 0
          %648 = vmatprep.subr.mxu0 %v642
          %649 = vmatpush1.msra.mxu0 %v640
          %650 = vmatprep.subr.mxu0 0.0
          %651 = vmatpush1.msra.mxu0 0.0
          %652 = vmatprep.subr.mxu0 0.0
          %653 = vmatpush1.msra.mxu0 0.0
          %654 = vmatprep.subr.mxu0 0.0
          %655 = vmatpush1.msra.mxu0 0.0
          %656 = vmatprep.subr.mxu0 0.0
          %657 = vmatpush1.msra.mxu0 0.0
          %658 = vmatprep.subr.mxu0 0.0
          %659 = vmatpush1.msra.mxu0 0.0
          %660 = vmatprep.subr.mxu0 0.0
          %661 = vmatpush1.msra.mxu0 0.0
          %662 = vmatprep.subr.mxu0 0.0
          %663 = vmatpush1.msra.mxu0 0.0
          %664 = vmatprep.subr.mxu0 0.0
          %665 = vmatpush1.msra.mxu0 0.0
          %666 = vmatprep.subr.mxu0 0.0
          %667 = vmatpush1.msra.mxu0 0.0
          %668 = vmatprep.subr.mxu0 0.0
          %669 = vmatpush1.msra.mxu0 0.0
          %670 = vmatprep.subr.mxu0 0.0
          %671 = vmatpush1.msra.mxu0 0.0
          %672 = vmatprep.subr.mxu0 0.0
          %673 = vmatpush1.msra.mxu0 0.0
          %674 = vmatprep.subr.mxu0 0.0
          %675 = vmatpush1.msra.mxu0 0.0
          %676 = vmatprep.subr.mxu0 0.0
          %677 = vmatpush1.msra.mxu0 0.0
          %678 = vmatprep.subr.mxu0 0.0
          %679 = vmatpush1.msra.mxu0 0.0
          %680 = vmatprep.subr.mxu0 0.0
          %681 = vmatpush1.msra.mxu0 0.0
          %682 = vmatprep.subr.mxu0 0.0
          %683 = vmatpush1.msra.mxu0 0.0
          %684 = vmatprep.subr.mxu0 0.0
          %685 = vmatpush1.msra.mxu0 0.0
          %686 = vmatprep.subr.mxu0 0.0
          %687 = vmatpush1.msra.mxu0 0.0
          %688 = vmatprep.subr.mxu0 0.0
          %689 = vmatpush1.msra.mxu0 0.0
          %690 = vmatprep.subr.mxu0 0.0
          %691 = vmatpush1.msra.mxu0 0.0
          %692 = vmatprep.subr.mxu0 0.0
          %693 = vmatpush1.msra.mxu0 0.0
          %694 = vmatprep.subr.mxu0 0.0
          %695 = vmatpush1.msra.mxu0 0.0
          %696 = vmatprep.subr.mxu0 0.0
          %697 = vmatpush1.msra.mxu0 0.0
          %698 = vmatprep.subr.mxu0 0.0
          %699 = vmatpush1.msra.mxu0 0.0
          %700 = vmatprep.subr.mxu0 0.0
          %701 = vmatpush1.msra.mxu0 0.0
          %702 = vmatprep.subr.mxu0 0.0
          %703 = vmatpush1.msra.mxu0 0.0
          %704 = vmatprep.subr.mxu0 0.0
          %705 = vmatpush1.msra.mxu0 0.0
          %706 = vmatprep.subr.mxu0 0.0
          %707 = vmatpush1.msra.mxu0 0.0
          %708 = vmatprep.subr.mxu0 0.0
          %709 = vmatpush1.msra.mxu0 0.0
          %710 = vmatprep.subr.mxu0 0.0
          %711 = vmatpush1.msra.mxu0 0.0
          %712 = vmatprep.mubr.f32.mxu0 0.0
          %713 = vmatmul.mubr.f32.gmra.mrb[0].mxu0 %v638
          %v714 = vpop.f32.mrb[0].mxu0
          %v715 = vadd.f32 %v615, %v714
          %v716 = vpop.f32.mrb[0].mxu0
          %v717 = vadd.f32 %v619, %v716
          %718 = vdwg.mxu0
          %719 = vmatprep.subr.mxu0 %v646
          %720 = vmatpush1.msra.mxu0 %v644
          %721 = vmatprep.subr.mxu0 0.0
          %722 = vmatpush1.msra.mxu0 0.0
          %723 = vmatprep.subr.mxu0 0.0
          %724 = vmatpush1.msra.mxu0 0.0
          %725 = vmatprep.subr.mxu0 0.0
          %726 = vmatpush1.msra.mxu0 0.0
          %727 = vmatprep.subr.mxu0 0.0
          %728 = vmatpush1.msra.mxu0 0.0
          %729 = vmatprep.subr.mxu0 0.0
          %730 = vmatpush1.msra.mxu0 0.0
          %731 = vmatprep.subr.mxu0 0.0
          %732 = vmatpush1.msra.mxu0 0.0
          %733 = vmatprep.subr.mxu0 0.0
          %734 = vmatpush1.msra.mxu0 0.0
          %735 = vmatprep.subr.mxu0 0.0
          %736 = vmatpush1.msra.mxu0 0.0
          %737 = vmatprep.subr.mxu0 0.0
          %738 = vmatpush1.msra.mxu0 0.0
          %739 = vmatprep.subr.mxu0 0.0
          %740 = vmatpush1.msra.mxu0 0.0
          %741 = vmatprep.subr.mxu0 0.0
          %742 = vmatpush1.msra.mxu0 0.0
          %743 = vmatprep.subr.mxu0 0.0
          %744 = vmatpush1.msra.mxu0 0.0
          %745 = vmatprep.subr.mxu0 0.0
          %746 = vmatpush1.msra.mxu0 0.0
          %747 = vmatprep.subr.mxu0 0.0
          %748 = vmatpush1.msra.mxu0 0.0
          %749 = vmatprep.subr.mxu0 0.0
          %750 = vmatpush1.msra.mxu0 0.0
          %751 = vmatprep.subr.mxu0 0.0
          %752 = vmatpush1.msra.mxu0 0.0
          %753 = vmatprep.subr.mxu0 0.0
          %754 = vmatpush1.msra.mxu0 0.0
          %755 = vmatprep.subr.mxu0 0.0
          %756 = vmatpush1.msra.mxu0 0.0
          %757 = vmatprep.subr.mxu0 0.0
          %758 = vmatpush1.msra.mxu0 0.0
          %759 = vmatprep.subr.mxu0 0.0
          %760 = vmatpush1.msra.mxu0 0.0
          %761 = vmatprep.subr.mxu0 0.0
          %762 = vmatpush1.msra.mxu0 0.0
          %763 = vmatprep.subr.mxu0 0.0
          %764 = vmatpush1.msra.mxu0 0.0
          %765 = vmatprep.subr.mxu0 0.0
          %766 = vmatpush1.msra.mxu0 0.0
          %767 = vmatprep.subr.mxu0 0.0
          %768 = vmatpush1.msra.mxu0 0.0
          %769 = vmatprep.subr.mxu0 0.0
          %770 = vmatpush1.msra.mxu0 0.0
          %771 = vmatprep.subr.mxu0 0.0
          %772 = vmatpush1.msra.mxu0 0.0
          %773 = vmatprep.subr.mxu0 0.0
          %774 = vmatpush1.msra.mxu0 0.0
          %775 = vmatprep.subr.mxu0 0.0
          %776 = vmatpush1.msra.mxu0 0.0
          %777 = vmatprep.subr.mxu0 0.0
          %778 = vmatpush1.msra.mxu0 0.0
          %779 = vmatprep.subr.mxu0 0.0
          %780 = vmatpush1.msra.mxu0 0.0
          %781 = vmatprep.subr.mxu0 0.0
          %782 = vmatpush1.msra.mxu0 0.0
          %783 = vmatprep.mubr.f32.mxu0 0.0
          %784 = vmatmul.mubr.f32.gmra.mrb[0].mxu0 %v638
          %v785 = vpop.f32.mrb[0].mxu0
          %v786 = vadd.f32 %v623, %v785
          %v787 = vpop.f32.mrb[0].mxu0
          %v788 = vadd.f32 %v627, %v787
          %789 = vdwg.mxu0
          %v790 = vld [vmem:[%s3] sm:$0xff]
          %v791 = vld [vmem:[%s3 + $0x8] sm:$0xff]
          %v792 = vld [vmem:[%s3 + $0x10] sm:$0xff]
          %v793 = vld [vmem:[%s3 + $0x18] sm:$0xff]
          %v794 = vld [vmem:[%s3 + $0x20] sm:$0xff]
          %v795 = vld [vmem:[%s3 + $0x28] sm:$0xff]
          %v796 = vld [vmem:[%s3 + $0x30] sm:$0xff]
          %v797 = vld [vmem:[%s3 + $0x38] sm:$0xff]
          %v798 = vld [vmem:[%s3 + $0x40] sm:$0xff]
          %v799 = vld [vmem:[%s3 + $0x48] sm:$0xff]
          %v800 = vld [vmem:[%s3 + $0x50] sm:$0xff]
          %v801 = vld [vmem:[%s3 + $0x58] sm:$0xff]
          %v802 = vld [vmem:[%s3 + $0x60] sm:$0xff]
          %v803 = vld [vmem:[%s3 + $0x68] sm:$0xff]
          %v804 = vld [vmem:[%s3 + $0x70] sm:$0xff]
          %v805 = vld [vmem:[%s3 + $0x78] sm:$0xff]
          %v806 = vld [vmem:[%s3 + $0x80] sm:$0xff]
          %v807 = vld [vmem:[%s3 + $0x88] sm:$0xff]
          %v808 = vld [vmem:[%s3 + $0x90] sm:$0xff]
          %v809 = vld [vmem:[%s3 + $0x98] sm:$0xff]
          %v810 = vld [vmem:[%s3 + $0xa0] sm:$0xff]
          %v811 = vld [vmem:[%s3 + $0xa8] sm:$0xff]
          %v812 = vld [vmem:[%s3 + $0xb0] sm:$0xff]
          %v813 = vld [vmem:[%s3 + $0xb8] sm:$0xff]
          %v814 = vld [vmem:[%s3 + $0xc0] sm:$0xff]
          %v815 = vld [vmem:[%s3 + $0xc8] sm:$0xff]
          %v816 = vld [vmem:[%s3 + $0xd0] sm:$0xff]
          %v817 = vld [vmem:[%s3 + $0xd8] sm:$0xff]
          %v818 = vld [vmem:[%s3 + $0xe0] sm:$0xff]
          %v819 = vld [vmem:[%s3 + $0xe8] sm:$0xff]
          %v820 = vld [vmem:[%s3 + $0xf0] sm:$0xff]
          %v821 = vld [vmem:[%s3 + $0xf8] sm:$0xff]
          %v822 = vld [vmem:[%s3 + $0x100] sm:$0xff]
          %v823 = vld [vmem:[%s3 + $0x108] sm:$0xff]
          %v824 = vld [vmem:[%s3 + $0x110] sm:$0xff]
          %v825 = vld [vmem:[%s3 + $0x118] sm:$0xff]
          %v826 = vld [vmem:[%s3 + $0x120] sm:$0xff]
          %v827 = vld [vmem:[%s3 + $0x128] sm:$0xff]
          %v828 = vld [vmem:[%s3 + $0x130] sm:$0xff]
          %v829 = vld [vmem:[%s3 + $0x138] sm:$0xff]
          %v830 = vld [vmem:[%s3 + $0x140] sm:$0xff]
          %v831 = vld [vmem:[%s3 + $0x148] sm:$0xff]
          %v832 = vld [vmem:[%s3 + $0x150] sm:$0xff]
          %v833 = vld [vmem:[%s3 + $0x158] sm:$0xff]
          %v834 = vld [vmem:[%s3 + $0x160] sm:$0xff]
          %v835 = vld [vmem:[%s3 + $0x168] sm:$0xff]
          %v836 = vld [vmem:[%s3 + $0x170] sm:$0xff]
          %v837 = vld [vmem:[%s3 + $0x178] sm:$0xff]
          %v838 = vld [vmem:[%s3 + $0x180] sm:$0xff]
          %v839 = vld [vmem:[%s3 + $0x188] sm:$0xff]
          %v840 = vld [vmem:[%s3 + $0x190] sm:$0xff]
          %v841 = vld [vmem:[%s3 + $0x198] sm:$0xff]
          %v842 = vld [vmem:[%s3 + $0x1a0] sm:$0xff]
          %v843 = vld [vmem:[%s3 + $0x1a8] sm:$0xff]
          %v844 = vld [vmem:[%s3 + $0x1b0] sm:$0xff]
          %v845 = vld [vmem:[%s3 + $0x1b8] sm:$0xff]
          %v846 = vld [vmem:[%s3 + $0x1c0] sm:$0xff]
          %v847 = vld [vmem:[%s3 + $0x1c8] sm:$0xff]
          %v848 = vld [vmem:[%s3 + $0x1d0] sm:$0xff]
          %v849 = vld [vmem:[%s3 + $0x1d8] sm:$0xff]
          %v850 = vld [vmem:[%s3 + $0x1e0] sm:$0xff]
          %v851 = vld [vmem:[%s3 + $0x1e8] sm:$0xff]
          %v852 = vld [vmem:[%s3 + $0x1f0] sm:$0xff]
          %v853 = vld [vmem:[%s3 + $0x1f8] sm:$0xff]
          %v854 = vld [vmem:[%s3 + $0x200] sm:$0xff]
          %v855 = vld [vmem:[%s3 + $0x208] sm:$0xff]
          %v856 = vld [vmem:[%s3 + $0x210] sm:$0xff]
          %v857 = vld [vmem:[%s3 + $0x218] sm:$0xff]
          %v858 = vld [vmem:[%s3 + $0x220] sm:$0xff]
          %v859 = vld [vmem:[%s3 + $0x228] sm:$0xff]
          %v860 = vld [vmem:[%s3 + $0x230] sm:$0xff]
          %v861 = vld [vmem:[%s3 + $0x238] sm:$0xff]
          %v862 = vld [vmem:[%s3 + $0x240] sm:$0xff]
          %v863 = vld [vmem:[%s3 + $0x248] sm:$0xff]
          %v864 = vld [vmem:[%s3 + $0x250] sm:$0xff]
          %v865 = vld [vmem:[%s3 + $0x258] sm:$0xff]
          %v866 = vld [vmem:[%s3 + $0x260] sm:$0xff]
          %v867 = vld [vmem:[%s3 + $0x268] sm:$0xff]
          %v868 = vld [vmem:[%s3 + $0x270] sm:$0xff]
          %v869 = vld [vmem:[%s3 + $0x278] sm:$0xff]
          %v870 = vld [vmem:[%s3 + $0x280] sm:$0xff]
          %v871 = vld [vmem:[%s3 + $0x288] sm:$0xff]
          %v872 = vld [vmem:[%s3 + $0x290] sm:$0xff]
          %v873 = vld [vmem:[%s3 + $0x298] sm:$0xff]
          %v874 = vld [vmem:[%s3 + $0x2a0] sm:$0xff]
          %v875 = vld [vmem:[%s3 + $0x2a8] sm:$0xff]
          %v876 = vld [vmem:[%s3 + $0x2b0] sm:$0xff]
          %v877 = vld [vmem:[%s3 + $0x2b8] sm:$0xff]
          %v878 = vld [vmem:[%s3 + $0x2c0] sm:$0xff]
          %v879 = vld [vmem:[%s3 + $0x2c8] sm:$0xff]
          %v880 = vld [vmem:[%s3 + $0x2d0] sm:$0xff]
          %v881 = vld [vmem:[%s3 + $0x2d8] sm:$0xff]
          %v882 = vld [vmem:[%s3 + $0x2e0] sm:$0xff]
          %v883 = vld [vmem:[%s3 + $0x2e8] sm:$0xff]
          %v884 = vld [vmem:[%s3 + $0x2f0] sm:$0xff]
          %v885 = vld [vmem:[%s3 + $0x2f8] sm:$0xff]
          %v886 = vld [vmem:[%s3 + $0x300] sm:$0xff]
          %v887 = vld [vmem:[%s3 + $0x308] sm:$0xff]
          %v888 = vld [vmem:[%s3 + $0x310] sm:$0xff]
          %v889 = vld [vmem:[%s3 + $0x318] sm:$0xff]
          %v890 = vld [vmem:[%s3 + $0x320] sm:$0xff]
          %v891 = vld [vmem:[%s3 + $0x328] sm:$0xff]
          %v892 = vld [vmem:[%s3 + $0x330] sm:$0xff]
          %v893 = vld [vmem:[%s3 + $0x338] sm:$0xff]
          %v894 = vld [vmem:[%s3 + $0x340] sm:$0xff]
          %v895 = vld [vmem:[%s3 + $0x348] sm:$0xff]
          %v896 = vld [vmem:[%s3 + $0x350] sm:$0xff]
          %v897 = vld [vmem:[%s3 + $0x358] sm:$0xff]
          %v898 = vld [vmem:[%s3 + $0x360] sm:$0xff]
          %v899 = vld [vmem:[%s3 + $0x368] sm:$0xff]
          %v900 = vld [vmem:[%s3 + $0x370] sm:$0xff]
          %v901 = vld [vmem:[%s3 + $0x378] sm:$0xff]
          %v902 = vld [vmem:[%s3 + $0x380] sm:$0xff]
          %v903 = vld [vmem:[%s3 + $0x388] sm:$0xff]
          %v904 = vld [vmem:[%s3 + $0x390] sm:$0xff]
          %v905 = vld [vmem:[%s3 + $0x398] sm:$0xff]
          %v906 = vld [vmem:[%s3 + $0x3a0] sm:$0xff]
          %v907 = vld [vmem:[%s3 + $0x3a8] sm:$0xff]
          %v908 = vld [vmem:[%s3 + $0x3b0] sm:$0xff]
          %v909 = vld [vmem:[%s3 + $0x3b8] sm:$0xff]
          %v910 = vld [vmem:[%s3 + $0x3c0] sm:$0xff]
          %v911 = vld [vmem:[%s3 + $0x3c8] sm:$0xff]
          %v912 = vld [vmem:[%s3 + $0x3d0] sm:$0xff]
          %v913 = vld [vmem:[%s3 + $0x3d8] sm:$0xff]
          %v914 = vld [vmem:[%s3 + $0x3e0] sm:$0xff]
          %v915 = vld [vmem:[%s3 + $0x3e8] sm:$0xff]
          %v916 = vld [vmem:[%s3 + $0x3f0] sm:$0xff]
          %v917 = vld [vmem:[%s3 + $0x3f8] sm:$0xff]
          %v918 = vld [vmem:[%s3 + $0x400] sm:$0xff]
          %v919 = vld [vmem:[%s3 + $0x408] sm:$0xff]
          %v920 = vld [vmem:[%s3 + $0x410] sm:$0xff]
          %v921 = vld [vmem:[%s3 + $0x418] sm:$0xff]
          %v922 = vld [vmem:[%s3 + $0x420] sm:$0xff]
          %v923 = vld [vmem:[%s3 + $0x428] sm:$0xff]
          %v924 = vld [vmem:[%s3 + $0x430] sm:$0xff]
          %v925 = vld [vmem:[%s3 + $0x438] sm:$0xff]
          %v926 = vld [vmem:[%s3 + $0x440] sm:$0xff]
          %v927 = vld [vmem:[%s3 + $0x448] sm:$0xff]
          %v928 = vld [vmem:[%s3 + $0x450] sm:$0xff]
          %v929 = vld [vmem:[%s3 + $0x458] sm:$0xff]
          %v930 = vld [vmem:[%s3 + $0x460] sm:$0xff]
          %v931 = vld [vmem:[%s3 + $0x468] sm:$0xff]
          %v932 = vld [vmem:[%s3 + $0x470] sm:$0xff]
          %v933 = vld [vmem:[%s3 + $0x478] sm:$0xff]
          %v934 = vld [vmem:[%s3 + $0x480] sm:$0xff]
          %v935 = vld [vmem:[%s3 + $0x488] sm:$0xff]
          %v936 = vld [vmem:[%s3 + $0x490] sm:$0xff]
          %v937 = vld [vmem:[%s3 + $0x498] sm:$0xff]
          %v938 = vld [vmem:[%s3 + $0x4a0] sm:$0xff]
          %v939 = vld [vmem:[%s3 + $0x4a8] sm:$0xff]
          %v940 = vld [vmem:[%s3 + $0x4b0] sm:$0xff]
          %v941 = vld [vmem:[%s3 + $0x4b8] sm:$0xff]
          %v942 = vld [vmem:[%s3 + $0x4c0] sm:$0xff]
          %v943 = vld [vmem:[%s3 + $0x4c8] sm:$0xff]
          %v944 = vld [vmem:[%s3 + $0x4d0] sm:$0xff]
          %v945 = vld [vmem:[%s3 + $0x4d8] sm:$0xff]
          %v946 = vld [vmem:[%s3 + $0x4e0] sm:$0xff]
          %v947 = vld [vmem:[%s3 + $0x4e8] sm:$0xff]
          %v948 = vld [vmem:[%s3 + $0x4f0] sm:$0xff]
          %v949 = vld [vmem:[%s3 + $0x4f8] sm:$0xff]
          %v950 = vld [vmem:[%s3 + $0x500] sm:$0xff]
          %v951 = vld [vmem:[%s3 + $0x508] sm:$0xff]
          %v952 = vld [vmem:[%s3 + $0x510] sm:$0xff]
          %v953 = vld [vmem:[%s3 + $0x518] sm:$0xff]
          %v954 = vld [vmem:[%s3 + $0x520] sm:$0xff]
          %v955 = vld [vmem:[%s3 + $0x528] sm:$0xff]
          %v956 = vld [vmem:[%s3 + $0x530] sm:$0xff]
          %v957 = vld [vmem:[%s3 + $0x538] sm:$0xff]
          %v958 = vld [vmem:[%s3 + $0x540] sm:$0xff]
          %v959 = vld [vmem:[%s3 + $0x548] sm:$0xff]
          %v960 = vld [vmem:[%s3 + $0x550] sm:$0xff]
          %v961 = vld [vmem:[%s3 + $0x558] sm:$0xff]
          %v962 = vld [vmem:[%s3 + $0x560] sm:$0xff]
          %v963 = vld [vmem:[%s3 + $0x568] sm:$0xff]
          %v964 = vld [vmem:[%s3 + $0x570] sm:$0xff]
          %v965 = vld [vmem:[%s3 + $0x578] sm:$0xff]
          %v966 = vld [vmem:[%s3 + $0x580] sm:$0xff]
          %v967 = vld [vmem:[%s3 + $0x588] sm:$0xff]
          %v968 = vld [vmem:[%s3 + $0x590] sm:$0xff]
          %v969 = vld [vmem:[%s3 + $0x598] sm:$0xff]
          %v970 = vld [vmem:[%s3 + $0x5a0] sm:$0xff]
          %v971 = vld [vmem:[%s3 + $0x5a8] sm:$0xff]
          %v972 = vld [vmem:[%s3 + $0x5b0] sm:$0xff]
          %v973 = vld [vmem:[%s3 + $0x5b8] sm:$0xff]
          %v974 = vld [vmem:[%s3 + $0x5c0] sm:$0xff]
          %v975 = vld [vmem:[%s3 + $0x5c8] sm:$0xff]
          %v976 = vld [vmem:[%s3 + $0x5d0] sm:$0xff]
          %v977 = vld [vmem:[%s3 + $0x5d8] sm:$0xff]
          %v978 = vld [vmem:[%s3 + $0x5e0] sm:$0xff]
          %v979 = vld [vmem:[%s3 + $0x5e8] sm:$0xff]
          %v980 = vld [vmem:[%s3 + $0x5f0] sm:$0xff]
          %v981 = vld [vmem:[%s3 + $0x5f8] sm:$0xff]
          %v982 = vld [vmem:[%s3 + $0x600] sm:$0xff]
          %v983 = vld [vmem:[%s3 + $0x608] sm:$0xff]
          %v984 = vld [vmem:[%s3 + $0x610] sm:$0xff]
          %v985 = vld [vmem:[%s3 + $0x618] sm:$0xff]
          %v986 = vld [vmem:[%s3 + $0x620] sm:$0xff]
          %v987 = vld [vmem:[%s3 + $0x628] sm:$0xff]
          %v988 = vld [vmem:[%s3 + $0x630] sm:$0xff]
          %v989 = vld [vmem:[%s3 + $0x638] sm:$0xff]
          %v990 = vld [vmem:[%s3 + $0x640] sm:$0xff]
          %v991 = vld [vmem:[%s3 + $0x648] sm:$0xff]
          %v992 = vld [vmem:[%s3 + $0x650] sm:$0xff]
          %v993 = vld [vmem:[%s3 + $0x658] sm:$0xff]
          %v994 = vld [vmem:[%s3 + $0x660] sm:$0xff]
          %v995 = vld [vmem:[%s3 + $0x668] sm:$0xff]
          %v996 = vld [vmem:[%s3 + $0x670] sm:$0xff]
          %v997 = vld [vmem:[%s3 + $0x678] sm:$0xff]
          %v998 = vld [vmem:[%s3 + $0x680] sm:$0xff]
          %v999 = vld [vmem:[%s3 + $0x688] sm:$0xff]
          %v1000 = vld [vmem:[%s3 + $0x690] sm:$0xff]
          %v1001 = vld [vmem:[%s3 + $0x698] sm:$0xff]
          %v1002 = vld [vmem:[%s3 + $0x6a0] sm:$0xff]
          %v1003 = vld [vmem:[%s3 + $0x6a8] sm:$0xff]
          %v1004 = vld [vmem:[%s3 + $0x6b0] sm:$0xff]
          %v1005 = vld [vmem:[%s3 + $0x6b8] sm:$0xff]
          %v1006 = vld [vmem:[%s3 + $0x6c0] sm:$0xff]
          %v1007 = vld [vmem:[%s3 + $0x6c8] sm:$0xff]
          %v1008 = vld [vmem:[%s3 + $0x6d0] sm:$0xff]
          %v1009 = vld [vmem:[%s3 + $0x6d8] sm:$0xff]
          %v1010 = vld [vmem:[%s3 + $0x6e0] sm:$0xff]
          %v1011 = vld [vmem:[%s3 + $0x6e8] sm:$0xff]
          %v1012 = vld [vmem:[%s3 + $0x6f0] sm:$0xff]
          %v1013 = vld [vmem:[%s3 + $0x6f8] sm:$0xff]
          %v1014 = vld [vmem:[%s3 + $0x700] sm:$0xff]
          %v1015 = vld [vmem:[%s3 + $0x708] sm:$0xff]
          %v1016 = vld [vmem:[%s3 + $0x710] sm:$0xff]
          %v1017 = vld [vmem:[%s3 + $0x718] sm:$0xff]
          %v1018 = vld [vmem:[%s3 + $0x720] sm:$0xff]
          %v1019 = vld [vmem:[%s3 + $0x728] sm:$0xff]
          %v1020 = vld [vmem:[%s3 + $0x730] sm:$0xff]
          %v1021 = vld [vmem:[%s3 + $0x738] sm:$0xff]
          %v1022 = vld [vmem:[%s3 + $0x740] sm:$0xff]
          %v1023 = vld [vmem:[%s3 + $0x748] sm:$0xff]
          %v1024 = vld [vmem:[%s3 + $0x750] sm:$0xff]
          %v1025 = vld [vmem:[%s3 + $0x758] sm:$0xff]
          %v1026 = vld [vmem:[%s3 + $0x760] sm:$0xff]
          %v1027 = vld [vmem:[%s3 + $0x768] sm:$0xff]
          %v1028 = vld [vmem:[%s3 + $0x770] sm:$0xff]
          %v1029 = vld [vmem:[%s3 + $0x778] sm:$0xff]
          %v1030 = vld [vmem:[%s3 + $0x780] sm:$0xff]
          %v1031 = vld [vmem:[%s3 + $0x788] sm:$0xff]
          %v1032 = vld [vmem:[%s3 + $0x790] sm:$0xff]
          %v1033 = vld [vmem:[%s3 + $0x798] sm:$0xff]
          %v1034 = vld [vmem:[%s3 + $0x7a0] sm:$0xff]
          %v1035 = vld [vmem:[%s3 + $0x7a8] sm:$0xff]
          %v1036 = vld [vmem:[%s3 + $0x7b0] sm:$0xff]
          %v1037 = vld [vmem:[%s3 + $0x7b8] sm:$0xff]
          %v1038 = vld [vmem:[%s3 + $0x7c0] sm:$0xff]
          %v1039 = vld [vmem:[%s3 + $0x7c8] sm:$0xff]
          %v1040 = vld [vmem:[%s3 + $0x7d0] sm:$0xff]
          %v1041 = vld [vmem:[%s3 + $0x7d8] sm:$0xff]
          %v1042 = vld [vmem:[%s3 + $0x7e0] sm:$0xff]
          %v1043 = vld [vmem:[%s3 + $0x7e8] sm:$0xff]
          %v1044 = vld [vmem:[%s3 + $0x7f0] sm:$0xff]
          %v1045 = vld [vmem:[%s3 + $0x7f8] sm:$0xff]
          %v1046 = vld [vmem:[%s4] sm:$0xf]
          %v1048 = vlaneseq
          %v1049 = vshrl.u32 %v1048, 7
          %v1050 = vsub.s32 0, %v1049
          %v1051 = vrot.slane %v1046, %v1050
          %v1052 = vlaneseq
          %v1053 = vshrl.u32 %v1052, 7
          %v1054 = vsub.s32 1, %v1053
          %v1055 = vrot.slane %v1046, %v1054
          %v1056 = vlaneseq
          %v1057 = vshrl.u32 %v1056, 7
          %v1058 = vsub.s32 2, %v1057
          %v1059 = vrot.slane %v1046, %v1058
          %v1060 = vlaneseq
          %v1061 = vshrl.u32 %v1060, 7
          %v1062 = vsub.s32 3, %v1061
          %v1063 = vrot.slane %v1046, %v1062
          %1068 = vmatprep.subr.mxu0 %v791
          %1069 = vmatpush1.msra.mxu0 %v790
          %1070 = vmatprep.subr.mxu0 %v795
          %1071 = vmatpush1.msra.mxu0 %v794
          %1072 = vmatprep.subr.mxu0 %v799
          %1073 = vmatpush1.msra.mxu0 %v798
          %1074 = vmatprep.subr.mxu0 %v803
          %1075 = vmatpush1.msra.mxu0 %v802
          %1076 = vmatprep.subr.mxu0 %v807
          %1077 = vmatpush1.msra.mxu0 %v806
          %1078 = vmatprep.subr.mxu0 %v811
          %1079 = vmatpush1.msra.mxu0 %v810
          %1080 = vmatprep.subr.mxu0 %v815
          %1081 = vmatpush1.msra.mxu0 %v814
          %1082 = vmatprep.subr.mxu0 %v819
          %1083 = vmatpush1.msra.mxu0 %v818
          %1084 = vmatprep.subr.mxu0 %v823
          %1085 = vmatpush1.msra.mxu0 %v822
          %1086 = vmatprep.subr.mxu0 %v827
          %1087 = vmatpush1.msra.mxu0 %v826
          %1088 = vmatprep.subr.mxu0 %v831
          %1089 = vmatpush1.msra.mxu0 %v830
          %1090 = vmatprep.subr.mxu0 %v835
          %1091 = vmatpush1.msra.mxu0 %v834
          %1092 = vmatprep.subr.mxu0 %v839
          %1093 = vmatpush1.msra.mxu0 %v838
          %1094 = vmatprep.subr.mxu0 %v843
          %1095 = vmatpush1.msra.mxu0 %v842
          %1096 = vmatprep.subr.mxu0 %v847
          %1097 = vmatpush1.msra.mxu0 %v846
          %1098 = vmatprep.subr.mxu0 %v851
          %1099 = vmatpush1.msra.mxu0 %v850
          %1100 = vmatprep.subr.mxu0 %v855
          %1101 = vmatpush1.msra.mxu0 %v854
          %1102 = vmatprep.subr.mxu0 %v859
          %1103 = vmatpush1.msra.mxu0 %v858
          %1104 = vmatprep.subr.mxu0 %v863
          %1105 = vmatpush1.msra.mxu0 %v862
          %1106 = vmatprep.subr.mxu0 %v867
          %1107 = vmatpush1.msra.mxu0 %v866
          %1108 = vmatprep.subr.mxu0 %v871
          %1109 = vmatpush1.msra.mxu0 %v870
          %1110 = vmatprep.subr.mxu0 %v875
          %1111 = vmatpush1.msra.mxu0 %v874
          %1112 = vmatprep.subr.mxu0 %v879
          %1113 = vmatpush1.msra.mxu0 %v878
          %1114 = vmatprep.subr.mxu0 %v883
          %1115 = vmatpush1.msra.mxu0 %v882
          %1116 = vmatprep.subr.mxu0 %v887
          %1117 = vmatpush1.msra.mxu0 %v886
          %1118 = vmatprep.subr.mxu0 %v891
          %1119 = vmatpush1.msra.mxu0 %v890
          %1120 = vmatprep.subr.mxu0 %v895
          %1121 = vmatpush1.msra.mxu0 %v894
          %1122 = vmatprep.subr.mxu0 %v899
          %1123 = vmatpush1.msra.mxu0 %v898
          %1124 = vmatprep.subr.mxu0 %v903
          %1125 = vmatpush1.msra.mxu0 %v902
          %1126 = vmatprep.subr.mxu0 %v907
          %1127 = vmatpush1.msra.mxu0 %v906
          %1128 = vmatprep.subr.mxu0 %v911
          %1129 = vmatpush1.msra.mxu0 %v910
          %1130 = vmatprep.subr.mxu0 %v915
          %1131 = vmatpush1.msra.mxu0 %v914
          %1132 = vmatprep.mubr.f32.mxu0 %v717
          %1133 = vmatmul.mubr.f32.gmra.mrb[0].mxu0 %v715
          %v1134 = vpop.f32.mrb[0].mxu0
          %v1135 = vadd.f32 %v1051, %v1134
          %v1136 = vpop.f32.mrb[0].mxu0
          %v1137 = vadd.f32 %v1055, %v1136
          %1138 = vdwg.mxu0
          %1139 = vmatprep.subr.mxu0 %v919
          %1140 = vmatpush1.msra.mxu0 %v918
          %1141 = vmatprep.subr.mxu0 %v923
          %1142 = vmatpush1.msra.mxu0 %v922
          %1143 = vmatprep.subr.mxu0 %v927
          %1144 = vmatpush1.msra.mxu0 %v926
          %1145 = vmatprep.subr.mxu0 %v931
          %1146 = vmatpush1.msra.mxu0 %v930
          %1147 = vmatprep.subr.mxu0 %v935
          %1148 = vmatpush1.msra.mxu0 %v934
          %1149 = vmatprep.subr.mxu0 %v939
          %1150 = vmatpush1.msra.mxu0 %v938
          %1151 = vmatprep.subr.mxu0 %v943
          %1152 = vmatpush1.msra.mxu0 %v942
          %1153 = vmatprep.subr.mxu0 %v947
          %1154 = vmatpush1.msra.mxu0 %v946
          %1155 = vmatprep.subr.mxu0 %v951
          %1156 = vmatpush1.msra.mxu0 %v950
          %1157 = vmatprep.subr.mxu0 %v955
          %1158 = vmatpush1.msra.mxu0 %v954
          %1159 = vmatprep.subr.mxu0 %v959
          %1160 = vmatpush1.msra.mxu0 %v958
          %1161 = vmatprep.subr.mxu0 %v963
          %1162 = vmatpush1.msra.mxu0 %v962
          %1163 = vmatprep.subr.mxu0 %v967
          %1164 = vmatpush1.msra.mxu0 %v966
          %1165 = vmatprep.subr.mxu0 %v971
          %1166 = vmatpush1.msra.mxu0 %v970
          %1167 = vmatprep.subr.mxu0 %v975
          %1168 = vmatpush1.msra.mxu0 %v974
          %1169 = vmatprep.subr.mxu0 %v979
          %1170 = vmatpush1.msra.mxu0 %v978
          %1171 = vmatprep.subr.mxu0 %v983
          %1172 = vmatpush1.msra.mxu0 %v982
          %1173 = vmatprep.subr.mxu0 %v987
          %1174 = vmatpush1.msra.mxu0 %v986
          %1175 = vmatprep.subr.mxu0 %v991
          %1176 = vmatpush1.msra.mxu0 %v990
          %1177 = vmatprep.subr.mxu0 %v995
          %1178 = vmatpush1.msra.mxu0 %v994
          %1179 = vmatprep.subr.mxu0 %v999
          %1180 = vmatpush1.msra.mxu0 %v998
          %1181 = vmatprep.subr.mxu0 %v1003
          %1182 = vmatpush1.msra.mxu0 %v1002
          %1183 = vmatprep.subr.mxu0 %v1007
          %1184 = vmatpush1.msra.mxu0 %v1006
          %1185 = vmatprep.subr.mxu0 %v1011
          %1186 = vmatpush1.msra.mxu0 %v1010
          %1187 = vmatprep.subr.mxu0 %v1015
          %1188 = vmatpush1.msra.mxu0 %v1014
          %1189 = vmatprep.subr.mxu0 %v1019
          %1190 = vmatpush1.msra.mxu0 %v1018
          %1191 = vmatprep.subr.mxu0 %v1023
          %1192 = vmatpush1.msra.mxu0 %v1022
          %1193 = vmatprep.subr.mxu0 %v1027
          %1194 = vmatpush1.msra.mxu0 %v1026
          %1195 = vmatprep.subr.mxu0 %v1031
          %1196 = vmatpush1.msra.mxu0 %v1030
          %1197 = vmatprep.subr.mxu0 %v1035
          %1198 = vmatpush1.msra.mxu0 %v1034
          %1199 = vmatprep.subr.mxu0 %v1039
          %1200 = vmatpush1.msra.mxu0 %v1038
          %1201 = vmatprep.subr.mxu0 %v1043
          %1202 = vmatpush1.msra.mxu0 %v1042
          %1203 = vmatprep.mubr.f32.mxu0 %v788
          %1204 = vmatmul.mubr.f32.gmra.mrb[0].mxu0 %v786
          %v1205 = vpop.f32.mrb[0].mxu0
          %v1206 = vadd.f32 %v1135, %v1205
          %v1207 = vpop.f32.mrb[0].mxu0
          %v1208 = vadd.f32 %v1137, %v1207
          %1209 = vdwg.mxu0
          %1210 = vmatprep.subr.mxu0 %v793
          %1211 = vmatpush1.msra.mxu0 %v792
          %1212 = vmatprep.subr.mxu0 %v797
          %1213 = vmatpush1.msra.mxu0 %v796
          %1214 = vmatprep.subr.mxu0 %v801
          %1215 = vmatpush1.msra.mxu0 %v800
          %1216 = vmatprep.subr.mxu0 %v805
          %1217 = vmatpush1.msra.mxu0 %v804
          %1218 = vmatprep.subr.mxu0 %v809
          %1219 = vmatpush1.msra.mxu0 %v808
          %1220 = vmatprep.subr.mxu0 %v813
          %1221 = vmatpush1.msra.mxu0 %v812
          %1222 = vmatprep.subr.mxu0 %v817
          %1223 = vmatpush1.msra.mxu0 %v816
          %1224 = vmatprep.subr.mxu0 %v821
          %1225 = vmatpush1.msra.mxu0 %v820
          %1226 = vmatprep.subr.mxu0 %v825
          %1227 = vmatpush1.msra.mxu0 %v824
          %1228 = vmatprep.subr.mxu0 %v829
          %1229 = vmatpush1.msra.mxu0 %v828
          %1230 = vmatprep.subr.mxu0 %v833
          %1231 = vmatpush1.msra.mxu0 %v832
          %1232 = vmatprep.subr.mxu0 %v837
          %1233 = vmatpush1.msra.mxu0 %v836
          %1234 = vmatprep.subr.mxu0 %v841
          %1235 = vmatpush1.msra.mxu0 %v840
          %1236 = vmatprep.subr.mxu0 %v845
          %1237 = vmatpush1.msra.mxu0 %v844
          %1238 = vmatprep.subr.mxu0 %v849
          %1239 = vmatpush1.msra.mxu0 %v848
          %1240 = vmatprep.subr.mxu0 %v853
          %1241 = vmatpush1.msra.mxu0 %v852
          %1242 = vmatprep.subr.mxu0 %v857
          %1243 = vmatpush1.msra.mxu0 %v856
          %1244 = vmatprep.subr.mxu0 %v861
          %1245 = vmatpush1.msra.mxu0 %v860
          %1246 = vmatprep.subr.mxu0 %v865
          %1247 = vmatpush1.msra.mxu0 %v864
          %1248 = vmatprep.subr.mxu0 %v869
          %1249 = vmatpush1.msra.mxu0 %v868
          %1250 = vmatprep.subr.mxu0 %v873
          %1251 = vmatpush1.msra.mxu0 %v872
          %1252 = vmatprep.subr.mxu0 %v877
          %1253 = vmatpush1.msra.mxu0 %v876
          %1254 = vmatprep.subr.mxu0 %v881
          %1255 = vmatpush1.msra.mxu0 %v880
          %1256 = vmatprep.subr.mxu0 %v885
          %1257 = vmatpush1.msra.mxu0 %v884
          %1258 = vmatprep.subr.mxu0 %v889
          %1259 = vmatpush1.msra.mxu0 %v888
          %1260 = vmatprep.subr.mxu0 %v893
          %1261 = vmatpush1.msra.mxu0 %v892
          %1262 = vmatprep.subr.mxu0 %v897
          %1263 = vmatpush1.msra.mxu0 %v896
          %1264 = vmatprep.subr.mxu0 %v901
          %1265 = vmatpush1.msra.mxu0 %v900
          %1266 = vmatprep.subr.mxu0 %v905
          %1267 = vmatpush1.msra.mxu0 %v904
          %1268 = vmatprep.subr.mxu0 %v909
          %1269 = vmatpush1.msra.mxu0 %v908
          %1270 = vmatprep.subr.mxu0 %v913
          %1271 = vmatpush1.msra.mxu0 %v912
          %1272 = vmatprep.subr.mxu0 %v917
          %1273 = vmatpush1.msra.mxu0 %v916
          %1274 = vmatprep.mubr.f32.mxu0 %v717
          %1275 = vmatmul.mubr.f32.gmra.mrb[0].mxu0 %v715
          %v1276 = vpop.f32.mrb[0].mxu0
          %v1277 = vadd.f32 %v1059, %v1276
          %v1278 = vpop.f32.mrb[0].mxu0
          %v1279 = vadd.f32 %v1063, %v1278
          %1280 = vdwg.mxu0
          %1281 = vmatprep.subr.mxu0 %v921
          %1282 = vmatpush1.msra.mxu0 %v920
          %1283 = vmatprep.subr.mxu0 %v925
          %1284 = vmatpush1.msra.mxu0 %v924
          %1285 = vmatprep.subr.mxu0 %v929
          %1286 = vmatpush1.msra.mxu0 %v928
          %1287 = vmatprep.subr.mxu0 %v933
          %1288 = vmatpush1.msra.mxu0 %v932
          %1289 = vmatprep.subr.mxu0 %v937
          %1290 = vmatpush1.msra.mxu0 %v936
          %1291 = vmatprep.subr.mxu0 %v941
          %1292 = vmatpush1.msra.mxu0 %v940
          %1293 = vmatprep.subr.mxu0 %v945
          %1294 = vmatpush1.msra.mxu0 %v944
          %1295 = vmatprep.subr.mxu0 %v949
          %1296 = vmatpush1.msra.mxu0 %v948
          %1297 = vmatprep.subr.mxu0 %v953
          %1298 = vmatpush1.msra.mxu0 %v952
          %1299 = vmatprep.subr.mxu0 %v957
          %1300 = vmatpush1.msra.mxu0 %v956
          %1301 = vmatprep.subr.mxu0 %v961
          %1302 = vmatpush1.msra.mxu0 %v960
          %1303 = vmatprep.subr.mxu0 %v965
          %1304 = vmatpush1.msra.mxu0 %v964
          %1305 = vmatprep.subr.mxu0 %v969
          %1306 = vmatpush1.msra.mxu0 %v968
          %1307 = vmatprep.subr.mxu0 %v973
          %1308 = vmatpush1.msra.mxu0 %v972
          %1309 = vmatprep.subr.mxu0 %v977
          %1310 = vmatpush1.msra.mxu0 %v976
          %1311 = vmatprep.subr.mxu0 %v981
          %1312 = vmatpush1.msra.mxu0 %v980
          %1313 = vmatprep.subr.mxu0 %v985
          %1314 = vmatpush1.msra.mxu0 %v984
          %1315 = vmatprep.subr.mxu0 %v989
          %1316 = vmatpush1.msra.mxu0 %v988
          %1317 = vmatprep.subr.mxu0 %v993
          %1318 = vmatpush1.msra.mxu0 %v992
          %1319 = vmatprep.subr.mxu0 %v997
          %1320 = vmatpush1.msra.mxu0 %v996
          %1321 = vmatprep.subr.mxu0 %v1001
          %1322 = vmatpush1.msra.mxu0 %v1000
          %1323 = vmatprep.subr.mxu0 %v1005
          %1324 = vmatpush1.msra.mxu0 %v1004
          %1325 = vmatprep.subr.mxu0 %v1009
          %1326 = vmatpush1.msra.mxu0 %v1008
          %1327 = vmatprep.subr.mxu0 %v1013
          %1328 = vmatpush1.msra.mxu0 %v1012
          %1329 = vmatprep.subr.mxu0 %v1017
          %1330 = vmatpush1.msra.mxu0 %v1016
          %1331 = vmatprep.subr.mxu0 %v1021
          %1332 = vmatpush1.msra.mxu0 %v1020
          %1333 = vmatprep.subr.mxu0 %v1025
          %1334 = vmatpush1.msra.mxu0 %v1024
          %1335 = vmatprep.subr.mxu0 %v1029
          %1336 = vmatpush1.msra.mxu0 %v1028
          %1337 = vmatprep.subr.mxu0 %v1033
          %1338 = vmatpush1.msra.mxu0 %v1032
          %1339 = vmatprep.subr.mxu0 %v1037
          %1340 = vmatpush1.msra.mxu0 %v1036
          %1341 = vmatprep.subr.mxu0 %v1041
          %1342 = vmatpush1.msra.mxu0 %v1040
          %1343 = vmatprep.subr.mxu0 %v1045
          %1344 = vmatpush1.msra.mxu0 %v1044
          %1345 = vmatprep.mubr.f32.mxu0 %v788
          %1346 = vmatmul.mubr.f32.gmra.mrb[0].mxu0 %v786
          %v1347 = vpop.f32.mrb[0].mxu0
          %v1348 = vadd.f32 %v1277, %v1347
          %v1349 = vpop.f32.mrb[0].mxu0
          %v1350 = vadd.f32 %v1279, %v1349
          %1351 = vdwg.mxu0
          %v1352 = vmax.f32 %v1206, 0.0
          %v1353 = vmax.f32 %v1208, 0.0
          %v1354 = vmax.f32 %v1348, 0.0
          %v1355 = vmax.f32 %v1350, 0.0
          %v1356 = vld [vmem:[%s5] sm:$0xff]
          %v1357 = vld [vmem:[%s5 + $0x8] sm:$0xff]
          %v1358 = vld [vmem:[%s5 + $0x10] sm:$0xff]
          %v1359 = vld [vmem:[%s5 + $0x18] sm:$0xff]
          %v1360 = vld [vmem:[%s5 + $0x20] sm:$0xff]
          %v1361 = vld [vmem:[%s5 + $0x28] sm:$0xff]
          %v1362 = vld [vmem:[%s5 + $0x30] sm:$0xff]
          %v1363 = vld [vmem:[%s5 + $0x38] sm:$0xff]
          %v1364 = vld [vmem:[%s5 + $0x40] sm:$0xff]
          %v1365 = vld [vmem:[%s5 + $0x48] sm:$0xff]
          %v1366 = vld [vmem:[%s5 + $0x50] sm:$0xff]
          %v1367 = vld [vmem:[%s5 + $0x58] sm:$0xff]
          %v1368 = vld [vmem:[%s5 + $0x60] sm:$0xff]
          %v1369 = vld [vmem:[%s5 + $0x68] sm:$0xff]
          %v1370 = vld [vmem:[%s5 + $0x70] sm:$0xff]
          %v1371 = vld [vmem:[%s5 + $0x78] sm:$0xff]
          %v1372 = vld [vmem:[%s5 + $0x80] sm:$0xff]
          %v1373 = vld [vmem:[%s5 + $0x88] sm:$0xff]
          %v1374 = vld [vmem:[%s5 + $0x90] sm:$0xff]
          %v1375 = vld [vmem:[%s5 + $0x98] sm:$0xff]
          %v1376 = vld [vmem:[%s5 + $0xa0] sm:$0xff]
          %v1377 = vld [vmem:[%s5 + $0xa8] sm:$0xff]
          %v1378 = vld [vmem:[%s5 + $0xb0] sm:$0xff]
          %v1379 = vld [vmem:[%s5 + $0xb8] sm:$0xff]
          %v1380 = vld [vmem:[%s5 + $0xc0] sm:$0xff]
          %v1381 = vld [vmem:[%s5 + $0xc8] sm:$0xff]
          %v1382 = vld [vmem:[%s5 + $0xd0] sm:$0xff]
          %v1383 = vld [vmem:[%s5 + $0xd8] sm:$0xff]
          %v1384 = vld [vmem:[%s5 + $0xe0] sm:$0xff]
          %v1385 = vld [vmem:[%s5 + $0xe8] sm:$0xff]
          %v1386 = vld [vmem:[%s5 + $0xf0] sm:$0xff]
          %v1387 = vld [vmem:[%s5 + $0xf8] sm:$0xff]
          %v1388 = vld [vmem:[%s5 + $0x100] sm:$0xff]
          %v1389 = vld [vmem:[%s5 + $0x108] sm:$0xff]
          %v1390 = vld [vmem:[%s5 + $0x110] sm:$0xff]
          %v1391 = vld [vmem:[%s5 + $0x118] sm:$0xff]
          %v1392 = vld [vmem:[%s5 + $0x120] sm:$0xff]
          %v1393 = vld [vmem:[%s5 + $0x128] sm:$0xff]
          %v1394 = vld [vmem:[%s5 + $0x130] sm:$0xff]
          %v1395 = vld [vmem:[%s5 + $0x138] sm:$0xff]
          %v1396 = vld [vmem:[%s5 + $0x140] sm:$0xff]
          %v1397 = vld [vmem:[%s5 + $0x148] sm:$0xff]
          %v1398 = vld [vmem:[%s5 + $0x150] sm:$0xff]
          %v1399 = vld [vmem:[%s5 + $0x158] sm:$0xff]
          %v1400 = vld [vmem:[%s5 + $0x160] sm:$0xff]
          %v1401 = vld [vmem:[%s5 + $0x168] sm:$0xff]
          %v1402 = vld [vmem:[%s5 + $0x170] sm:$0xff]
          %v1403 = vld [vmem:[%s5 + $0x178] sm:$0xff]
          %v1404 = vld [vmem:[%s5 + $0x180] sm:$0xff]
          %v1405 = vld [vmem:[%s5 + $0x188] sm:$0xff]
          %v1406 = vld [vmem:[%s5 + $0x190] sm:$0xff]
          %v1407 = vld [vmem:[%s5 + $0x198] sm:$0xff]
          %v1408 = vld [vmem:[%s5 + $0x1a0] sm:$0xff]
          %v1409 = vld [vmem:[%s5 + $0x1a8] sm:$0xff]
          %v1410 = vld [vmem:[%s5 + $0x1b0] sm:$0xff]
          %v1411 = vld [vmem:[%s5 + $0x1b8] sm:$0xff]
          %v1412 = vld [vmem:[%s5 + $0x1c0] sm:$0xff]
          %v1413 = vld [vmem:[%s5 + $0x1c8] sm:$0xff]
          %v1414 = vld [vmem:[%s5 + $0x1d0] sm:$0xff]
          %v1415 = vld [vmem:[%s5 + $0x1d8] sm:$0xff]
          %v1416 = vld [vmem:[%s5 + $0x1e0] sm:$0xff]
          %v1417 = vld [vmem:[%s5 + $0x1e8] sm:$0xff]
          %v1418 = vld [vmem:[%s5 + $0x1f0] sm:$0xff]
          %v1419 = vld [vmem:[%s5 + $0x1f8] sm:$0xff]
          %v1420 = vld [vmem:[%s6] sm:$0x1]
          %v1422 = vlaneseq
          %v1423 = vshrl.u32 %v1422, 7
          %v1424 = vsub.s32 0, %v1423
          %v1425 = vrot.slane %v1420, %v1424
          %1427 = vmatprep.subr.mxu0 0.0
          %1428 = vmatpush1.msra.mxu0 %v1356
          %1429 = vmatprep.subr.mxu0 0.0
          %1430 = vmatpush1.msra.mxu0 %v1357
          %1431 = vmatprep.subr.mxu0 0.0
          %1432 = vmatpush1.msra.mxu0 %v1358
          %1433 = vmatprep.subr.mxu0 0.0
          %1434 = vmatpush1.msra.mxu0 %v1359
          %1435 = vmatprep.subr.mxu0 0.0
          %1436 = vmatpush1.msra.mxu0 %v1360
          %1437 = vmatprep.subr.mxu0 0.0
          %1438 = vmatpush1.msra.mxu0 %v1361
          %1439 = vmatprep.subr.mxu0 0.0
          %1440 = vmatpush1.msra.mxu0 %v1362
          %1441 = vmatprep.subr.mxu0 0.0
          %1442 = vmatpush1.msra.mxu0 %v1363
          %1443 = vmatprep.subr.mxu0 0.0
          %1444 = vmatpush1.msra.mxu0 %v1364
          %1445 = vmatprep.subr.mxu0 0.0
          %1446 = vmatpush1.msra.mxu0 %v1365
          %1447 = vmatprep.subr.mxu0 0.0
          %1448 = vmatpush1.msra.mxu0 %v1366
          %1449 = vmatprep.subr.mxu0 0.0
          %1450 = vmatpush1.msra.mxu0 %v1367
          %1451 = vmatprep.subr.mxu0 0.0
          %1452 = vmatpush1.msra.mxu0 %v1368
          %1453 = vmatprep.subr.mxu0 0.0
          %1454 = vmatpush1.msra.mxu0 %v1369
          %1455 = vmatprep.subr.mxu0 0.0
          %1456 = vmatpush1.msra.mxu0 %v1370
          %1457 = vmatprep.subr.mxu0 0.0
          %1458 = vmatpush1.msra.mxu0 %v1371
          %1459 = vmatprep.subr.mxu0 0.0
          %1460 = vmatpush1.msra.mxu0 %v1372
          %1461 = vmatprep.subr.mxu0 0.0
          %1462 = vmatpush1.msra.mxu0 %v1373
          %1463 = vmatprep.subr.mxu0 0.0
          %1464 = vmatpush1.msra.mxu0 %v1374
          %1465 = vmatprep.subr.mxu0 0.0
          %1466 = vmatpush1.msra.mxu0 %v1375
          %1467 = vmatprep.subr.mxu0 0.0
          %1468 = vmatpush1.msra.mxu0 %v1376
          %1469 = vmatprep.subr.mxu0 0.0
          %1470 = vmatpush1.msra.mxu0 %v1377
          %1471 = vmatprep.subr.mxu0 0.0
          %1472 = vmatpush1.msra.mxu0 %v1378
          %1473 = vmatprep.subr.mxu0 0.0
          %1474 = vmatpush1.msra.mxu0 %v1379
          %1475 = vmatprep.subr.mxu0 0.0
          %1476 = vmatpush1.msra.mxu0 %v1380
          %1477 = vmatprep.subr.mxu0 0.0
          %1478 = vmatpush1.msra.mxu0 %v1381
          %1479 = vmatprep.subr.mxu0 0.0
          %1480 = vmatpush1.msra.mxu0 %v1382
          %1481 = vmatprep.subr.mxu0 0.0
          %1482 = vmatpush1.msra.mxu0 %v1383
          %1483 = vmatprep.subr.mxu0 0.0
          %1484 = vmatpush1.msra.mxu0 %v1384
          %1485 = vmatprep.subr.mxu0 0.0
          %1486 = vmatpush1.msra.mxu0 %v1385
          %1487 = vmatprep.subr.mxu0 0.0
          %1488 = vmatpush1.msra.mxu0 %v1386
          %1489 = vmatprep.subr.mxu0 0.0
          %1490 = vmatpush1.msra.mxu0 %v1387
          %1491 = vmatprep.mubr.f32.mxu0 %v1353
          %1492 = vmatmul.mubr.f32.gmra.mrb[0].mxu0 %v1352
          %v1493 = vpop.f32.mrb[0].mxu0
          %v1494 = vadd.f32 %v1425, %v1493
          %v1495 = vpop.f32.mrb[0].mxu0
          %1496 = vdwg.mxu0
          %1497 = vmatprep.subr.mxu0 0.0
          %1498 = vmatpush1.msra.mxu0 %v1388
          %1499 = vmatprep.subr.mxu0 0.0
          %1500 = vmatpush1.msra.mxu0 %v1389
          %1501 = vmatprep.subr.mxu0 0.0
          %1502 = vmatpush1.msra.mxu0 %v1390
          %1503 = vmatprep.subr.mxu0 0.0
          %1504 = vmatpush1.msra.mxu0 %v1391
          %1505 = vmatprep.subr.mxu0 0.0
          %1506 = vmatpush1.msra.mxu0 %v1392
          %1507 = vmatprep.subr.mxu0 0.0
          %1508 = vmatpush1.msra.mxu0 %v1393
          %1509 = vmatprep.subr.mxu0 0.0
          %1510 = vmatpush1.msra.mxu0 %v1394
          %1511 = vmatprep.subr.mxu0 0.0
          %1512 = vmatpush1.msra.mxu0 %v1395
          %1513 = vmatprep.subr.mxu0 0.0
          %1514 = vmatpush1.msra.mxu0 %v1396
          %1515 = vmatprep.subr.mxu0 0.0
          %1516 = vmatpush1.msra.mxu0 %v1397
          %1517 = vmatprep.subr.mxu0 0.0
          %1518 = vmatpush1.msra.mxu0 %v1398
          %1519 = vmatprep.subr.mxu0 0.0
          %1520 = vmatpush1.msra.mxu0 %v1399
          %1521 = vmatprep.subr.mxu0 0.0
          %1522 = vmatpush1.msra.mxu0 %v1400
          %1523 = vmatprep.subr.mxu0 0.0
          %1524 = vmatpush1.msra.mxu0 %v1401
          %1525 = vmatprep.subr.mxu0 0.0
          %1526 = vmatpush1.msra.mxu0 %v1402
          %1527 = vmatprep.subr.mxu0 0.0
          %1528 = vmatpush1.msra.mxu0 %v1403
          %1529 = vmatprep.subr.mxu0 0.0
          %1530 = vmatpush1.msra.mxu0 %v1404
          %1531 = vmatprep.subr.mxu0 0.0
          %1532 = vmatpush1.msra.mxu0 %v1405
          %1533 = vmatprep.subr.mxu0 0.0
          %1534 = vmatpush1.msra.mxu0 %v1406
          %1535 = vmatprep.subr.mxu0 0.0
          %1536 = vmatpush1.msra.mxu0 %v1407
          %1537 = vmatprep.subr.mxu0 0.0
          %1538 = vmatpush1.msra.mxu0 %v1408
          %1539 = vmatprep.subr.mxu0 0.0
          %1540 = vmatpush1.msra.mxu0 %v1409
          %1541 = vmatprep.subr.mxu0 0.0
          %1542 = vmatpush1.msra.mxu0 %v1410
          %1543 = vmatprep.subr.mxu0 0.0
          %1544 = vmatpush1.msra.mxu0 %v1411
          %1545 = vmatprep.subr.mxu0 0.0
          %1546 = vmatpush1.msra.mxu0 %v1412
          %1547 = vmatprep.subr.mxu0 0.0
          %1548 = vmatpush1.msra.mxu0 %v1413
          %1549 = vmatprep.subr.mxu0 0.0
          %1550 = vmatpush1.msra.mxu0 %v1414
          %1551 = vmatprep.subr.mxu0 0.0
          %1552 = vmatpush1.msra.mxu0 %v1415
          %1553 = vmatprep.subr.mxu0 0.0
          %1554 = vmatpush1.msra.mxu0 %v1416
          %1555 = vmatprep.subr.mxu0 0.0
          %1556 = vmatpush1.msra.mxu0 %v1417
          %1557 = vmatprep.subr.mxu0 0.0
          %1558 = vmatpush1.msra.mxu0 %v1418
          %1559 = vmatprep.subr.mxu0 0.0
          %1560 = vmatpush1.msra.mxu0 %v1419
          %1561 = vmatprep.mubr.f32.mxu0 %v1355
          %1562 = vmatmul.mubr.f32.gmra.mrb[0].mxu0 %v1354
          %v1563 = vpop.f32.mrb[0].mxu0
          %v1564 = vadd.f32 %v1494, %v1563
          %v1565 = vpop.f32.mrb[0].mxu0
          %1566 = vdwg.mxu0
          %1567 = vst [vmem:[%s13] sm:$0x3] %v1564
          %v1568 = vmul.f32 %v1564, 54.0
          %v1569 = vadd.f32 %v1568, 45.0
          %v1570 = vadd.f32 %v1568, 120.0
          %v1571 = vmul.f32 %v1564, 151.0
          %v1572 = vadd.f32 %v1571, 813.0
          %v1573 = vld [vmem:[%s7] sm:$0xff]
          %v1574 = vld [vmem:[%s7 + $0x8] sm:$0xff]
          %v1575 = vld [vmem:[%s7 + $0x10] sm:$0xff]
          %v1576 = vld [vmem:[%s7 + $0x18] sm:$0xff]
          %v1577 = vld [vmem:[%s7 + $0x20] sm:$0xff]
          %v1578 = vld [vmem:[%s7 + $0x28] sm:$0xff]
          %v1579 = vld [vmem:[%s7 + $0x30] sm:$0xff]
          %v1580 = vld [vmem:[%s7 + $0x38] sm:$0xff]
          %v1581 = vld [vmem:[%s7 + $0x40] sm:$0xff]
          %v1582 = vld [vmem:[%s7 + $0x48] sm:$0xff]
          %v1583 = vld [vmem:[%s7 + $0x50] sm:$0xff]
          %v1584 = vld [vmem:[%s7 + $0x58] sm:$0xff]
          %v1585 = vld [vmem:[%s7 + $0x60] sm:$0xff]
          %v1586 = vld [vmem:[%s7 + $0x68] sm:$0xff]
          %v1587 = vld [vmem:[%s7 + $0x70] sm:$0xff]
          %v1588 = vld [vmem:[%s7 + $0x78] sm:$0xff]
          %v1589 = vld [vmem:[%s7 + $0x80] sm:$0xff]
          %v1590 = vld [vmem:[%s7 + $0x88] sm:$0xff]
          %v1591 = vld [vmem:[%s7 + $0x90] sm:$0xff]
          %v1592 = vld [vmem:[%s7 + $0x98] sm:$0xff]
          %v1593 = vld [vmem:[%s7 + $0xa0] sm:$0xff]
          %v1594 = vld [vmem:[%s7 + $0xa8] sm:$0xff]
          %v1595 = vld [vmem:[%s7 + $0xb0] sm:$0xff]
          %v1596 = vld [vmem:[%s7 + $0xb8] sm:$0xff]
          %v1597 = vld [vmem:[%s7 + $0xc0] sm:$0xff]
          %v1598 = vld [vmem:[%s7 + $0xc8] sm:$0xff]
          %v1599 = vld [vmem:[%s7 + $0xd0] sm:$0xff]
          %v1600 = vld [vmem:[%s7 + $0xd8] sm:$0xff]
          %v1601 = vld [vmem:[%s7 + $0xe0] sm:$0xff]
          %v1602 = vld [vmem:[%s7 + $0xe8] sm:$0xff]
          %v1603 = vld [vmem:[%s7 + $0xf0] sm:$0xff]
          %v1604 = vld [vmem:[%s7 + $0xf8] sm:$0xff]
          %v1605 = vld [vmem:[%s7 + $0x100] sm:$0xff]
          %v1606 = vld [vmem:[%s7 + $0x108] sm:$0xff]
          %v1607 = vld [vmem:[%s7 + $0x110] sm:$0xff]
          %v1608 = vld [vmem:[%s7 + $0x118] sm:$0xff]
          %v1609 = vld [vmem:[%s7 + $0x120] sm:$0xff]
          %v1610 = vld [vmem:[%s7 + $0x128] sm:$0xff]
          %v1611 = vld [vmem:[%s7 + $0x130] sm:$0xf]
          %v1612 = vld [vmem:[%s7 + $0x138] sm:$0xf]
          %v1613 = vld [vmem:[%s7 + $0x140] sm:$0xf]
          %v1614 = vld [vmem:[%s7 + $0x148] sm:$0xf]
          %v1615 = vld [vmem:[%s7 + $0x150] sm:$0xf]
          %v1616 = vld [vmem:[%s7 + $0x158] sm:$0xf]
          %v1617 = vld [vmem:[%s7 + $0x160] sm:$0xf]
          %v1618 = vld [vmem:[%s7 + $0x168] sm:$0xf]
          %v1619 = vld [vmem:[%s7 + $0x170] sm:$0xf]
          %v1620 = vld [vmem:[%s7 + $0x178] sm:$0xf]
          %v1621 = vld [vmem:[%s7 + $0x180] sm:$0xf]
          %v1622 = vld [vmem:[%s7 + $0x188] sm:$0xf]
          %v1623 = vld [vmem:[%s7 + $0x190] sm:$0xf]
          %v1624 = vld [vmem:[%s7 + $0x198] sm:$0xf]
          %v1625 = vld [vmem:[%s7 + $0x1a0] sm:$0xf]
          %v1626 = vld [vmem:[%s7 + $0x1a8] sm:$0xf]
          %v1627 = vld [vmem:[%s7 + $0x1b0] sm:$0xf]
          %v1628 = vld [vmem:[%s7 + $0x1b8] sm:$0xf]
          %v1629 = vld [vmem:[%s7 + $0x1c0] sm:$0xf]
          %v1630 = vld [vmem:[%s8] sm:$0xff]
          %v1631 = vld [vmem:[%s8 + $0x8] sm:$0xff]
          %v1632 = vld [vmem:[%s8 + $0x10] sm:$0x7]
          %v1636 = vlaneseq
          %v1637 = vshrl.u32 %v1636, 7
          %v1638 = vsub.s32 0, %v1637
          %v1639 = vrot.slane %v1630, %v1638
          %v1640 = vlaneseq
          %v1641 = vshrl.u32 %v1640, 7
          %v1642 = vsub.s32 1, %v1641
          %v1643 = vrot.slane %v1630, %v1642
          %v1644 = vlaneseq
          %v1645 = vshrl.u32 %v1644, 7
          %v1646 = vsub.s32 2, %v1645
          %v1647 = vrot.slane %v1630, %v1646
          %v1648 = vlaneseq
          %v1649 = vshrl.u32 %v1648, 7
          %v1650 = vsub.s32 3, %v1649
          %v1651 = vrot.slane %v1630, %v1650
          %v1652 = vlaneseq
          %v1653 = vshrl.u32 %v1652, 7
          %v1654 = vsub.s32 4, %v1653
          %v1655 = vrot.slane %v1630, %v1654
          %v1656 = vlaneseq
          %v1657 = vshrl.u32 %v1656, 7
          %v1658 = vsub.s32 5, %v1657
          %v1659 = vrot.slane %v1630, %v1658
          %v1660 = vlaneseq
          %v1661 = vshrl.u32 %v1660, 7
          %v1662 = vsub.s32 6, %v1661
          %v1663 = vrot.slane %v1630, %v1662
          %v1664 = vlaneseq
          %v1665 = vshrl.u32 %v1664, 7
          %v1666 = vsub.s32 7, %v1665
          %v1667 = vrot.slane %v1630, %v1666
          %v1668 = vlaneseq
          %v1669 = vshrl.u32 %v1668, 7
          %v1670 = vsub.s32 0, %v1669
          %v1671 = vrot.slane %v1631, %v1670
          %v1672 = vlaneseq
          %v1673 = vshrl.u32 %v1672, 7
          %v1674 = vsub.s32 1, %v1673
          %v1675 = vrot.slane %v1631, %v1674
          %v1676 = vlaneseq
          %v1677 = vshrl.u32 %v1676, 7
          %v1678 = vsub.s32 2, %v1677
          %v1679 = vrot.slane %v1631, %v1678
          %v1680 = vlaneseq
          %v1681 = vshrl.u32 %v1680, 7
          %v1682 = vsub.s32 3, %v1681
          %v1683 = vrot.slane %v1631, %v1682
          %v1684 = vlaneseq
          %v1685 = vshrl.u32 %v1684, 7
          %v1686 = vsub.s32 4, %v1685
          %v1687 = vrot.slane %v1631, %v1686
          %v1688 = vlaneseq
          %v1689 = vshrl.u32 %v1688, 7
          %v1690 = vsub.s32 5, %v1689
          %v1691 = vrot.slane %v1631, %v1690
          %v1692 = vlaneseq
          %v1693 = vshrl.u32 %v1692, 7
          %v1694 = vsub.s32 6, %v1693
          %v1695 = vrot.slane %v1631, %v1694
          %v1696 = vlaneseq
          %v1697 = vshrl.u32 %v1696, 7
          %v1698 = vsub.s32 7, %v1697
          %v1699 = vrot.slane %v1631, %v1698
          %v1700 = vlaneseq
          %v1701 = vshrl.u32 %v1700, 7
          %v1702 = vsub.s32 0, %v1701
          %v1703 = vrot.slane %v1632, %v1702
          %v1704 = vlaneseq
          %v1705 = vshrl.u32 %v1704, 7
          %v1706 = vsub.s32 1, %v1705
          %v1707 = vrot.slane %v1632, %v1706
          %v1708 = vlaneseq
          %v1709 = vshrl.u32 %v1708, 7
          %v1710 = vsub.s32 2, %v1709
          %v1711 = vrot.slane %v1632, %v1710
          %vm1731 = vcmask 162816
          %v1733 = vsel %vm1731, %v1564, 0
          %v1736 = vsel %vm577, %v1611, 0
          %v1739 = vsel %vm577, %v1612, 0
          %v1742 = vsel %vm577, %v1613, 0
          %v1745 = vsel %vm577, %v1614, 0
          %v1748 = vsel %vm577, %v1615, 0
          %v1751 = vsel %vm577, %v1616, 0
          %v1754 = vsel %vm577, %v1617, 0
          %v1757 = vsel %vm577, %v1618, 0
          %v1760 = vsel %vm577, %v1619, 0
          %v1763 = vsel %vm577, %v1620, 0
          %v1766 = vsel %vm577, %v1621, 0
          %v1769 = vsel %vm577, %v1622, 0
          %v1772 = vsel %vm577, %v1623, 0
          %v1775 = vsel %vm577, %v1624, 0
          %v1778 = vsel %vm577, %v1625, 0
          %v1781 = vsel %vm577, %v1626, 0
          %v1784 = vsel %vm577, %v1627, 0
          %v1787 = vsel %vm577, %v1628, 0
          %v1790 = vsel %vm577, %v1629, 0
          %1792 = vmatprep.subr.mxu0 %v1574
          %1793 = vmatpush1.msra.mxu0 %v1573
          %1794 = vmatprep.subr.mxu0 %v1593
          %1795 = vmatpush1.msra.mxu0 %v1592
          %1796 = vmatprep.subr.mxu0 %v1739
          %1797 = vmatpush1.msra.mxu0 %v1736
          %1798 = vmatprep.subr.mxu0 0.0
          %1799 = vmatpush1.msra.mxu0 0.0
          %1800 = vmatprep.subr.mxu0 0.0
          %1801 = vmatpush1.msra.mxu0 0.0
          %1802 = vmatprep.subr.mxu0 0.0
          %1803 = vmatpush1.msra.mxu0 0.0
          %1804 = vmatprep.subr.mxu0 0.0
          %1805 = vmatpush1.msra.mxu0 0.0
          %1806 = vmatprep.subr.mxu0 0.0
          %1807 = vmatpush1.msra.mxu0 0.0
          %1808 = vmatprep.subr.mxu0 0.0
          %1809 = vmatpush1.msra.mxu0 0.0
          %1810 = vmatprep.subr.mxu0 0.0
          %1811 = vmatpush1.msra.mxu0 0.0
          %1812 = vmatprep.subr.mxu0 0.0
          %1813 = vmatpush1.msra.mxu0 0.0
          %1814 = vmatprep.subr.mxu0 0.0
          %1815 = vmatpush1.msra.mxu0 0.0
          %1816 = vmatprep.subr.mxu0 0.0
          %1817 = vmatpush1.msra.mxu0 0.0
          %1818 = vmatprep.subr.mxu0 0.0
          %1819 = vmatpush1.msra.mxu0 0.0
          %1820 = vmatprep.subr.mxu0 0.0
          %1821 = vmatpush1.msra.mxu0 0.0
          %1822 = vmatprep.subr.mxu0 0.0
          %1823 = vmatpush1.msra.mxu0 0.0
          %1824 = vmatprep.subr.mxu0 0.0
          %1825 = vmatpush1.msra.mxu0 0.0
          %1826 = vmatprep.subr.mxu0 0.0
          %1827 = vmatpush1.msra.mxu0 0.0
          %1828 = vmatprep.subr.mxu0 0.0
          %1829 = vmatpush1.msra.mxu0 0.0
          %1830 = vmatprep.subr.mxu0 0.0
          %1831 = vmatpush1.msra.mxu0 0.0
          %1832 = vmatprep.subr.mxu0 0.0
          %1833 = vmatpush1.msra.mxu0 0.0
          %1834 = vmatprep.subr.mxu0 0.0
          %1835 = vmatpush1.msra.mxu0 0.0
          %1836 = vmatprep.subr.mxu0 0.0
          %1837 = vmatpush1.msra.mxu0 0.0
          %1838 = vmatprep.subr.mxu0 0.0
          %1839 = vmatpush1.msra.mxu0 0.0
          %1840 = vmatprep.subr.mxu0 0.0
          %1841 = vmatpush1.msra.mxu0 0.0
          %1842 = vmatprep.subr.mxu0 0.0
          %1843 = vmatpush1.msra.mxu0 0.0
          %1844 = vmatprep.subr.mxu0 0.0
          %1845 = vmatpush1.msra.mxu0 0.0
          %1846 = vmatprep.subr.mxu0 0.0
          %1847 = vmatpush1.msra.mxu0 0.0
          %1848 = vmatprep.subr.mxu0 0.0
          %1849 = vmatpush1.msra.mxu0 0.0
          %1850 = vmatprep.subr.mxu0 0.0
          %1851 = vmatpush1.msra.mxu0 0.0
          %1852 = vmatprep.subr.mxu0 0.0
          %1853 = vmatpush1.msra.mxu0 0.0
          %1854 = vmatprep.subr.mxu0 0.0
          %1855 = vmatpush1.msra.mxu0 0.0
          %1856 = vmatprep.mubr.f32.mxu0 0.0
          %1857 = vmatmul.mubr.f32.gmra.mrb[0].mxu0 %v1733
          %v1858 = vpop.f32.mrb[0].mxu0
          %v1859 = vadd.f32 %v1639, %v1858
          %v1860 = vpop.f32.mrb[0].mxu0
          %v1861 = vadd.f32 %v1643, %v1860
          %1862 = vdwg.mxu0
          %1863 = vmatprep.subr.mxu0 %v1576
          %1864 = vmatpush1.msra.mxu0 %v1575
          %1865 = vmatprep.subr.mxu0 %v1595
          %1866 = vmatpush1.msra.mxu0 %v1594
          %1867 = vmatprep.subr.mxu0 %v1745
          %1868 = vmatpush1.msra.mxu0 %v1742
          %1869 = vmatprep.subr.mxu0 0.0
          %1870 = vmatpush1.msra.mxu0 0.0
          %1871 = vmatprep.subr.mxu0 0.0
          %1872 = vmatpush1.msra.mxu0 0.0
          %1873 = vmatprep.subr.mxu0 0.0
          %1874 = vmatpush1.msra.mxu0 0.0
          %1875 = vmatprep.subr.mxu0 0.0
          %1876 = vmatpush1.msra.mxu0 0.0
          %1877 = vmatprep.subr.mxu0 0.0
          %1878 = vmatpush1.msra.mxu0 0.0
          %1879 = vmatprep.subr.mxu0 0.0
          %1880 = vmatpush1.msra.mxu0 0.0
          %1881 = vmatprep.subr.mxu0 0.0
          %1882 = vmatpush1.msra.mxu0 0.0
          %1883 = vmatprep.subr.mxu0 0.0
          %1884 = vmatpush1.msra.mxu0 0.0
          %1885 = vmatprep.subr.mxu0 0.0
          %1886 = vmatpush1.msra.mxu0 0.0
          %1887 = vmatprep.subr.mxu0 0.0
          %1888 = vmatpush1.msra.mxu0 0.0
          %1889 = vmatprep.subr.mxu0 0.0
          %1890 = vmatpush1.msra.mxu0 0.0
          %1891 = vmatprep.subr.mxu0 0.0
          %1892 = vmatpush1.msra.mxu0 0.0
          %1893 = vmatprep.subr.mxu0 0.0
          %1894 = vmatpush1.msra.mxu0 0.0
          %1895 = vmatprep.subr.mxu0 0.0
          %1896 = vmatpush1.msra.mxu0 0.0
          %1897 = vmatprep.subr.mxu0 0.0
          %1898 = vmatpush1.msra.mxu0 0.0
          %1899 = vmatprep.subr.mxu0 0.0
          %1900 = vmatpush1.msra.mxu0 0.0
          %1901 = vmatprep.subr.mxu0 0.0
          %1902 = vmatpush1.msra.mxu0 0.0
          %1903 = vmatprep.subr.mxu0 0.0
          %1904 = vmatpush1.msra.mxu0 0.0
          %1905 = vmatprep.subr.mxu0 0.0
          %1906 = vmatpush1.msra.mxu0 0.0
          %1907 = vmatprep.subr.mxu0 0.0
          %1908 = vmatpush1.msra.mxu0 0.0
          %1909 = vmatprep.subr.mxu0 0.0
          %1910 = vmatpush1.msra.mxu0 0.0
          %1911 = vmatprep.subr.mxu0 0.0
          %1912 = vmatpush1.msra.mxu0 0.0
          %1913 = vmatprep.subr.mxu0 0.0
          %1914 = vmatpush1.msra.mxu0 0.0
          %1915 = vmatprep.subr.mxu0 0.0
          %1916 = vmatpush1.msra.mxu0 0.0
          %1917 = vmatprep.subr.mxu0 0.0
          %1918 = vmatpush1.msra.mxu0 0.0
          %1919 = vmatprep.subr.mxu0 0.0
          %1920 = vmatpush1.msra.mxu0 0.0
          %1921 = vmatprep.subr.mxu0 0.0
          %1922 = vmatpush1.msra.mxu0 0.0
          %1923 = vmatprep.subr.mxu0 0.0
          %1924 = vmatpush1.msra.mxu0 0.0
          %1925 = vmatprep.subr.mxu0 0.0
          %1926 = vmatpush1.msra.mxu0 0.0
          %1927 = vmatprep.mubr.f32.mxu0 0.0
          %1928 = vmatmul.mubr.f32.gmra.mrb[0].mxu0 %v1733
          %v1929 = vpop.f32.mrb[0].mxu0
          %v1930 = vadd.f32 %v1647, %v1929
          %v1931 = vpop.f32.mrb[0].mxu0
          %v1932 = vadd.f32 %v1651, %v1931
          %1933 = vdwg.mxu0
          %1934 = vmatprep.subr.mxu0 %v1578
          %1935 = vmatpush1.msra.mxu0 %v1577
          %1936 = vmatprep.subr.mxu0 %v1597
          %1937 = vmatpush1.msra.mxu0 %v1596
          %1938 = vmatprep.subr.mxu0 %v1751
          %1939 = vmatpush1.msra.mxu0 %v1748
          %1940 = vmatprep.subr.mxu0 0.0
          %1941 = vmatpush1.msra.mxu0 0.0
          %1942 = vmatprep.subr.mxu0 0.0
          %1943 = vmatpush1.msra.mxu0 0.0
          %1944 = vmatprep.subr.mxu0 0.0
          %1945 = vmatpush1.msra.mxu0 0.0
          %1946 = vmatprep.subr.mxu0 0.0
          %1947 = vmatpush1.msra.mxu0 0.0
          %1948 = vmatprep.subr.mxu0 0.0
          %1949 = vmatpush1.msra.mxu0 0.0
          %1950 = vmatprep.subr.mxu0 0.0
          %1951 = vmatpush1.msra.mxu0 0.0
          %1952 = vmatprep.subr.mxu0 0.0
          %1953 = vmatpush1.msra.mxu0 0.0
          %1954 = vmatprep.subr.mxu0 0.0
          %1955 = vmatpush1.msra.mxu0 0.0
          %1956 = vmatprep.subr.mxu0 0.0
          %1957 = vmatpush1.msra.mxu0 0.0
          %1958 = vmatprep.subr.mxu0 0.0
          %1959 = vmatpush1.msra.mxu0 0.0
          %1960 = vmatprep.subr.mxu0 0.0
          %1961 = vmatpush1.msra.mxu0 0.0
          %1962 = vmatprep.subr.mxu0 0.0
          %1963 = vmatpush1.msra.mxu0 0.0
          %1964 = vmatprep.subr.mxu0 0.0
          %1965 = vmatpush1.msra.mxu0 0.0
          %1966 = vmatprep.subr.mxu0 0.0
          %1967 = vmatpush1.msra.mxu0 0.0
          %1968 = vmatprep.subr.mxu0 0.0
          %1969 = vmatpush1.msra.mxu0 0.0
          %1970 = vmatprep.subr.mxu0 0.0
          %1971 = vmatpush1.msra.mxu0 0.0
          %1972 = vmatprep.subr.mxu0 0.0
          %1973 = vmatpush1.msra.mxu0 0.0
          %1974 = vmatprep.subr.mxu0 0.0
          %1975 = vmatpush1.msra.mxu0 0.0
          %1976 = vmatprep.subr.mxu0 0.0
          %1977 = vmatpush1.msra.mxu0 0.0
          %1978 = vmatprep.subr.mxu0 0.0
          %1979 = vmatpush1.msra.mxu0 0.0
          %1980 = vmatprep.subr.mxu0 0.0
          %1981 = vmatpush1.msra.mxu0 0.0
          %1982 = vmatprep.subr.mxu0 0.0
          %1983 = vmatpush1.msra.mxu0 0.0
          %1984 = vmatprep.subr.mxu0 0.0
          %1985 = vmatpush1.msra.mxu0 0.0
          %1986 = vmatprep.subr.mxu0 0.0
          %1987 = vmatpush1.msra.mxu0 0.0
          %1988 = vmatprep.subr.mxu0 0.0
          %1989 = vmatpush1.msra.mxu0 0.0
          %1990 = vmatprep.subr.mxu0 0.0
          %1991 = vmatpush1.msra.mxu0 0.0
          %1992 = vmatprep.subr.mxu0 0.0
          %1993 = vmatpush1.msra.mxu0 0.0
          %1994 = vmatprep.subr.mxu0 0.0
          %1995 = vmatpush1.msra.mxu0 0.0
          %1996 = vmatprep.subr.mxu0 0.0
          %1997 = vmatpush1.msra.mxu0 0.0
          %1998 = vmatprep.mubr.f32.mxu0 0.0
          %1999 = vmatmul.mubr.f32.gmra.mrb[0].mxu0 %v1733
          %v2000 = vpop.f32.mrb[0].mxu0
          %v2001 = vadd.f32 %v1655, %v2000
          %v2002 = vpop.f32.mrb[0].mxu0
          %v2003 = vadd.f32 %v1659, %v2002
          %2004 = vdwg.mxu0
          %2005 = vmatprep.subr.mxu0 %v1580
          %2006 = vmatpush1.msra.mxu0 %v1579
          %2007 = vmatprep.subr.mxu0 %v1599
          %2008 = vmatpush1.msra.mxu0 %v1598
          %2009 = vmatprep.subr.mxu0 %v1757
          %2010 = vmatpush1.msra.mxu0 %v1754
          %2011 = vmatprep.subr.mxu0 0.0
          %2012 = vmatpush1.msra.mxu0 0.0
          %2013 = vmatprep.subr.mxu0 0.0
          %2014 = vmatpush1.msra.mxu0 0.0
          %2015 = vmatprep.subr.mxu0 0.0
          %2016 = vmatpush1.msra.mxu0 0.0
          %2017 = vmatprep.subr.mxu0 0.0
          %2018 = vmatpush1.msra.mxu0 0.0
          %2019 = vmatprep.subr.mxu0 0.0
          %2020 = vmatpush1.msra.mxu0 0.0
          %2021 = vmatprep.subr.mxu0 0.0
          %2022 = vmatpush1.msra.mxu0 0.0
          %2023 = vmatprep.subr.mxu0 0.0
          %2024 = vmatpush1.msra.mxu0 0.0
          %2025 = vmatprep.subr.mxu0 0.0
          %2026 = vmatpush1.msra.mxu0 0.0
          %2027 = vmatprep.subr.mxu0 0.0
          %2028 = vmatpush1.msra.mxu0 0.0
          %2029 = vmatprep.subr.mxu0 0.0
          %2030 = vmatpush1.msra.mxu0 0.0
          %2031 = vmatprep.subr.mxu0 0.0
          %2032 = vmatpush1.msra.mxu0 0.0
          %2033 = vmatprep.subr.mxu0 0.0
          %2034 = vmatpush1.msra.mxu0 0.0
          %2035 = vmatprep.subr.mxu0 0.0
          %2036 = vmatpush1.msra.mxu0 0.0
          %2037 = vmatprep.subr.mxu0 0.0
          %2038 = vmatpush1.msra.mxu0 0.0
          %2039 = vmatprep.subr.mxu0 0.0
          %2040 = vmatpush1.msra.mxu0 0.0
          %2041 = vmatprep.subr.mxu0 0.0
          %2042 = vmatpush1.msra.mxu0 0.0
          %2043 = vmatprep.subr.mxu0 0.0
          %2044 = vmatpush1.msra.mxu0 0.0
          %2045 = vmatprep.subr.mxu0 0.0
          %2046 = vmatpush1.msra.mxu0 0.0
          %2047 = vmatprep.subr.mxu0 0.0
          %2048 = vmatpush1.msra.mxu0 0.0
          %2049 = vmatprep.subr.mxu0 0.0
          %2050 = vmatpush1.msra.mxu0 0.0
          %2051 = vmatprep.subr.mxu0 0.0
          %2052 = vmatpush1.msra.mxu0 0.0
          %2053 = vmatprep.subr.mxu0 0.0
          %2054 = vmatpush1.msra.mxu0 0.0
          %2055 = vmatprep.subr.mxu0 0.0
          %2056 = vmatpush1.msra.mxu0 0.0
          %2057 = vmatprep.subr.mxu0 0.0
          %2058 = vmatpush1.msra.mxu0 0.0
          %2059 = vmatprep.subr.mxu0 0.0
          %2060 = vmatpush1.msra.mxu0 0.0
          %2061 = vmatprep.subr.mxu0 0.0
          %2062 = vmatpush1.msra.mxu0 0.0
          %2063 = vmatprep.subr.mxu0 0.0
          %2064 = vmatpush1.msra.mxu0 0.0
          %2065 = vmatprep.subr.mxu0 0.0
          %2066 = vmatpush1.msra.mxu0 0.0
          %2067 = vmatprep.subr.mxu0 0.0
          %2068 = vmatpush1.msra.mxu0 0.0
          %2069 = vmatprep.mubr.f32.mxu0 0.0
          %2070 = vmatmul.mubr.f32.gmra.mrb[0].mxu0 %v1733
          %v2071 = vpop.f32.mrb[0].mxu0
          %v2072 = vadd.f32 %v1663, %v2071
          %v2073 = vpop.f32.mrb[0].mxu0
          %v2074 = vadd.f32 %v1667, %v2073
          %2075 = vdwg.mxu0
          %2076 = vmatprep.subr.mxu0 %v1582
          %2077 = vmatpush1.msra.mxu0 %v1581
          %2078 = vmatprep.subr.mxu0 %v1601
          %2079 = vmatpush1.msra.mxu0 %v1600
          %2080 = vmatprep.subr.mxu0 %v1763
          %2081 = vmatpush1.msra.mxu0 %v1760
          %2082 = vmatprep.subr.mxu0 0.0
          %2083 = vmatpush1.msra.mxu0 0.0
          %2084 = vmatprep.subr.mxu0 0.0
          %2085 = vmatpush1.msra.mxu0 0.0
          %2086 = vmatprep.subr.mxu0 0.0
          %2087 = vmatpush1.msra.mxu0 0.0
          %2088 = vmatprep.subr.mxu0 0.0
          %2089 = vmatpush1.msra.mxu0 0.0
          %2090 = vmatprep.subr.mxu0 0.0
          %2091 = vmatpush1.msra.mxu0 0.0
          %2092 = vmatprep.subr.mxu0 0.0
          %2093 = vmatpush1.msra.mxu0 0.0
          %2094 = vmatprep.subr.mxu0 0.0
          %2095 = vmatpush1.msra.mxu0 0.0
          %2096 = vmatprep.subr.mxu0 0.0
          %2097 = vmatpush1.msra.mxu0 0.0
          %2098 = vmatprep.subr.mxu0 0.0
          %2099 = vmatpush1.msra.mxu0 0.0
          %2100 = vmatprep.subr.mxu0 0.0
          %2101 = vmatpush1.msra.mxu0 0.0
          %2102 = vmatprep.subr.mxu0 0.0
          %2103 = vmatpush1.msra.mxu0 0.0
          %2104 = vmatprep.subr.mxu0 0.0
          %2105 = vmatpush1.msra.mxu0 0.0
          %2106 = vmatprep.subr.mxu0 0.0
          %2107 = vmatpush1.msra.mxu0 0.0
          %2108 = vmatprep.subr.mxu0 0.0
          %2109 = vmatpush1.msra.mxu0 0.0
          %2110 = vmatprep.subr.mxu0 0.0
          %2111 = vmatpush1.msra.mxu0 0.0
          %2112 = vmatprep.subr.mxu0 0.0
          %2113 = vmatpush1.msra.mxu0 0.0
          %2114 = vmatprep.subr.mxu0 0.0
          %2115 = vmatpush1.msra.mxu0 0.0
          %2116 = vmatprep.subr.mxu0 0.0
          %2117 = vmatpush1.msra.mxu0 0.0
          %2118 = vmatprep.subr.mxu0 0.0
          %2119 = vmatpush1.msra.mxu0 0.0
          %2120 = vmatprep.subr.mxu0 0.0
          %2121 = vmatpush1.msra.mxu0 0.0
          %2122 = vmatprep.subr.mxu0 0.0
          %2123 = vmatpush1.msra.mxu0 0.0
          %2124 = vmatprep.subr.mxu0 0.0
          %2125 = vmatpush1.msra.mxu0 0.0
          %2126 = vmatprep.subr.mxu0 0.0
          %2127 = vmatpush1.msra.mxu0 0.0
          %2128 = vmatprep.subr.mxu0 0.0
          %2129 = vmatpush1.msra.mxu0 0.0
          %2130 = vmatprep.subr.mxu0 0.0
          %2131 = vmatpush1.msra.mxu0 0.0
          %2132 = vmatprep.subr.mxu0 0.0
          %2133 = vmatpush1.msra.mxu0 0.0
          %2134 = vmatprep.subr.mxu0 0.0
          %2135 = vmatpush1.msra.mxu0 0.0
          %2136 = vmatprep.subr.mxu0 0.0
          %2137 = vmatpush1.msra.mxu0 0.0
          %2138 = vmatprep.subr.mxu0 0.0
          %2139 = vmatpush1.msra.mxu0 0.0
          %2140 = vmatprep.mubr.f32.mxu0 0.0
          %2141 = vmatmul.mubr.f32.gmra.mrb[0].mxu0 %v1733
          %v2142 = vpop.f32.mrb[0].mxu0
          %v2143 = vadd.f32 %v1671, %v2142
          %v2144 = vpop.f32.mrb[0].mxu0
          %v2145 = vadd.f32 %v1675, %v2144
          %2146 = vdwg.mxu0
          %2147 = vmatprep.subr.mxu0 %v1584
          %2148 = vmatpush1.msra.mxu0 %v1583
          %2149 = vmatprep.subr.mxu0 %v1603
          %2150 = vmatpush1.msra.mxu0 %v1602
          %2151 = vmatprep.subr.mxu0 %v1769
          %2152 = vmatpush1.msra.mxu0 %v1766
          %2153 = vmatprep.subr.mxu0 0.0
          %2154 = vmatpush1.msra.mxu0 0.0
          %2155 = vmatprep.subr.mxu0 0.0
          %2156 = vmatpush1.msra.mxu0 0.0
          %2157 = vmatprep.subr.mxu0 0.0
          %2158 = vmatpush1.msra.mxu0 0.0
          %2159 = vmatprep.subr.mxu0 0.0
          %2160 = vmatpush1.msra.mxu0 0.0
          %2161 = vmatprep.subr.mxu0 0.0
          %2162 = vmatpush1.msra.mxu0 0.0
          %2163 = vmatprep.subr.mxu0 0.0
          %2164 = vmatpush1.msra.mxu0 0.0
          %2165 = vmatprep.subr.mxu0 0.0
          %2166 = vmatpush1.msra.mxu0 0.0
          %2167 = vmatprep.subr.mxu0 0.0
          %2168 = vmatpush1.msra.mxu0 0.0
          %2169 = vmatprep.subr.mxu0 0.0
          %2170 = vmatpush1.msra.mxu0 0.0
          %2171 = vmatprep.subr.mxu0 0.0
          %2172 = vmatpush1.msra.mxu0 0.0
          %2173 = vmatprep.subr.mxu0 0.0
          %2174 = vmatpush1.msra.mxu0 0.0
          %2175 = vmatprep.subr.mxu0 0.0
          %2176 = vmatpush1.msra.mxu0 0.0
          %2177 = vmatprep.subr.mxu0 0.0
          %2178 = vmatpush1.msra.mxu0 0.0
          %2179 = vmatprep.subr.mxu0 0.0
          %2180 = vmatpush1.msra.mxu0 0.0
          %2181 = vmatprep.subr.mxu0 0.0
          %2182 = vmatpush1.msra.mxu0 0.0
          %2183 = vmatprep.subr.mxu0 0.0
          %2184 = vmatpush1.msra.mxu0 0.0
          %2185 = vmatprep.subr.mxu0 0.0
          %2186 = vmatpush1.msra.mxu0 0.0
          %2187 = vmatprep.subr.mxu0 0.0
          %2188 = vmatpush1.msra.mxu0 0.0
          %2189 = vmatprep.subr.mxu0 0.0
          %2190 = vmatpush1.msra.mxu0 0.0
          %2191 = vmatprep.subr.mxu0 0.0
          %2192 = vmatpush1.msra.mxu0 0.0
          %2193 = vmatprep.subr.mxu0 0.0
          %2194 = vmatpush1.msra.mxu0 0.0
          %2195 = vmatprep.subr.mxu0 0.0
          %2196 = vmatpush1.msra.mxu0 0.0
          %2197 = vmatprep.subr.mxu0 0.0
          %2198 = vmatpush1.msra.mxu0 0.0
          %2199 = vmatprep.subr.mxu0 0.0
          %2200 = vmatpush1.msra.mxu0 0.0
          %2201 = vmatprep.subr.mxu0 0.0
          %2202 = vmatpush1.msra.mxu0 0.0
          %2203 = vmatprep.subr.mxu0 0.0
          %2204 = vmatpush1.msra.mxu0 0.0
          %2205 = vmatprep.subr.mxu0 0.0
          %2206 = vmatpush1.msra.mxu0 0.0
          %2207 = vmatprep.subr.mxu0 0.0
          %2208 = vmatpush1.msra.mxu0 0.0
          %2209 = vmatprep.subr.mxu0 0.0
          %2210 = vmatpush1.msra.mxu0 0.0
          %2211 = vmatprep.mubr.f32.mxu0 0.0
          %2212 = vmatmul.mubr.f32.gmra.mrb[0].mxu0 %v1733
          %v2213 = vpop.f32.mrb[0].mxu0
          %v2214 = vadd.f32 %v1679, %v2213
          %v2215 = vpop.f32.mrb[0].mxu0
          %v2216 = vadd.f32 %v1683, %v2215
          %2217 = vdwg.mxu0
          %2218 = vmatprep.subr.mxu0 %v1586
          %2219 = vmatpush1.msra.mxu0 %v1585
          %2220 = vmatprep.subr.mxu0 %v1605
          %2221 = vmatpush1.msra.mxu0 %v1604
          %2222 = vmatprep.subr.mxu0 %v1775
          %2223 = vmatpush1.msra.mxu0 %v1772
          %2224 = vmatprep.subr.mxu0 0.0
          %2225 = vmatpush1.msra.mxu0 0.0
          %2226 = vmatprep.subr.mxu0 0.0
          %2227 = vmatpush1.msra.mxu0 0.0
          %2228 = vmatprep.subr.mxu0 0.0
          %2229 = vmatpush1.msra.mxu0 0.0
          %2230 = vmatprep.subr.mxu0 0.0
          %2231 = vmatpush1.msra.mxu0 0.0
          %2232 = vmatprep.subr.mxu0 0.0
          %2233 = vmatpush1.msra.mxu0 0.0
          %2234 = vmatprep.subr.mxu0 0.0
          %2235 = vmatpush1.msra.mxu0 0.0
          %2236 = vmatprep.subr.mxu0 0.0
          %2237 = vmatpush1.msra.mxu0 0.0
          %2238 = vmatprep.subr.mxu0 0.0
          %2239 = vmatpush1.msra.mxu0 0.0
          %2240 = vmatprep.subr.mxu0 0.0
          %2241 = vmatpush1.msra.mxu0 0.0
          %2242 = vmatprep.subr.mxu0 0.0
          %2243 = vmatpush1.msra.mxu0 0.0
          %2244 = vmatprep.subr.mxu0 0.0
          %2245 = vmatpush1.msra.mxu0 0.0
          %2246 = vmatprep.subr.mxu0 0.0
          %2247 = vmatpush1.msra.mxu0 0.0
          %2248 = vmatprep.subr.mxu0 0.0
          %2249 = vmatpush1.msra.mxu0 0.0
          %2250 = vmatprep.subr.mxu0 0.0
          %2251 = vmatpush1.msra.mxu0 0.0
          %2252 = vmatprep.subr.mxu0 0.0
          %2253 = vmatpush1.msra.mxu0 0.0
          %2254 = vmatprep.subr.mxu0 0.0
          %2255 = vmatpush1.msra.mxu0 0.0
          %2256 = vmatprep.subr.mxu0 0.0
          %2257 = vmatpush1.msra.mxu0 0.0
          %2258 = vmatprep.subr.mxu0 0.0
          %2259 = vmatpush1.msra.mxu0 0.0
          %2260 = vmatprep.subr.mxu0 0.0
          %2261 = vmatpush1.msra.mxu0 0.0
          %2262 = vmatprep.subr.mxu0 0.0
          %2263 = vmatpush1.msra.mxu0 0.0
          %2264 = vmatprep.subr.mxu0 0.0
          %2265 = vmatpush1.msra.mxu0 0.0
          %2266 = vmatprep.subr.mxu0 0.0
          %2267 = vmatpush1.msra.mxu0 0.0
          %2268 = vmatprep.subr.mxu0 0.0
          %2269 = vmatpush1.msra.mxu0 0.0
          %2270 = vmatprep.subr.mxu0 0.0
          %2271 = vmatpush1.msra.mxu0 0.0
          %2272 = vmatprep.subr.mxu0 0.0
          %2273 = vmatpush1.msra.mxu0 0.0
          %2274 = vmatprep.subr.mxu0 0.0
          %2275 = vmatpush1.msra.mxu0 0.0
          %2276 = vmatprep.subr.mxu0 0.0
          %2277 = vmatpush1.msra.mxu0 0.0
          %2278 = vmatprep.subr.mxu0 0.0
          %2279 = vmatpush1.msra.mxu0 0.0
          %2280 = vmatprep.subr.mxu0 0.0
          %2281 = vmatpush1.msra.mxu0 0.0
          %2282 = vmatprep.mubr.f32.mxu0 0.0
          %2283 = vmatmul.mubr.f32.gmra.mrb[0].mxu0 %v1733
          %v2284 = vpop.f32.mrb[0].mxu0
          %v2285 = vadd.f32 %v1687, %v2284
          %v2286 = vpop.f32.mrb[0].mxu0
          %v2287 = vadd.f32 %v1691, %v2286
          %2288 = vdwg.mxu0
          %2289 = vmatprep.subr.mxu0 %v1588
          %2290 = vmatpush1.msra.mxu0 %v1587
          %2291 = vmatprep.subr.mxu0 %v1607
          %2292 = vmatpush1.msra.mxu0 %v1606
          %2293 = vmatprep.subr.mxu0 %v1781
          %2294 = vmatpush1.msra.mxu0 %v1778
          %2295 = vmatprep.subr.mxu0 0.0
          %2296 = vmatpush1.msra.mxu0 0.0
          %2297 = vmatprep.subr.mxu0 0.0
          %2298 = vmatpush1.msra.mxu0 0.0
          %2299 = vmatprep.subr.mxu0 0.0
          %2300 = vmatpush1.msra.mxu0 0.0
          %2301 = vmatprep.subr.mxu0 0.0
          %2302 = vmatpush1.msra.mxu0 0.0
          %2303 = vmatprep.subr.mxu0 0.0
          %2304 = vmatpush1.msra.mxu0 0.0
          %2305 = vmatprep.subr.mxu0 0.0
          %2306 = vmatpush1.msra.mxu0 0.0
          %2307 = vmatprep.subr.mxu0 0.0
          %2308 = vmatpush1.msra.mxu0 0.0
          %2309 = vmatprep.subr.mxu0 0.0
          %2310 = vmatpush1.msra.mxu0 0.0
          %2311 = vmatprep.subr.mxu0 0.0
          %2312 = vmatpush1.msra.mxu0 0.0
          %2313 = vmatprep.subr.mxu0 0.0
          %2314 = vmatpush1.msra.mxu0 0.0
          %2315 = vmatprep.subr.mxu0 0.0
          %2316 = vmatpush1.msra.mxu0 0.0
          %2317 = vmatprep.subr.mxu0 0.0
          %2318 = vmatpush1.msra.mxu0 0.0
          %2319 = vmatprep.subr.mxu0 0.0
          %2320 = vmatpush1.msra.mxu0 0.0
          %2321 = vmatprep.subr.mxu0 0.0
          %2322 = vmatpush1.msra.mxu0 0.0
          %2323 = vmatprep.subr.mxu0 0.0
          %2324 = vmatpush1.msra.mxu0 0.0
          %2325 = vmatprep.subr.mxu0 0.0
          %2326 = vmatpush1.msra.mxu0 0.0
          %2327 = vmatprep.subr.mxu0 0.0
          %2328 = vmatpush1.msra.mxu0 0.0
          %2329 = vmatprep.subr.mxu0 0.0
          %2330 = vmatpush1.msra.mxu0 0.0
          %2331 = vmatprep.subr.mxu0 0.0
          %2332 = vmatpush1.msra.mxu0 0.0
          %2333 = vmatprep.subr.mxu0 0.0
          %2334 = vmatpush1.msra.mxu0 0.0
          %2335 = vmatprep.subr.mxu0 0.0
          %2336 = vmatpush1.msra.mxu0 0.0
          %2337 = vmatprep.subr.mxu0 0.0
          %2338 = vmatpush1.msra.mxu0 0.0
          %2339 = vmatprep.subr.mxu0 0.0
          %2340 = vmatpush1.msra.mxu0 0.0
          %2341 = vmatprep.subr.mxu0 0.0
          %2342 = vmatpush1.msra.mxu0 0.0
          %2343 = vmatprep.subr.mxu0 0.0
          %2344 = vmatpush1.msra.mxu0 0.0
          %2345 = vmatprep.subr.mxu0 0.0
          %2346 = vmatpush1.msra.mxu0 0.0
          %2347 = vmatprep.subr.mxu0 0.0
          %2348 = vmatpush1.msra.mxu0 0.0
          %2349 = vmatprep.subr.mxu0 0.0
          %2350 = vmatpush1.msra.mxu0 0.0
          %2351 = vmatprep.subr.mxu0 0.0
          %2352 = vmatpush1.msra.mxu0 0.0
          %2353 = vmatprep.mubr.f32.mxu0 0.0
          %2354 = vmatmul.mubr.f32.gmra.mrb[0].mxu0 %v1733
          %v2355 = vpop.f32.mrb[0].mxu0
          %v2356 = vadd.f32 %v1695, %v2355
          %v2357 = vpop.f32.mrb[0].mxu0
          %v2358 = vadd.f32 %v1699, %v2357
          %2359 = vdwg.mxu0
          %2360 = vmatprep.subr.mxu0 %v1590
          %2361 = vmatpush1.msra.mxu0 %v1589
          %2362 = vmatprep.subr.mxu0 %v1609
          %2363 = vmatpush1.msra.mxu0 %v1608
          %2364 = vmatprep.subr.mxu0 %v1787
          %2365 = vmatpush1.msra.mxu0 %v1784
          %2366 = vmatprep.subr.mxu0 0.0
          %2367 = vmatpush1.msra.mxu0 0.0
          %2368 = vmatprep.subr.mxu0 0.0
          %2369 = vmatpush1.msra.mxu0 0.0
          %2370 = vmatprep.subr.mxu0 0.0
          %2371 = vmatpush1.msra.mxu0 0.0
          %2372 = vmatprep.subr.mxu0 0.0
          %2373 = vmatpush1.msra.mxu0 0.0
          %2374 = vmatprep.subr.mxu0 0.0
          %2375 = vmatpush1.msra.mxu0 0.0
          %2376 = vmatprep.subr.mxu0 0.0
          %2377 = vmatpush1.msra.mxu0 0.0
          %2378 = vmatprep.subr.mxu0 0.0
          %2379 = vmatpush1.msra.mxu0 0.0
          %2380 = vmatprep.subr.mxu0 0.0
          %2381 = vmatpush1.msra.mxu0 0.0
          %2382 = vmatprep.subr.mxu0 0.0
          %2383 = vmatpush1.msra.mxu0 0.0
          %2384 = vmatprep.subr.mxu0 0.0
          %2385 = vmatpush1.msra.mxu0 0.0
          %2386 = vmatprep.subr.mxu0 0.0
          %2387 = vmatpush1.msra.mxu0 0.0
          %2388 = vmatprep.subr.mxu0 0.0
          %2389 = vmatpush1.msra.mxu0 0.0
          %2390 = vmatprep.subr.mxu0 0.0
          %2391 = vmatpush1.msra.mxu0 0.0
          %2392 = vmatprep.subr.mxu0 0.0
          %2393 = vmatpush1.msra.mxu0 0.0
          %2394 = vmatprep.subr.mxu0 0.0
          %2395 = vmatpush1.msra.mxu0 0.0
          %2396 = vmatprep.subr.mxu0 0.0
          %2397 = vmatpush1.msra.mxu0 0.0
          %2398 = vmatprep.subr.mxu0 0.0
          %2399 = vmatpush1.msra.mxu0 0.0
          %2400 = vmatprep.subr.mxu0 0.0
          %2401 = vmatpush1.msra.mxu0 0.0
          %2402 = vmatprep.subr.mxu0 0.0
          %2403 = vmatpush1.msra.mxu0 0.0
          %2404 = vmatprep.subr.mxu0 0.0
          %2405 = vmatpush1.msra.mxu0 0.0
          %2406 = vmatprep.subr.mxu0 0.0
          %2407 = vmatpush1.msra.mxu0 0.0
          %2408 = vmatprep.subr.mxu0 0.0
          %2409 = vmatpush1.msra.mxu0 0.0
          %2410 = vmatprep.subr.mxu0 0.0
          %2411 = vmatpush1.msra.mxu0 0.0
          %2412 = vmatprep.subr.mxu0 0.0
          %2413 = vmatpush1.msra.mxu0 0.0
          %2414 = vmatprep.subr.mxu0 0.0
          %2415 = vmatpush1.msra.mxu0 0.0
          %2416 = vmatprep.subr.mxu0 0.0
          %2417 = vmatpush1.msra.mxu0 0.0
          %2418 = vmatprep.subr.mxu0 0.0
          %2419 = vmatpush1.msra.mxu0 0.0
          %2420 = vmatprep.subr.mxu0 0.0
          %2421 = vmatpush1.msra.mxu0 0.0
          %2422 = vmatprep.subr.mxu0 0.0
          %2423 = vmatpush1.msra.mxu0 0.0
          %2424 = vmatprep.mubr.f32.mxu0 0.0
          %2425 = vmatmul.mubr.f32.gmra.mrb[0].mxu0 %v1733
          %v2426 = vpop.f32.mrb[0].mxu0
          %v2427 = vadd.f32 %v1703, %v2426
          %v2428 = vpop.f32.mrb[0].mxu0
          %v2429 = vadd.f32 %v1707, %v2428
          %2430 = vdwg.mxu0
          %2431 = vmatprep.subr.mxu0 0.0
          %2432 = vmatpush1.msra.mxu0 %v1591
          %2433 = vmatprep.subr.mxu0 0.0
          %2434 = vmatpush1.msra.mxu0 %v1610
          %2435 = vmatprep.subr.mxu0 0.0
          %2436 = vmatpush1.msra.mxu0 %v1790
          %2437 = vmatprep.subr.mxu0 0.0
          %2438 = vmatpush1.msra.mxu0 0.0
          %2439 = vmatprep.subr.mxu0 0.0
          %2440 = vmatpush1.msra.mxu0 0.0
          %2441 = vmatprep.subr.mxu0 0.0
          %2442 = vmatpush1.msra.mxu0 0.0
          %2443 = vmatprep.subr.mxu0 0.0
          %2444 = vmatpush1.msra.mxu0 0.0
          %2445 = vmatprep.subr.mxu0 0.0
          %2446 = vmatpush1.msra.mxu0 0.0
          %2447 = vmatprep.subr.mxu0 0.0
          %2448 = vmatpush1.msra.mxu0 0.0
          %2449 = vmatprep.subr.mxu0 0.0
          %2450 = vmatpush1.msra.mxu0 0.0
          %2451 = vmatprep.subr.mxu0 0.0
          %2452 = vmatpush1.msra.mxu0 0.0
          %2453 = vmatprep.subr.mxu0 0.0
          %2454 = vmatpush1.msra.mxu0 0.0
          %2455 = vmatprep.subr.mxu0 0.0
          %2456 = vmatpush1.msra.mxu0 0.0
          %2457 = vmatprep.subr.mxu0 0.0
          %2458 = vmatpush1.msra.mxu0 0.0
          %2459 = vmatprep.subr.mxu0 0.0
          %2460 = vmatpush1.msra.mxu0 0.0
          %2461 = vmatprep.subr.mxu0 0.0
          %2462 = vmatpush1.msra.mxu0 0.0
          %2463 = vmatprep.subr.mxu0 0.0
          %2464 = vmatpush1.msra.mxu0 0.0
          %2465 = vmatprep.subr.mxu0 0.0
          %2466 = vmatpush1.msra.mxu0 0.0
          %2467 = vmatprep.subr.mxu0 0.0
          %2468 = vmatpush1.msra.mxu0 0.0
          %2469 = vmatprep.subr.mxu0 0.0
          %2470 = vmatpush1.msra.mxu0 0.0
          %2471 = vmatprep.subr.mxu0 0.0
          %2472 = vmatpush1.msra.mxu0 0.0
          %2473 = vmatprep.subr.mxu0 0.0
          %2474 = vmatpush1.msra.mxu0 0.0
          %2475 = vmatprep.subr.mxu0 0.0
          %2476 = vmatpush1.msra.mxu0 0.0
          %2477 = vmatprep.subr.mxu0 0.0
          %2478 = vmatpush1.msra.mxu0 0.0
          %2479 = vmatprep.subr.mxu0 0.0
          %2480 = vmatpush1.msra.mxu0 0.0
          %2481 = vmatprep.subr.mxu0 0.0
          %2482 = vmatpush1.msra.mxu0 0.0
          %2483 = vmatprep.subr.mxu0 0.0
          %2484 = vmatpush1.msra.mxu0 0.0
          %2485 = vmatprep.subr.mxu0 0.0
          %2486 = vmatpush1.msra.mxu0 0.0
          %2487 = vmatprep.subr.mxu0 0.0
          %2488 = vmatpush1.msra.mxu0 0.0
          %2489 = vmatprep.subr.mxu0 0.0
          %2490 = vmatpush1.msra.mxu0 0.0
          %2491 = vmatprep.subr.mxu0 0.0
          %2492 = vmatpush1.msra.mxu0 0.0
          %2493 = vmatprep.subr.mxu0 0.0
          %2494 = vmatpush1.msra.mxu0 0.0
          %2495 = vmatprep.mubr.f32.mxu0 0.0
          %2496 = vmatmul.mubr.f32.gmra.mrb[0].mxu0 %v1733
          %v2497 = vpop.f32.mrb[0].mxu0
          %v2498 = vadd.f32 %v1711, %v2497
          %v2499 = vpop.f32.mrb[0].mxu0
          %2500 = vdwg.mxu0
          %v2501 = vld [vmem:[%s9] sm:$0xff]
          %v2502 = vld [vmem:[%s9 + $0x8] sm:$0xff]
          %v2503 = vld [vmem:[%s9 + $0x10] sm:$0xf]
          %v2504 = vld [vmem:[%s10] sm:$0x1]
          %v2506 = vlaneseq
          %v2507 = vshrl.u32 %v2506, 7
          %v2508 = vsub.s32 0, %v2507
          %v2509 = vrot.slane %v2504, %v2508
          %v2512 = vsel %vm577, %v2503, 0
          %2514 = vmatprep.subr.mxu0 0.0
          %2515 = vmatpush1.msra.mxu0 %v2501
          %2516 = vmatprep.subr.mxu0 0.0
          %2517 = vmatpush1.msra.mxu0 %v2502
          %2518 = vmatprep.subr.mxu0 0.0
          %2519 = vmatpush1.msra.mxu0 %v2512
          %2520 = vmatprep.subr.mxu0 0.0
          %2521 = vmatpush1.msra.mxu0 0.0
          %2522 = vmatprep.subr.mxu0 0.0
          %2523 = vmatpush1.msra.mxu0 0.0
          %2524 = vmatprep.subr.mxu0 0.0
          %2525 = vmatpush1.msra.mxu0 0.0
          %2526 = vmatprep.subr.mxu0 0.0
          %2527 = vmatpush1.msra.mxu0 0.0
          %2528 = vmatprep.subr.mxu0 0.0
          %2529 = vmatpush1.msra.mxu0 0.0
          %2530 = vmatprep.subr.mxu0 0.0
          %2531 = vmatpush1.msra.mxu0 0.0
          %2532 = vmatprep.subr.mxu0 0.0
          %2533 = vmatpush1.msra.mxu0 0.0
          %2534 = vmatprep.subr.mxu0 0.0
          %2535 = vmatpush1.msra.mxu0 0.0
          %2536 = vmatprep.subr.mxu0 0.0
          %2537 = vmatpush1.msra.mxu0 0.0
          %2538 = vmatprep.subr.mxu0 0.0
          %2539 = vmatpush1.msra.mxu0 0.0
          %2540 = vmatprep.subr.mxu0 0.0
          %2541 = vmatpush1.msra.mxu0 0.0
          %2542 = vmatprep.subr.mxu0 0.0
          %2543 = vmatpush1.msra.mxu0 0.0
          %2544 = vmatprep.subr.mxu0 0.0
          %2545 = vmatpush1.msra.mxu0 0.0
          %2546 = vmatprep.subr.mxu0 0.0
          %2547 = vmatpush1.msra.mxu0 0.0
          %2548 = vmatprep.subr.mxu0 0.0
          %2549 = vmatpush1.msra.mxu0 0.0
          %2550 = vmatprep.subr.mxu0 0.0
          %2551 = vmatpush1.msra.mxu0 0.0
          %2552 = vmatprep.subr.mxu0 0.0
          %2553 = vmatpush1.msra.mxu0 0.0
          %2554 = vmatprep.subr.mxu0 0.0
          %2555 = vmatpush1.msra.mxu0 0.0
          %2556 = vmatprep.subr.mxu0 0.0
          %2557 = vmatpush1.msra.mxu0 0.0
          %2558 = vmatprep.subr.mxu0 0.0
          %2559 = vmatpush1.msra.mxu0 0.0
          %2560 = vmatprep.subr.mxu0 0.0
          %2561 = vmatpush1.msra.mxu0 0.0
          %2562 = vmatprep.subr.mxu0 0.0
          %2563 = vmatpush1.msra.mxu0 0.0
          %2564 = vmatprep.subr.mxu0 0.0
          %2565 = vmatpush1.msra.mxu0 0.0
          %2566 = vmatprep.subr.mxu0 0.0
          %2567 = vmatpush1.msra.mxu0 0.0
          %2568 = vmatprep.subr.mxu0 0.0
          %2569 = vmatpush1.msra.mxu0 0.0
          %2570 = vmatprep.subr.mxu0 0.0
          %2571 = vmatpush1.msra.mxu0 0.0
          %2572 = vmatprep.subr.mxu0 0.0
          %2573 = vmatpush1.msra.mxu0 0.0
          %2574 = vmatprep.subr.mxu0 0.0
          %2575 = vmatpush1.msra.mxu0 0.0
          %2576 = vmatprep.subr.mxu0 0.0
          %2577 = vmatpush1.msra.mxu0 0.0
          %2578 = vmatprep.mubr.f32.mxu0 0.0
          %2579 = vmatmul.mubr.f32.gmra.mrb[0].mxu0 %v1733
          %v2580 = vpop.f32.mrb[0].mxu0
          %v2581 = vadd.f32 %v2509, %v2580
          %v2582 = vpop.f32.mrb[0].mxu0
          %2583 = vdwg.mxu0
          %v2603 = vcombine.low %v1859, %v1861
          %v2604 = vcombine.low %v1930, %v1932
          %v2606 = vunpack.c.l.s4 1983009808
          %v2607 = vunpack.c.0.s8 %v2606
          %v2608 = vlaneseq
          %v2609 = vshrl.u32 %v2608, 7
          %v2610 = vsub.s32 %v2607, %v2609
          %v2611 = vrot.slane %v2603, %v2610
          %v2613 = vunpack.c.l.s4 1983009808
          %v2614 = vunpack.c.0.s8 %v2613
          %v2615 = vlaneseq
          %v2616 = vshrl.u32 %v2615, 7
          %v2617 = vsub.s32 %v2614, %v2616
          %v2618 = vrot.slane %v2604, %v2617
          %v2619 = vcombine.low %v2611, %v2618
          %v2620 = vcombine.low %v2001, %v2003
          %v2621 = vcombine.low %v2072, %v2074
          %v2623 = vunpack.c.l.s4 1983009808
          %v2624 = vunpack.c.0.s8 %v2623
          %v2625 = vlaneseq
          %v2626 = vshrl.u32 %v2625, 7
          %v2627 = vsub.s32 %v2624, %v2626
          %v2628 = vrot.slane %v2620, %v2627
          %v2630 = vunpack.c.l.s4 1983009808
          %v2631 = vunpack.c.0.s8 %v2630
          %v2632 = vlaneseq
          %v2633 = vshrl.u32 %v2632, 7
          %v2634 = vsub.s32 %v2631, %v2633
          %v2635 = vrot.slane %v2621, %v2634
          %v2636 = vcombine.low %v2628, %v2635
          %v2637 = vcombine.low %v2143, %v2145
          %v2638 = vcombine.low %v2214, %v2216
          %v2640 = vunpack.c.l.s4 1983009808
          %v2641 = vunpack.c.0.s8 %v2640
          %v2642 = vlaneseq
          %v2643 = vshrl.u32 %v2642, 7
          %v2644 = vsub.s32 %v2641, %v2643
          %v2645 = vrot.slane %v2637, %v2644
          %v2647 = vunpack.c.l.s4 1983009808
          %v2648 = vunpack.c.0.s8 %v2647
          %v2649 = vlaneseq
          %v2650 = vshrl.u32 %v2649, 7
          %v2651 = vsub.s32 %v2648, %v2650
          %v2652 = vrot.slane %v2638, %v2651
          %v2653 = vcombine.low %v2645, %v2652
          %v2654 = vcombine.low %v2285, %v2287
          %v2655 = vcombine.low %v2356, %v2358
          %v2657 = vunpack.c.l.s4 1983009808
          %v2658 = vunpack.c.0.s8 %v2657
          %v2659 = vlaneseq
          %v2660 = vshrl.u32 %v2659, 7
          %v2661 = vsub.s32 %v2658, %v2660
          %v2662 = vrot.slane %v2654, %v2661
          %v2664 = vunpack.c.l.s4 1983009808
          %v2665 = vunpack.c.0.s8 %v2664
          %v2666 = vlaneseq
          %v2667 = vshrl.u32 %v2666, 7
          %v2668 = vsub.s32 %v2665, %v2667
          %v2669 = vrot.slane %v2655, %v2668
          %v2670 = vcombine.low %v2662, %v2669
          %v2671 = vcombine.low %v2427, %v2429
          %v2673 = vunpack.c.l.s4 1983009808
          %v2674 = vunpack.c.0.s8 %v2673
          %v2675 = vlaneseq
          %v2676 = vshrl.u32 %v2675, 7
          %v2677 = vsub.s32 %v2674, %v2676
          %v2678 = vrot.slane %v2671, %v2677
          %v2680 = vunpack.c.l.s4 1983009808
          %v2681 = vunpack.c.0.s8 %v2680
          %v2682 = vlaneseq
          %v2683 = vshrl.u32 %v2682, 7
          %v2684 = vsub.s32 %v2681, %v2683
          %v2685 = vrot.slane %v2498, %v2684
          %v2686 = vcombine.low %v2678, %v2685
          %2692 = vst [vmem:[%s14] sm:$0xff] %v2619
          %2693 = vst [vmem:[%s14 + $0x8] sm:$0xff] %v2636
          %2694 = vst [vmem:[%s14 + $0x10] sm:$0xff] %v2653
          %2695 = vst [vmem:[%s14 + $0x18] sm:$0xff] %v2670
          %2696 = vst [vmem:[%s14 + $0x20] sm:$0x3f] %v2686
          %2697 = vst [vmem:[%s16] sm:$0x3] %v2581
          %2699 = vset.pattern.permute.xlu0 25
          %2700 = vperm.xlu0 %2699, %v1572
          %v2701 = vpop.permute.xlu0 %2700
          %v2703 = vmul.f32 %v1859, %v2701
          %v2704 = vmul.f32 %v1861, %v2701
          %v2705 = vmul.f32 %v1930, %v2701
          %v2706 = vmul.f32 %v1932, %v2701
          %v2707 = vmul.f32 %v2001, %v2701
          %v2708 = vmul.f32 %v2003, %v2701
          %v2709 = vmul.f32 %v2072, %v2701
          %v2710 = vmul.f32 %v2074, %v2701
          %v2711 = vmul.f32 %v2143, %v2701
          %v2712 = vmul.f32 %v2145, %v2701
          %v2713 = vmul.f32 %v2214, %v2701
          %v2714 = vmul.f32 %v2216, %v2701
          %v2715 = vmul.f32 %v2285, %v2701
          %v2716 = vmul.f32 %v2287, %v2701
          %v2717 = vmul.f32 %v2356, %v2701
          %v2718 = vmul.f32 %v2358, %v2701
          %v2719 = vmul.f32 %v2427, %v2701
          %v2720 = vmul.f32 %v2429, %v2701
          %v2721 = vmul.f32 %v2498, %v2701
          %v2722 = vld [vmem:[%s11] ss:$2 sm:$0xff]
          %s2723 = scalar_lea.vmem %s11, 16
          %v2724 = vld [vmem:[%s2723] ss:$2 sm:$0xff]
          %s2725 = scalar_lea.vmem %s11, 32
          %v2726 = vld [vmem:[%s2725] ss:$2 sm:$0x7]
          %2728 = vset.pattern.permute.xlu0 20
          %2729 = vperm.xlu0 %2728, %v1569
          %v2730 = vpop.permute.xlu0 %2729
          %v2735 = vlaneseq
          %v2736 = vshrl.u32 %v2735, 7
          %v2737 = vsub.s32 0, %v2736
          %v2738 = vrot.slane %v2722, %v2737
          %v2739 = vlaneseq
          %v2740 = vshrl.u32 %v2739, 7
          %v2741 = vsub.s32 1, %v2740
          %v2742 = vrot.slane %v2722, %v2741
          %v2743 = vlaneseq
          %v2744 = vshrl.u32 %v2743, 7
          %v2745 = vsub.s32 2, %v2744
          %v2746 = vrot.slane %v2722, %v2745
          %v2747 = vlaneseq
          %v2748 = vshrl.u32 %v2747, 7
          %v2749 = vsub.s32 3, %v2748
          %v2750 = vrot.slane %v2722, %v2749
          %v2751 = vlaneseq
          %v2752 = vshrl.u32 %v2751, 7
          %v2753 = vsub.s32 4, %v2752
          %v2754 = vrot.slane %v2722, %v2753
          %v2755 = vlaneseq
          %v2756 = vshrl.u32 %v2755, 7
          %v2757 = vsub.s32 5, %v2756
          %v2758 = vrot.slane %v2722, %v2757
          %v2759 = vlaneseq
          %v2760 = vshrl.u32 %v2759, 7
          %v2761 = vsub.s32 6, %v2760
          %v2762 = vrot.slane %v2722, %v2761
          %v2763 = vlaneseq
          %v2764 = vshrl.u32 %v2763, 7
          %v2765 = vsub.s32 7, %v2764
          %v2766 = vrot.slane %v2722, %v2765
          %v2767 = vlaneseq
          %v2768 = vshrl.u32 %v2767, 7
          %v2769 = vsub.s32 0, %v2768
          %v2770 = vrot.slane %v2724, %v2769
          %v2771 = vlaneseq
          %v2772 = vshrl.u32 %v2771, 7
          %v2773 = vsub.s32 1, %v2772
          %v2774 = vrot.slane %v2724, %v2773
          %v2775 = vlaneseq
          %v2776 = vshrl.u32 %v2775, 7
          %v2777 = vsub.s32 2, %v2776
          %v2778 = vrot.slane %v2724, %v2777
          %v2779 = vlaneseq
          %v2780 = vshrl.u32 %v2779, 7
          %v2781 = vsub.s32 3, %v2780
          %v2782 = vrot.slane %v2724, %v2781
          %v2783 = vlaneseq
          %v2784 = vshrl.u32 %v2783, 7
          %v2785 = vsub.s32 4, %v2784
          %v2786 = vrot.slane %v2724, %v2785
          %v2787 = vlaneseq
          %v2788 = vshrl.u32 %v2787, 7
          %v2789 = vsub.s32 5, %v2788
          %v2790 = vrot.slane %v2724, %v2789
          %v2791 = vlaneseq
          %v2792 = vshrl.u32 %v2791, 7
          %v2793 = vsub.s32 6, %v2792
          %v2794 = vrot.slane %v2724, %v2793
          %v2795 = vlaneseq
          %v2796 = vshrl.u32 %v2795, 7
          %v2797 = vsub.s32 7, %v2796
          %v2798 = vrot.slane %v2724, %v2797
          %v2799 = vlaneseq
          %v2800 = vshrl.u32 %v2799, 7
          %v2801 = vsub.s32 0, %v2800
          %v2802 = vrot.slane %v2726, %v2801
          %v2803 = vlaneseq
          %v2804 = vshrl.u32 %v2803, 7
          %v2805 = vsub.s32 1, %v2804
          %v2806 = vrot.slane %v2726, %v2805
          %v2807 = vlaneseq
          %v2808 = vshrl.u32 %v2807, 7
          %v2809 = vsub.s32 2, %v2808
          %v2810 = vrot.slane %v2726, %v2809
          %v2830 = vmul.f32 %v2730, %v2738
          %v2831 = vmul.f32 %v2730, %v2742
          %v2832 = vmul.f32 %v2730, %v2746
          %v2833 = vmul.f32 %v2730, %v2750
          %v2834 = vmul.f32 %v2730, %v2754
          %v2835 = vmul.f32 %v2730, %v2758
          %v2836 = vmul.f32 %v2730, %v2762
          %v2837 = vmul.f32 %v2730, %v2766
          %v2838 = vmul.f32 %v2730, %v2770
          %v2839 = vmul.f32 %v2730, %v2774
          %v2840 = vmul.f32 %v2730, %v2778
          %v2841 = vmul.f32 %v2730, %v2782
          %v2842 = vmul.f32 %v2730, %v2786
          %v2843 = vmul.f32 %v2730, %v2790
          %v2844 = vmul.f32 %v2730, %v2794
          %v2845 = vmul.f32 %v2730, %v2798
          %v2846 = vmul.f32 %v2730, %v2802
          %v2847 = vmul.f32 %v2730, %v2806
          %v2848 = vmul.f32 %v2730, %v2810
          %v2849 = vadd.f32 %v2703, %v2830
          %v2850 = vadd.f32 %v2704, %v2831
          %v2851 = vadd.f32 %v2705, %v2832
          %v2852 = vadd.f32 %v2706, %v2833
          %v2853 = vadd.f32 %v2707, %v2834
          %v2854 = vadd.f32 %v2708, %v2835
          %v2855 = vadd.f32 %v2709, %v2836
          %v2856 = vadd.f32 %v2710, %v2837
          %v2857 = vadd.f32 %v2711, %v2838
          %v2858 = vadd.f32 %v2712, %v2839
          %v2859 = vadd.f32 %v2713, %v2840
          %v2860 = vadd.f32 %v2714, %v2841
          %v2861 = vadd.f32 %v2715, %v2842
          %v2862 = vadd.f32 %v2716, %v2843
          %v2863 = vadd.f32 %v2717, %v2844
          %v2864 = vadd.f32 %v2718, %v2845
          %v2865 = vadd.f32 %v2719, %v2846
          %v2866 = vadd.f32 %v2720, %v2847
          %v2867 = vadd.f32 %v2721, %v2848
          %s2868 = scalar_lea.vmem %s11, 1
          %v2869 = vld [vmem:[%s2868] ss:$2 sm:$0xff]
          %s2870 = scalar_lea.vmem %s11, 17
          %v2871 = vld [vmem:[%s2870] ss:$2 sm:$0xff]
          %s2872 = scalar_lea.vmem %s11, 33
          %v2873 = vld [vmem:[%s2872] ss:$2 sm:$0x7]
          %2875 = vset.pattern.permute.xlu0 21
          %2876 = vperm.xlu0 %2875, %v1570
          %v2877 = vpop.permute.xlu0 %2876
          %v2882 = vlaneseq
          %v2883 = vshrl.u32 %v2882, 7
          %v2884 = vsub.s32 0, %v2883
          %v2885 = vrot.slane %v2869, %v2884
          %v2886 = vlaneseq
          %v2887 = vshrl.u32 %v2886, 7
          %v2888 = vsub.s32 1, %v2887
          %v2889 = vrot.slane %v2869, %v2888
          %v2890 = vlaneseq
          %v2891 = vshrl.u32 %v2890, 7
          %v2892 = vsub.s32 2, %v2891
          %v2893 = vrot.slane %v2869, %v2892
          %v2894 = vlaneseq
          %v2895 = vshrl.u32 %v2894, 7
          %v2896 = vsub.s32 3, %v2895
          %v2897 = vrot.slane %v2869, %v2896
          %v2898 = vlaneseq
          %v2899 = vshrl.u32 %v2898, 7
          %v2900 = vsub.s32 4, %v2899
          %v2901 = vrot.slane %v2869, %v2900
          %v2902 = vlaneseq
          %v2903 = vshrl.u32 %v2902, 7
          %v2904 = vsub.s32 5, %v2903
          %v2905 = vrot.slane %v2869, %v2904
          %v2906 = vlaneseq
          %v2907 = vshrl.u32 %v2906, 7
          %v2908 = vsub.s32 6, %v2907
          %v2909 = vrot.slane %v2869, %v2908
          %v2910 = vlaneseq
          %v2911 = vshrl.u32 %v2910, 7
          %v2912 = vsub.s32 7, %v2911
          %v2913 = vrot.slane %v2869, %v2912
          %v2914 = vlaneseq
          %v2915 = vshrl.u32 %v2914, 7
          %v2916 = vsub.s32 0, %v2915
          %v2917 = vrot.slane %v2871, %v2916
          %v2918 = vlaneseq
          %v2919 = vshrl.u32 %v2918, 7
          %v2920 = vsub.s32 1, %v2919
          %v2921 = vrot.slane %v2871, %v2920
          %v2922 = vlaneseq
          %v2923 = vshrl.u32 %v2922, 7
          %v2924 = vsub.s32 2, %v2923
          %v2925 = vrot.slane %v2871, %v2924
          %v2926 = vlaneseq
          %v2927 = vshrl.u32 %v2926, 7
          %v2928 = vsub.s32 3, %v2927
          %v2929 = vrot.slane %v2871, %v2928
          %v2930 = vlaneseq
          %v2931 = vshrl.u32 %v2930, 7
          %v2932 = vsub.s32 4, %v2931
          %v2933 = vrot.slane %v2871, %v2932
          %v2934 = vlaneseq
          %v2935 = vshrl.u32 %v2934, 7
          %v2936 = vsub.s32 5, %v2935
          %v2937 = vrot.slane %v2871, %v2936
          %v2938 = vlaneseq
          %v2939 = vshrl.u32 %v2938, 7
          %v2940 = vsub.s32 6, %v2939
          %v2941 = vrot.slane %v2871, %v2940
          %v2942 = vlaneseq
          %v2943 = vshrl.u32 %v2942, 7
          %v2944 = vsub.s32 7, %v2943
          %v2945 = vrot.slane %v2871, %v2944
          %v2946 = vlaneseq
          %v2947 = vshrl.u32 %v2946, 7
          %v2948 = vsub.s32 0, %v2947
          %v2949 = vrot.slane %v2873, %v2948
          %v2950 = vlaneseq
          %v2951 = vshrl.u32 %v2950, 7
          %v2952 = vsub.s32 1, %v2951
          %v2953 = vrot.slane %v2873, %v2952
          %v2954 = vlaneseq
          %v2955 = vshrl.u32 %v2954, 7
          %v2956 = vsub.s32 2, %v2955
          %v2957 = vrot.slane %v2873, %v2956
          %v2977 = vmul.f32 %v2877, %v2885
          %v2978 = vmul.f32 %v2877, %v2889
          %v2979 = vmul.f32 %v2877, %v2893
          %v2980 = vmul.f32 %v2877, %v2897
          %v2981 = vmul.f32 %v2877, %v2901
          %v2982 = vmul.f32 %v2877, %v2905
          %v2983 = vmul.f32 %v2877, %v2909
          %v2984 = vmul.f32 %v2877, %v2913
          %v2985 = vmul.f32 %v2877, %v2917
          %v2986 = vmul.f32 %v2877, %v2921
          %v2987 = vmul.f32 %v2877, %v2925
          %v2988 = vmul.f32 %v2877, %v2929
          %v2989 = vmul.f32 %v2877, %v2933
          %v2990 = vmul.f32 %v2877, %v2937
          %v2991 = vmul.f32 %v2877, %v2941
          %v2992 = vmul.f32 %v2877, %v2945
          %v2993 = vmul.f32 %v2877, %v2949
          %v2994 = vmul.f32 %v2877, %v2953
          %v2995 = vmul.f32 %v2877, %v2957
          %v2996 = vadd.f32 %v2849, %v2977
          %v2997 = vadd.f32 %v2850, %v2978
          %v2998 = vadd.f32 %v2851, %v2979
          %v2999 = vadd.f32 %v2852, %v2980
          %v3000 = vadd.f32 %v2853, %v2981
          %v3001 = vadd.f32 %v2854, %v2982
          %v3002 = vadd.f32 %v2855, %v2983
          %v3003 = vadd.f32 %v2856, %v2984
          %v3004 = vadd.f32 %v2857, %v2985
          %v3005 = vadd.f32 %v2858, %v2986
          %v3006 = vadd.f32 %v2859, %v2987
          %v3007 = vadd.f32 %v2860, %v2988
          %v3008 = vadd.f32 %v2861, %v2989
          %v3009 = vadd.f32 %v2862, %v2990
          %v3010 = vadd.f32 %v2863, %v2991
          %v3011 = vadd.f32 %v2864, %v2992
          %v3012 = vadd.f32 %v2865, %v2993
          %v3013 = vadd.f32 %v2866, %v2994
          %v3014 = vadd.f32 %v2867, %v2995
          %v3034 = vcombine.low %v2996, %v2997
          %v3035 = vcombine.low %v2998, %v2999
          %v3037 = vunpack.c.l.s4 1983009808
          %v3038 = vunpack.c.0.s8 %v3037
          %v3039 = vlaneseq
          %v3040 = vshrl.u32 %v3039, 7
          %v3041 = vsub.s32 %v3038, %v3040
          %v3042 = vrot.slane %v3034, %v3041
          %v3044 = vunpack.c.l.s4 1983009808
          %v3045 = vunpack.c.0.s8 %v3044
          %v3046 = vlaneseq
          %v3047 = vshrl.u32 %v3046, 7
          %v3048 = vsub.s32 %v3045, %v3047
          %v3049 = vrot.slane %v3035, %v3048
          %v3050 = vcombine.low %v3042, %v3049
          %v3051 = vcombine.low %v3000, %v3001
          %v3052 = vcombine.low %v3002, %v3003
          %v3054 = vunpack.c.l.s4 1983009808
          %v3055 = vunpack.c.0.s8 %v3054
          %v3056 = vlaneseq
          %v3057 = vshrl.u32 %v3056, 7
          %v3058 = vsub.s32 %v3055, %v3057
          %v3059 = vrot.slane %v3051, %v3058
          %v3061 = vunpack.c.l.s4 1983009808
          %v3062 = vunpack.c.0.s8 %v3061
          %v3063 = vlaneseq
          %v3064 = vshrl.u32 %v3063, 7
          %v3065 = vsub.s32 %v3062, %v3064
          %v3066 = vrot.slane %v3052, %v3065
          %v3067 = vcombine.low %v3059, %v3066
          %v3068 = vcombine.low %v3004, %v3005
          %v3069 = vcombine.low %v3006, %v3007
          %v3071 = vunpack.c.l.s4 1983009808
          %v3072 = vunpack.c.0.s8 %v3071
          %v3073 = vlaneseq
          %v3074 = vshrl.u32 %v3073, 7
          %v3075 = vsub.s32 %v3072, %v3074
          %v3076 = vrot.slane %v3068, %v3075
          %v3078 = vunpack.c.l.s4 1983009808
          %v3079 = vunpack.c.0.s8 %v3078
          %v3080 = vlaneseq
          %v3081 = vshrl.u32 %v3080, 7
          %v3082 = vsub.s32 %v3079, %v3081
          %v3083 = vrot.slane %v3069, %v3082
          %v3084 = vcombine.low %v3076, %v3083
          %v3085 = vcombine.low %v3008, %v3009
          %v3086 = vcombine.low %v3010, %v3011
          %v3088 = vunpack.c.l.s4 1983009808
          %v3089 = vunpack.c.0.s8 %v3088
          %v3090 = vlaneseq
          %v3091 = vshrl.u32 %v3090, 7
          %v3092 = vsub.s32 %v3089, %v3091
          %v3093 = vrot.slane %v3085, %v3092
          %v3095 = vunpack.c.l.s4 1983009808
          %v3096 = vunpack.c.0.s8 %v3095
          %v3097 = vlaneseq
          %v3098 = vshrl.u32 %v3097, 7
          %v3099 = vsub.s32 %v3096, %v3098
          %v3100 = vrot.slane %v3086, %v3099
          %v3101 = vcombine.low %v3093, %v3100
          %v3102 = vcombine.low %v3012, %v3013
          %v3104 = vunpack.c.l.s4 1983009808
          %v3105 = vunpack.c.0.s8 %v3104
          %v3106 = vlaneseq
          %v3107 = vshrl.u32 %v3106, 7
          %v3108 = vsub.s32 %v3105, %v3107
          %v3109 = vrot.slane %v3102, %v3108
          %v3111 = vunpack.c.l.s4 1983009808
          %v3112 = vunpack.c.0.s8 %v3111
          %v3113 = vlaneseq
          %v3114 = vshrl.u32 %v3113, 7
          %v3115 = vsub.s32 %v3112, %v3114
          %v3116 = vrot.slane %v3014, %v3115
          %v3117 = vcombine.low %v3109, %v3116
          %3123 = vst [vmem:[%s15] sm:$0xff] %v3050
          %3124 = vst [vmem:[%s15 + $0x8] sm:$0xff] %v3067
          %3125 = vst [vmem:[%s15 + $0x10] sm:$0xff] %v3084
          %3126 = vst [vmem:[%s15 + $0x18] sm:$0xff] %v3101
          %3127 = vst [vmem:[%s15 + $0x20] sm:$0x3f] %v3117
          %v3128 = vmul.f32 %v2581, %v2701
          %v3129 = vld [vmem:[%s12] sm:$0x1]
          %v3130 = vlaneseq
          %v3131 = vshrl.u32 %v3130, 7
          %v3132 = vsub.s32 0, %v3131
          %v3133 = vrot.slane %v3129, %v3132
          %v3134 = vmul.f32 %v2730, %v3133
          %v3135 = vadd.f32 %v3128, %v3134
          %v3136 = vld [vmem:[%s12 + $0x1] sm:$0x1]
          %v3137 = vlaneseq
          %v3138 = vshrl.u32 %v3137, 7
          %v3139 = vsub.s32 0, %v3138
          %v3140 = vrot.slane %v3136, %v3139
          %v3141 = vmul.f32 %v2877, %v3140
          %v3142 = vadd.f32 %v3135, %v3141
          %3143 = vst [vmem:[%s17] sm:$0x3] %v3142
        $region121: #{hand_pose_forward.1} parent=108 // pred_fallthru
          _
        // Predicated region
        $region122: #{hand_pose_forward.1} parent=108 // pred_check
          %p3144 = pneg %p320
        $region123: #{hand_pose_forward.1} parent=108 // pred_check_branch
          %3146 = sbr.rel (%p3144) target = $region125
        $region124: #{hand_pose_forward.1} parent=108 // pred_region
          _
        $region125: #{hand_pose_forward.1} parent=108 // pred_fallthru
          _
        // Predicated region
        $region126: #{hand_pose_forward.1} parent=108 // pred_check
          %p3147 = pneg %p341
        $region127: #{hand_pose_forward.1} parent=108 // pred_check_branch
          %3149 = sbr.rel (%p3147) target = $region129
        $region128: #{hand_pose_forward.1} parent=108 // pred_region
          _
        $region129: #{hand_pose_forward.1} parent=108 // pred_fallthru
          _
        // Predicated region
        $region130: #{hand_pose_forward.1} parent=108 // pred_check
          %p3150 = pneg %p362
        $region131: #{hand_pose_forward.1} parent=108 // pred_check_branch
          %3152 = sbr.rel (%p3150) target = $region133
        $region132: #{hand_pose_forward.1} parent=108 // pred_region
          _
        $region133: #{hand_pose_forward.1} parent=108 // pred_fallthru
          _
        // Predicated region
        $region134: #{hand_pose_forward.1} parent=108 // pred_check
          %p3153 = pneg %p383
        $region135: #{hand_pose_forward.1} parent=108 // pred_check_branch
          %3155 = sbr.rel (%p3153) target = $region137
        $region136: #{hand_pose_forward.1} parent=108 // pred_region
          _
        $region137: #{hand_pose_forward.1} parent=108 // pred_fallthru
          _
        // Predicated region
        $region138: #{hand_pose_forward.1} parent=108 // pred_check
          %p3156 = pneg %p404
        $region139: #{hand_pose_forward.1} parent=108 // pred_check_branch
          %3158 = sbr.rel (%p3156) target = $region141
        $region140: #{hand_pose_forward.1} parent=108 // pred_region
          _
        $region141: #{hand_pose_forward.1} parent=108 // pred_fallthru
          _
        // Predicated region
        $region142: #{hand_pose_forward.1} parent=108 // pred_check
          %p3159 = pneg %p320
        $region143: #{hand_pose_forward.1} parent=108 // pred_check_branch
          %3161 = sbr.rel (%p3159) target = $region145
        $region144: #{hand_pose_forward.1} parent=108 // pred_region
          _
        $region145: #{hand_pose_forward.1} parent=108 // pred_fallthru
          _
        // Predicated region
        $region146: #{hand_pose_forward.1} parent=108 // pred_check
          %p3162 = pneg %p341
        $region147: #{hand_pose_forward.1} parent=108 // pred_check_branch
          %3164 = sbr.rel (%p3162) target = $region149
        $region148: #{hand_pose_forward.1} parent=108 // pred_region
          _
        $region149: #{hand_pose_forward.1} parent=108 // pred_fallthru
          _
        // Predicated region
        $region150: #{hand_pose_forward.1} parent=108 // pred_check
          %p3165 = pneg %p362
        $region151: #{hand_pose_forward.1} parent=108 // pred_check_branch
          %3167 = sbr.rel (%p3165) target = $region153
        $region152: #{hand_pose_forward.1} parent=108 // pred_region
          _
        $region153: #{hand_pose_forward.1} parent=108 // pred_fallthru
          _
        // Predicated region
        $region154: #{hand_pose_forward.1} parent=108 // pred_check
          %p3168 = pneg %p383
        $region155: #{hand_pose_forward.1} parent=108 // pred_check_branch
          %3170 = sbr.rel (%p3168) target = $region157
        $region156: #{hand_pose_forward.1} parent=108 // pred_region
          _
        $region157: #{hand_pose_forward.1} parent=108 // pred_fallthru
          _
        // Predicated region
        $region158: #{hand_pose_forward.1} parent=108 // pred_check
          %p3171 = pneg %p404
        $region159: #{hand_pose_forward.1} parent=108 // pred_check_branch
          %3173 = sbr.rel (%p3171) target = $region161
        $region160: #{hand_pose_forward.1} parent=108 // pred_region
          _
        $region161: #{hand_pose_forward.1} parent=108 // pred_fallthru
          _
      $region109: #{hand_pose_forward.1} parent=5 // pred_fallthru
        _
      %p3174 = scmp.le.s32.totalorder 2, %s24
      // Predicated region
      $region162: #{hand_pose_forward.1} parent=5 // pred_check
        %p3175 = pneg %p3174
      $region163: #{hand_pose_forward.1} parent=5 // pred_check_branch
        %3177 = sbr.rel (%p3175) target = $region165
      $region164: #{hand_pose_forward.1} parent=5 // pred_region
        %s3178 = ssub.s32 %s24, 2
      $region165: #{hand_pose_forward.1} parent=5 // pred_fallthru
        _
    $region6: #{hand_pose_forward.1} parent=1 // loop_footer
      %s28 = sadd.s32 1, %s24
    $region7: #{hand_pose_forward.1} parent=1 // loop_footer_branch
      %23 = sbr.rel target = $region3
    $region8: #{hand_pose_forward.1} parent=1 // loop_exit
      _

</llo_original>
